<compile_context>
chip_gen: v6e
topology: v6e:2x2x1
jax: 0.10.0
libtpu: 0.0.40
codegen_flags: <defaults>
</compile_context>

<pallas_src>
import math

import numpy as np
import jax
import jax.numpy as jnp
from jax.experimental import pallas as pl
from jax.experimental.pallas import tpu as pltpu

# ---------------- model hyper-parameters (small synthetic config) -----------
B = 2              # batch
S = 8              # sequence length
H = 32             # hidden_dim
NUM_HEADS = 2
HEAD_DIM = H // NUM_HEADS
FFN = 64           # intermediate size
VOCAB = 64
NUM_LAYERS = 2
LN_EPS = 1e-5
BS = B * S         # flattened batch*seq rows
LH = NUM_LAYERS * NUM_HEADS   # flattened (layer, head) index for weight stacks


# ---------------- shared math helpers ----------------------------------------
def _layernorm(x, gamma, beta):
    # x: (rows, H) f32, gamma/beta: (1, H) f32
    mean = jnp.mean(x, axis=-1, keepdims=True)
    var = jnp.mean((x - mean) ** 2, axis=-1, keepdims=True)
    inv = jax.lax.rsqrt(var + LN_EPS)
    return (x - mean) * inv * gamma + beta


def _bf16(x):
    return x.astype(jnp.bfloat16)


# ---------------- fused Pallas kernel -----------------------------------------
def fused_lm_kernel(ids_ref,                                   # (BS, 1) i32
                    tok_ref, pos_ref, eg_ref, eb_ref,          # embeddings + emb LN
                    wq_ref, bq_ref, wk_ref, bk_ref,            # per-head Q/K
                    wv_ref, bv_ref, wo_ref, bo_ref,            # per-head V / out-proj
                    g1_ref, be1_ref,                           # LN1 (stacked L)
                    w1_ref, b1_ref, w2_ref, b2_ref,            # FFN (stacked L)
                    g2_ref, be2_ref,                           # LN2 (stacked L)
                    bias_ref,                                  # (BS, BS) additive bias
                    o_ref):                                    # (BS, H) output
    # --- token embedding as a one-hot MXU matmul (no scalar gather chain) ---
    ids = ids_ref[...]                                          # (BS, 1) i32
    iota = jax.lax.broadcasted_iota(jnp.int32, (BS, VOCAB), 1)
    one_hot = (iota == ids).astype(jnp.bfloat16)                # (BS, VOCAB)
    x = jnp.dot(one_hot, tok_ref[...], preferred_element_type=jnp.float32)
    x = x + pos_ref[...]                                        # pre-tiled (BS, H)
    x = _layernorm(x, eg_ref[...], eb_ref[...])

    bias = bias_ref[...]                                        # 0 allowed / -1e9 blocked
    scale = 1.0 / math.sqrt(HEAD_DIM)

    for l in range(NUM_LAYERS):                                 # static loop, weights resident
        xb = _bf16(x)
        attn_out = jnp.zeros((BS, H), jnp.float32)
        for h in range(NUM_HEADS):                              # static, per-head weight refs
            i = l * NUM_HEADS + h
            qh = jnp.dot(xb, wq_ref[i], preferred_element_type=jnp.float32) + bq_ref[i]
            kh = jnp.dot(xb, wk_ref[i], preferred_element_type=jnp.float32) + bk_ref[i]
            vh = jnp.dot(xb, wv_ref[i], preferred_element_type=jnp.float32) + bv_ref[i]
            # q @ k^T without materializing a transpose (contract dim 1 of both)
            s = jax.lax.dot_general(
                _bf16(qh), _bf16(kh),
                dimension_numbers=(((1,), (1,)), ((), ())),
                preferred_element_type=jnp.float32) * scale + bias
            s = s - jnp.max(s, axis=-1, keepdims=True)
            p = jnp.exp(s)
            p = p * pl.reciprocal(jnp.sum(p, axis=-1, keepdims=True), approx=True)
            ctx = jnp.dot(_bf16(p), _bf16(vh), preferred_element_type=jnp.float32)
            # accumulate through this head's slab of the output projection
            # (avoids any lane-axis concatenate / activation slicing)
            attn_out = attn_out + jnp.dot(_bf16(ctx), wo_ref[i],
                                          preferred_element_type=jnp.float32)
        attn_out = attn_out + bo_ref[l]
        y = _layernorm(x + attn_out, g1_ref[l], be1_ref[l])

        # --- feed forward ---
        hdn = jnp.dot(_bf16(y), w1_ref[l], preferred_element_type=jnp.float32) + b1_ref[l]
        # TODO(synk): HF BERT uses exact erf GELU; tanh approximation used here.
        hdn = jax.nn.gelu(hdn, approximate=True)
        ff = jnp.dot(_bf16(hdn), w2_ref[l], preferred_element_type=jnp.float32) + b2_ref[l]
        x = _layernorm(y + ff, g2_ref[l], be2_ref[l])

    o_ref[...] = x.astype(o_ref.dtype)


# ---------------- pallas_call wrapper -----------------------------------------
def _fs(shape):
    """Full-block spec (grid=(1,)): always block (0, ..., 0)."""
    n = len(shape)
    return pl.BlockSpec(shape, lambda i, _n=n: (0,) * _n)


@jax.jit
def lm_forward(text_ids, text_mask, params):
    """text = (text_ids, text_mask); returns (last_hidden_state, text_mask)."""
    ids2d = text_ids.reshape(BS, 1).astype(jnp.int32)

    # Additive attention bias, computed once for all layers:
    #   0   where key j is a valid (unmasked) token of the SAME batch element
    #  -1e9 otherwise (padding or cross-batch), matching HF additive masking.
    key_valid = text_mask.astype(jnp.float32).reshape(BS)
    batch_ids = jnp.arange(BS, dtype=jnp.int32) // S
    same = (batch_ids[:, None] == batch_ids[None, :]).astype(jnp.float32)
    attn_bias = (1.0 - same * key_valid[None, :]) * (-1e9)        # (BS, BS)

    # Hoist positional-embedding tiling out of the kernel.
    pos_tiled = jnp.tile(params["pos_emb"], (B, 1))               # (BS, H) f32

    inputs = [
        ids2d,
        params["tok_emb"], pos_tiled, params["emb_ln_g"], params["emb_ln_b"],
        params["wq"], params["bq"], params["wk"], params["bk"],
        params["wv"], params["bv"], params["wo"], params["bo"],
        params["g1"], params["be1"], params["w1"], params["b1"],
        params["w2"], params["b2"], params["g2"], params["be2"],
        attn_bias,
    ]

    # NOTE(scaling): at real batch/seq sizes, add a leading 'parallel' grid axis
    # over row blocks (shards across v7x's 2 TensorCores) and stream per-layer
    # bf16 weights; at this toy size a single program is optimal.
    out = pl.pallas_call(
        fused_lm_kernel,
        out_shape=jax.ShapeDtypeStruct((BS, H), jnp.float32),
        grid=(1,),
        in_specs=[_fs(x.shape) for x in inputs],
        out_specs=pl.BlockSpec((BS, H), lambda i: (0, 0)),
        compiler_params=pltpu.CompilerParams(
            dimension_semantics=("arbitrary",)),
    )(*inputs)

    lm_feats = out.reshape(B, S, H)          # last_hidden_state
    return lm_feats, text_mask               # same tuple as the PyTorch module


# ---------------- parameter init (deterministic, synthetic) ------------------
def init_params(key):
    def nrm(k, shape):
        # matmul weights stored in bf16 (MXU-native); f32 accumulation in-kernel
        return (0.02 * jax.random.normal(k, shape, dtype=jnp.float32)).astype(jnp.bfloat16)

    ks = jax.random.split(key, 8)
    return {
        "tok_emb": nrm(ks[0], (VOCAB, H)),                       # bf16 embedding table
        "pos_emb": 0.02 * jax.random.normal(ks[1], (S, H), dtype=jnp.float32),
        "emb_ln_g": jnp.ones((1, H), jnp.float32),
        "emb_ln_b": jnp.zeros((1, H), jnp.float32),
        # per-(layer, head) stacked weights — statically indexed in-kernel
        "wq": nrm(ks[2], (LH, H, HEAD_DIM)),
        "bq": jnp.zeros((LH, 1, HEAD_DIM), jnp.float32),
        "wk": nrm(ks[3], (LH, H, HEAD_DIM)),
        "bk": jnp.zeros((LH, 1, HEAD_DIM), jnp.float32),
        "wv": nrm(ks[4], (LH, H, HEAD_DIM)),
        "bv": jnp.zeros((LH, 1, HEAD_DIM), jnp.float32),
        "wo": nrm(ks[5], (LH, HEAD_DIM, H)),
        "bo": jnp.zeros((NUM_LAYERS, 1, H), jnp.float32),
        "g1": jnp.ones((NUM_LAYERS, 1, H), jnp.float32),
        "be1": jnp.zeros((NUM_LAYERS, 1, H), jnp.float32),
        "w1": nrm(ks[6], (NUM_LAYERS, H, FFN)),
        "b1": jnp.zeros((NUM_LAYERS, 1, FFN), jnp.float32),
        "w2": nrm(ks[7], (NUM_LAYERS, FFN, H)),
        "b2": jnp.zeros((NUM_LAYERS, 1, H), jnp.float32),
        "g2": jnp.ones((NUM_LAYERS, 1, H), jnp.float32),
        "be2": jnp.zeros((NUM_LAYERS, 1, H), jnp.float32),
    }


# ---------------- pure-JAX reference (correctness check) ---------------------
def lm_forward_ref(text_ids, text_mask, params):
    ids = text_ids.reshape(BS)
    x = jnp.take(params["tok_emb"], ids, axis=0).astype(jnp.float32)
    x = x + jnp.tile(params["pos_emb"], (B, 1))
    x = _layernorm(x, params["emb_ln_g"], params["emb_ln_b"])

    key_valid = text_mask.astype(jnp.float32).reshape(BS)
    batch_ids = jnp.arange(BS) // S
    same = (batch_ids[:, None] == batch_ids[None, :]).astype(jnp.float32)
    bias = (1.0 - same * key_valid[None, :]) * (-1e9)

    scale = 1.0 / math.sqrt(HEAD_DIM)

    def mm(a, w):   # mirror kernel numerics: bf16 operands, f32 accumulation
        return jnp.dot(a.astype(jnp.bfloat16), w, preferred_element_type=jnp.float32)

    for l in range(NUM_LAYERS):
        attn_out = jnp.zeros((BS, H), jnp.float32)
        for h in range(NUM_HEADS):
            i = l * NUM_HEADS + h
            qh = mm(x, params["wq"][i]) + params["bq"][i]
            kh = mm(x, params["wk"][i]) + params["bk"][i]
            vh = mm(x, params["wv"][i]) + params["bv"][i]
            s = jax.lax.dot_general(
                qh.astype(jnp.bfloat16), kh.astype(jnp.bfloat16),
                dimension_numbers=(((1,), (1,)), ((), ())),
                preferred_element_type=jnp.float32) * scale + bias
            p = jax.nn.softmax(s, axis=-1)
            ctx = mm(p, vh.astype(jnp.bfloat16))
            attn_out = attn_out + mm(ctx, params["wo"][i])
        attn_out = attn_out + params["bo"][l]
        y = _layernorm(x + attn_out, params["g1"][l], params["be1"][l])
        hdn = jax.nn.gelu(mm(y, params["w1"][l]) + params["b1"][l], approximate=True)
        x = _layernorm(y + mm(hdn, params["w2"][l]) + params["b2"][l],
                       params["g2"][l], params["be2"][l])
    return x.reshape(B, S, H), text_mask


# TODO(synk): the original module loads pretrained HF weights from a
# checkpoint string; here weights are synthetic deterministic tensors.

if __name__ == "__main__":
    key = jax.random.PRNGKey(0)
    pkey, ikey = jax.random.split(key)
    params = init_params(pkey)

    text_ids = jax.random.randint(ikey, (B, S), 0, VOCAB, dtype=jnp.int32)
    text_mask = jnp.ones((B, S), dtype=jnp.int32).at[1, 6:].set(0)

    lm_feats, out_mask = lm_forward(text_ids, text_mask, params)
    jax.block_until_ready((lm_feats, out_mask))

    assert lm_feats.shape == (B, S, H) and lm_feats.dtype == jnp.float32
    assert out_mask.shape == (B, S)

    ref_feats, _ = lm_forward_ref(text_ids, text_mask, params)
    np.testing.assert_allclose(np.asarray(lm_feats), np.asarray(ref_feats),
                               atol=1e-2, rtol=1e-2)
    print("KERNEL_OK")
</pallas_src>

<mosaic_0001>
module attributes {stable_mosaic.version = 11 : i64} {
  func.func @fused_lm_kernel(%arg0: i32, %arg1: memref<16x1xi32, #tpu.memory_space<vmem>>, %arg2: memref<64x32xbf16, #tpu.memory_space<vmem>>, %arg3: memref<16x32xf32, #tpu.memory_space<vmem>>, %arg4: memref<1x32xf32, #tpu.memory_space<vmem>>, %arg5: memref<1x32xf32, #tpu.memory_space<vmem>>, %arg6: memref<4x32x16xbf16, #tpu.memory_space<vmem>>, %arg7: memref<4x1x16xf32, #tpu.memory_space<vmem>>, %arg8: memref<4x32x16xbf16, #tpu.memory_space<vmem>>, %arg9: memref<4x1x16xf32, #tpu.memory_space<vmem>>, %arg10: memref<4x32x16xbf16, #tpu.memory_space<vmem>>, %arg11: memref<4x1x16xf32, #tpu.memory_space<vmem>>, %arg12: memref<4x16x32xbf16, #tpu.memory_space<vmem>>, %arg13: memref<2x1x32xf32, #tpu.memory_space<vmem>>, %arg14: memref<2x1x32xf32, #tpu.memory_space<vmem>>, %arg15: memref<2x1x32xf32, #tpu.memory_space<vmem>>, %arg16: memref<2x32x64xbf16, #tpu.memory_space<vmem>>, %arg17: memref<2x1x64xf32, #tpu.memory_space<vmem>>, %arg18: memref<2x64x32xbf16, #tpu.memory_space<vmem>>, %arg19: memref<2x1x32xf32, #tpu.memory_space<vmem>>, %arg20: memref<2x1x32xf32, #tpu.memory_space<vmem>>, %arg21: memref<2x1x32xf32, #tpu.memory_space<vmem>>, %arg22: memref<16x16xf32, #tpu.memory_space<vmem>>, %arg23: memref<16x32xf32, #tpu.memory_space<vmem>>) attributes {dimension_semantics = [#tpu.dimension_semantics<arbitrary>], iteration_bounds = array<i64: 1>, scalar_prefetch = 0 : i64, scratch_operands = 0 : i64, tpu.core_type = #tpu.core_type<tc>, window_params = [{pipeline_mode = #tpu.pipeline_mode<synchronous>, transform_indices = @transform_0, window_bounds = array<i64: 16, 1>}, {pipeline_mode = #tpu.pipeline_mode<synchronous>, transform_indices = @transform_1, window_bounds = array<i64: 64, 32>}, {pipeline_mode = #tpu.pipeline_mode<synchronous>, transform_indices = @transform_2, window_bounds = array<i64: 16, 32>}, {pipeline_mode = #tpu.pipeline_mode<synchronous>, transform_indices = @transform_3, window_bounds = array<i64: 1, 32>}, {pipeline_mode = #tpu.pipeline_mode<synchronous>, transform_indices = @transform_4, window_bounds = array<i64: 1, 32>}, {pipeline_mode = #tpu.pipeline_mode<synchronous>, transform_indices = @transform_5, window_bounds = array<i64: 4, 32, 16>}, {pipeline_mode = #tpu.pipeline_mode<synchronous>, transform_indices = @transform_6, window_bounds = array<i64: 4, 1, 16>}, {pipeline_mode = #tpu.pipeline_mode<synchronous>, transform_indices = @transform_7, window_bounds = array<i64: 4, 32, 16>}, {pipeline_mode = #tpu.pipeline_mode<synchronous>, transform_indices = @transform_8, window_bounds = array<i64: 4, 1, 16>}, {pipeline_mode = #tpu.pipeline_mode<synchronous>, transform_indices = @transform_9, window_bounds = array<i64: 4, 32, 16>}, {pipeline_mode = #tpu.pipeline_mode<synchronous>, transform_indices = @transform_10, window_bounds = array<i64: 4, 1, 16>}, {pipeline_mode = #tpu.pipeline_mode<synchronous>, transform_indices = @transform_11, window_bounds = array<i64: 4, 16, 32>}, {pipeline_mode = #tpu.pipeline_mode<synchronous>, transform_indices = @transform_12, window_bounds = array<i64: 2, 1, 32>}, {pipeline_mode = #tpu.pipeline_mode<synchronous>, transform_indices = @transform_13, window_bounds = array<i64: 2, 1, 32>}, {pipeline_mode = #tpu.pipeline_mode<synchronous>, transform_indices = @transform_14, window_bounds = array<i64: 2, 1, 32>}, {pipeline_mode = #tpu.pipeline_mode<synchronous>, transform_indices = @transform_15, window_bounds = array<i64: 2, 32, 64>}, {pipeline_mode = #tpu.pipeline_mode<synchronous>, transform_indices = @transform_16, window_bounds = array<i64: 2, 1, 64>}, {pipeline_mode = #tpu.pipeline_mode<synchronous>, transform_indices = @transform_17, window_bounds = array<i64: 2, 64, 32>}, {pipeline_mode = #tpu.pipeline_mode<synchronous>, transform_indices = @transform_18, window_bounds = array<i64: 2, 1, 32>}, {pipeline_mode = #tpu.pipeline_mode<synchronous>, transform_indices = @transform_19, window_bounds = array<i64: 2, 1, 32>}, {pipeline_mode = #tpu.pipeline_mode<synchronous>, transform_indices = @transform_20, window_bounds = array<i64: 2, 1, 32>}, {pipeline_mode = #tpu.pipeline_mode<synchronous>, transform_indices = @transform_21, window_bounds = array<i64: 16, 16>}, {pipeline_mode = #tpu.pipeline_mode<synchronous>, transform_indices = @transform_22, window_bounds = array<i64: 16, 32>}]} {
    %c0 = arith.constant 0 : index
    %c0_0 = arith.constant 0 : index
    %0 = vector.load %arg1[%c0, %c0_0] : memref<16x1xi32, #tpu.memory_space<vmem>>, vector<16x1xi32>
    %1 = tpu.iota {dimensions = array<i32: 1>} : vector<16x64xi32>
    %2 = vector.broadcast %0 : vector<16x1xi32> to vector<16x64xi32>
    %3 = arith.cmpi eq, %1, %2 : vector<16x64xi32>
    %4 = arith.extui %3 : vector<16x64xi1> to vector<16x64xi32>
    %5 = arith.sitofp %4 : vector<16x64xi32> to vector<16x64xf32>
    %6 = arith.truncf %5 : vector<16x64xf32> to vector<16x64xbf16>
    %c0_1 = arith.constant 0 : index
    %c0_2 = arith.constant 0 : index
    %7 = vector.load %arg2[%c0_1, %c0_2] : memref<64x32xbf16, #tpu.memory_space<vmem>>, vector<64x32xbf16>
    %cst = arith.constant dense<0.000000e+00> : vector<16x32xf32>
    %8 = tpu.matmul %6, %7, %cst {dimension_numbers = #tpu.dot_dimension_numbers<[1], [0], [0], [1], [0, 0, 1, 1], [], []>} : vector<16x64xbf16>, vector<64x32xbf16>, vector<16x32xf32> -> vector<16x32xf32>
    %c0_3 = arith.constant 0 : index
    %c0_4 = arith.constant 0 : index
    %9 = vector.load %arg3[%c0_3, %c0_4] : memref<16x32xf32, #tpu.memory_space<vmem>>, vector<16x32xf32>
    %10 = arith.addf %8, %9 : vector<16x32xf32>
    %c0_5 = arith.constant 0 : index
    %c0_6 = arith.constant 0 : index
    %11 = vector.load %arg4[%c0_5, %c0_6] : memref<1x32xf32, #tpu.memory_space<vmem>>, vector<1x32xf32>
    %c0_7 = arith.constant 0 : index
    %c0_8 = arith.constant 0 : index
    %12 = vector.load %arg5[%c0_7, %c0_8] : memref<1x32xf32, #tpu.memory_space<vmem>>, vector<1x32xf32>
    %cst_9 = arith.constant dense<0.000000e+00> : vector<16xf32>
    %13 = vector.multi_reduction <add>, %10, %cst_9 [1] : vector<16x32xf32> to vector<16xf32>
    %14 = vector.shape_cast %13 : vector<16xf32> to vector<16x1xf32>
    %cst_10 = arith.constant 3.200000e+01 : f32
    %15 = vector.broadcast %cst_10 : f32 to vector<16x1xf32>
    %16 = arith.divf %14, %15 : vector<16x1xf32>
    %17 = vector.broadcast %16 : vector<16x1xf32> to vector<16x32xf32>
    %18 = arith.subf %10, %17 : vector<16x32xf32>
    %19 = arith.mulf %18, %18 : vector<16x32xf32>
    %cst_11 = arith.constant dense<0.000000e+00> : vector<16xf32>
    %20 = vector.multi_reduction <add>, %19, %cst_11 [1] : vector<16x32xf32> to vector<16xf32>
    %21 = vector.shape_cast %20 : vector<16xf32> to vector<16x1xf32>
    %cst_12 = arith.constant 3.200000e+01 : f32
    %22 = vector.broadcast %cst_12 : f32 to vector<16x1xf32>
    %23 = arith.divf %21, %22 : vector<16x1xf32>
    %cst_13 = arith.constant 9.99999974E-6 : f32
    %24 = vector.broadcast %cst_13 : f32 to vector<16x1xf32>
    %25 = arith.addf %23, %24 : vector<16x1xf32>
    %26 = math.rsqrt %25 : vector<16x1xf32>
    %27 = vector.broadcast %16 : vector<16x1xf32> to vector<16x32xf32>
    %28 = arith.subf %10, %27 : vector<16x32xf32>
    %29 = vector.broadcast %26 : vector<16x1xf32> to vector<16x32xf32>
    %30 = arith.mulf %28, %29 : vector<16x32xf32>
    %31 = vector.broadcast %11 : vector<1x32xf32> to vector<16x32xf32>
    %32 = arith.mulf %30, %31 : vector<16x32xf32>
    %33 = vector.broadcast %12 : vector<1x32xf32> to vector<16x32xf32>
    %34 = arith.addf %32, %33 : vector<16x32xf32>
    %c0_14 = arith.constant 0 : index
    %c0_15 = arith.constant 0 : index
    %35 = vector.load %arg22[%c0_14, %c0_15] : memref<16x16xf32, #tpu.memory_space<vmem>>, vector<16x16xf32>
    %36 = arith.truncf %34 : vector<16x32xf32> to vector<16x32xbf16>
    %cst_16 = arith.constant 0.000000e+00 : f32
    %37 = vector.broadcast %cst_16 : f32 to vector<16x32xf32>
    %c0_17 = arith.constant 0 : index
    %c0_18 = arith.constant 0 : index
    %c0_19 = arith.constant 0 : index
    %38 = vector.load %arg6[%c0_17, %c0_18, %c0_19] : memref<4x32x16xbf16, #tpu.memory_space<vmem>>, vector<1x32x16xbf16>
    %39 = vector.shape_cast %38 : vector<1x32x16xbf16> to vector<32x16xbf16>
    %cst_20 = arith.constant dense<0.000000e+00> : vector<16x16xf32>
    %40 = tpu.matmul %36, %39, %cst_20 {dimension_numbers = #tpu.dot_dimension_numbers<[1], [0], [0], [1], [0, 0, 1, 1], [], []>} : vector<16x32xbf16>, vector<32x16xbf16>, vector<16x16xf32> -> vector<16x16xf32>
    %c0_21 = arith.constant 0 : index
    %c0_22 = arith.constant 0 : index
    %c0_23 = arith.constant 0 : index
    %41 = vector.load %arg7[%c0_21, %c0_22, %c0_23] : memref<4x1x16xf32, #tpu.memory_space<vmem>>, vector<1x1x16xf32>
    %42 = vector.shape_cast %41 : vector<1x1x16xf32> to vector<1x16xf32>
    %43 = vector.broadcast %42 : vector<1x16xf32> to vector<16x16xf32>
    %44 = arith.addf %40, %43 : vector<16x16xf32>
    %c0_24 = arith.constant 0 : index
    %c0_25 = arith.constant 0 : index
    %c0_26 = arith.constant 0 : index
    %45 = vector.load %arg8[%c0_24, %c0_25, %c0_26] : memref<4x32x16xbf16, #tpu.memory_space<vmem>>, vector<1x32x16xbf16>
    %46 = vector.shape_cast %45 : vector<1x32x16xbf16> to vector<32x16xbf16>
    %cst_27 = arith.constant dense<0.000000e+00> : vector<16x16xf32>
    %47 = tpu.matmul %36, %46, %cst_27 {dimension_numbers = #tpu.dot_dimension_numbers<[1], [0], [0], [1], [0, 0, 1, 1], [], []>} : vector<16x32xbf16>, vector<32x16xbf16>, vector<16x16xf32> -> vector<16x16xf32>
    %c0_28 = arith.constant 0 : index
    %c0_29 = arith.constant 0 : index
    %c0_30 = arith.constant 0 : index
    %48 = vector.load %arg9[%c0_28, %c0_29, %c0_30] : memref<4x1x16xf32, #tpu.memory_space<vmem>>, vector<1x1x16xf32>
    %49 = vector.shape_cast %48 : vector<1x1x16xf32> to vector<1x16xf32>
    %50 = vector.broadcast %49 : vector<1x16xf32> to vector<16x16xf32>
    %51 = arith.addf %47, %50 : vector<16x16xf32>
    %c0_31 = arith.constant 0 : index
    %c0_32 = arith.constant 0 : index
    %c0_33 = arith.constant 0 : index
    %52 = vector.load %arg10[%c0_31, %c0_32, %c0_33] : memref<4x32x16xbf16, #tpu.memory_space<vmem>>, vector<1x32x16xbf16>
    %53 = vector.shape_cast %52 : vector<1x32x16xbf16> to vector<32x16xbf16>
    %cst_34 = arith.constant dense<0.000000e+00> : vector<16x16xf32>
    %54 = tpu.matmul %36, %53, %cst_34 {dimension_numbers = #tpu.dot_dimension_numbers<[1], [0], [0], [1], [0, 0, 1, 1], [], []>} : vector<16x32xbf16>, vector<32x16xbf16>, vector<16x16xf32> -> vector<16x16xf32>
    %c0_35 = arith.constant 0 : index
    %c0_36 = arith.constant 0 : index
    %c0_37 = arith.constant 0 : index
    %55 = vector.load %arg11[%c0_35, %c0_36, %c0_37] : memref<4x1x16xf32, #tpu.memory_space<vmem>>, vector<1x1x16xf32>
    %56 = vector.shape_cast %55 : vector<1x1x16xf32> to vector<1x16xf32>
    %57 = vector.broadcast %56 : vector<1x16xf32> to vector<16x16xf32>
    %58 = arith.addf %54, %57 : vector<16x16xf32>
    %59 = arith.truncf %44 : vector<16x16xf32> to vector<16x16xbf16>
    %60 = arith.truncf %51 : vector<16x16xf32> to vector<16x16xbf16>
    %cst_38 = arith.constant dense<0.000000e+00> : vector<16x16xf32>
    %61 = tpu.matmul %59, %60, %cst_38 {dimension_numbers = #tpu.dot_dimension_numbers<[1], [1], [0], [0], [0, 0, 1, 0], [], []>} : vector<16x16xbf16>, vector<16x16xbf16>, vector<16x16xf32> -> vector<16x16xf32>
    %cst_39 = arith.constant 2.500000e-01 : f32
    %62 = vector.broadcast %cst_39 : f32 to vector<16x16xf32>
    %63 = arith.mulf %61, %62 : vector<16x16xf32>
    %64 = arith.addf %63, %35 : vector<16x16xf32>
    %cst_40 = arith.constant dense<0xFF800000> : vector<16xf32>
    %65 = vector.multi_reduction <maximumf>, %64, %cst_40 [1] : vector<16x16xf32> to vector<16xf32>
    %66 = vector.shape_cast %65 : vector<16xf32> to vector<16x1xf32>
    %67 = vector.broadcast %66 : vector<16x1xf32> to vector<16x16xf32>
    %68 = arith.subf %64, %67 : vector<16x16xf32>
    %69 = math.exp %68 : vector<16x16xf32>
    %cst_41 = arith.constant dense<0.000000e+00> : vector<16xf32>
    %70 = vector.multi_reduction <add>, %69, %cst_41 [1] : vector<16x16xf32> to vector<16xf32>
    %71 = vector.shape_cast %70 : vector<16xf32> to vector<16x1xf32>
    %72 = tpu.reciprocal %71 {approx = true} : vector<16x1xf32> -> vector<16x1xf32>
    %73 = vector.broadcast %72 : vector<16x1xf32> to vector<16x16xf32>
    %74 = arith.mulf %69, %73 : vector<16x16xf32>
    %75 = arith.truncf %74 : vector<16x16xf32> to vector<16x16xbf16>
    %76 = arith.truncf %58 : vector<16x16xf32> to vector<16x16xbf16>
    %cst_42 = arith.constant dense<0.000000e+00> : vector<16x16xf32>
    %77 = tpu.matmul %75, %76, %cst_42 {dimension_numbers = #tpu.dot_dimension_numbers<[1], [0], [0], [1], [0, 0, 1, 1], [], []>} : vector<16x16xbf16>, vector<16x16xbf16>, vector<16x16xf32> -> vector<16x16xf32>
    %78 = arith.truncf %77 : vector<16x16xf32> to vector<16x16xbf16>
    %c0_43 = arith.constant 0 : index
    %c0_44 = arith.constant 0 : index
    %c0_45 = arith.constant 0 : index
    %79 = vector.load %arg12[%c0_43, %c0_44, %c0_45] : memref<4x16x32xbf16, #tpu.memory_space<vmem>>, vector<1x16x32xbf16>
    %80 = vector.shape_cast %79 : vector<1x16x32xbf16> to vector<16x32xbf16>
    %cst_46 = arith.constant dense<0.000000e+00> : vector<16x32xf32>
    %81 = tpu.matmul %78, %80, %cst_46 {dimension_numbers = #tpu.dot_dimension_numbers<[1], [0], [0], [1], [0, 0, 1, 1], [], []>} : vector<16x16xbf16>, vector<16x32xbf16>, vector<16x32xf32> -> vector<16x32xf32>
    %82 = arith.addf %37, %81 : vector<16x32xf32>
    %c1 = arith.constant 1 : index
    %c0_47 = arith.constant 0 : index
    %c0_48 = arith.constant 0 : index
    %83 = vector.load %arg6[%c1, %c0_47, %c0_48] : memref<4x32x16xbf16, #tpu.memory_space<vmem>>, vector<1x32x16xbf16>
    %84 = vector.shape_cast %83 : vector<1x32x16xbf16> to vector<32x16xbf16>
    %cst_49 = arith.constant dense<0.000000e+00> : vector<16x16xf32>
    %85 = tpu.matmul %36, %84, %cst_49 {dimension_numbers = #tpu.dot_dimension_numbers<[1], [0], [0], [1], [0, 0, 1, 1], [], []>} : vector<16x32xbf16>, vector<32x16xbf16>, vector<16x16xf32> -> vector<16x16xf32>
    %c1_50 = arith.constant 1 : index
    %c0_51 = arith.constant 0 : index
    %c0_52 = arith.constant 0 : index
    %86 = vector.load %arg7[%c1_50, %c0_51, %c0_52] : memref<4x1x16xf32, #tpu.memory_space<vmem>>, vector<1x1x16xf32>
    %87 = vector.shape_cast %86 : vector<1x1x16xf32> to vector<1x16xf32>
    %88 = vector.broadcast %87 : vector<1x16xf32> to vector<16x16xf32>
    %89 = arith.addf %85, %88 : vector<16x16xf32>
    %c1_53 = arith.constant 1 : index
    %c0_54 = arith.constant 0 : index
    %c0_55 = arith.constant 0 : index
    %90 = vector.load %arg8[%c1_53, %c0_54, %c0_55] : memref<4x32x16xbf16, #tpu.memory_space<vmem>>, vector<1x32x16xbf16>
    %91 = vector.shape_cast %90 : vector<1x32x16xbf16> to vector<32x16xbf16>
    %cst_56 = arith.constant dense<0.000000e+00> : vector<16x16xf32>
    %92 = tpu.matmul %36, %91, %cst_56 {dimension_numbers = #tpu.dot_dimension_numbers<[1], [0], [0], [1], [0, 0, 1, 1], [], []>} : vector<16x32xbf16>, vector<32x16xbf16>, vector<16x16xf32> -> vector<16x16xf32>
    %c1_57 = arith.constant 1 : index
    %c0_58 = arith.constant 0 : index
    %c0_59 = arith.constant 0 : index
    %93 = vector.load %arg9[%c1_57, %c0_58, %c0_59] : memref<4x1x16xf32, #tpu.memory_space<vmem>>, vector<1x1x16xf32>
    %94 = vector.shape_cast %93 : vector<1x1x16xf32> to vector<1x16xf32>
    %95 = vector.broadcast %94 : vector<1x16xf32> to vector<16x16xf32>
    %96 = arith.addf %92, %95 : vector<16x16xf32>
    %c1_60 = arith.constant 1 : index
    %c0_61 = arith.constant 0 : index
    %c0_62 = arith.constant 0 : index
    %97 = vector.load %arg10[%c1_60, %c0_61, %c0_62] : memref<4x32x16xbf16, #tpu.memory_space<vmem>>, vector<1x32x16xbf16>
    %98 = vector.shape_cast %97 : vector<1x32x16xbf16> to vector<32x16xbf16>
    %cst_63 = arith.constant dense<0.000000e+00> : vector<16x16xf32>
    %99 = tpu.matmul %36, %98, %cst_63 {dimension_numbers = #tpu.dot_dimension_numbers<[1], [0], [0], [1], [0, 0, 1, 1], [], []>} : vector<16x32xbf16>, vector<32x16xbf16>, vector<16x16xf32> -> vector<16x16xf32>
    %c1_64 = arith.constant 1 : index
    %c0_65 = arith.constant 0 : index
    %c0_66 = arith.constant 0 : index
    %100 = vector.load %arg11[%c1_64, %c0_65, %c0_66] : memref<4x1x16xf32, #tpu.memory_space<vmem>>, vector<1x1x16xf32>
    %101 = vector.shape_cast %100 : vector<1x1x16xf32> to vector<1x16xf32>
    %102 = vector.broadcast %101 : vector<1x16xf32> to vector<16x16xf32>
    %103 = arith.addf %99, %102 : vector<16x16xf32>
    %104 = arith.truncf %89 : vector<16x16xf32> to vector<16x16xbf16>
    %105 = arith.truncf %96 : vector<16x16xf32> to vector<16x16xbf16>
    %cst_67 = arith.constant dense<0.000000e+00> : vector<16x16xf32>
    %106 = tpu.matmul %104, %105, %cst_67 {dimension_numbers = #tpu.dot_dimension_numbers<[1], [1], [0], [0], [0, 0, 1, 0], [], []>} : vector<16x16xbf16>, vector<16x16xbf16>, vector<16x16xf32> -> vector<16x16xf32>
    %cst_68 = arith.constant 2.500000e-01 : f32
    %107 = vector.broadcast %cst_68 : f32 to vector<16x16xf32>
    %108 = arith.mulf %106, %107 : vector<16x16xf32>
    %109 = arith.addf %108, %35 : vector<16x16xf32>
    %cst_69 = arith.constant dense<0xFF800000> : vector<16xf32>
    %110 = vector.multi_reduction <maximumf>, %109, %cst_69 [1] : vector<16x16xf32> to vector<16xf32>
    %111 = vector.shape_cast %110 : vector<16xf32> to vector<16x1xf32>
    %112 = vector.broadcast %111 : vector<16x1xf32> to vector<16x16xf32>
    %113 = arith.subf %109, %112 : vector<16x16xf32>
    %114 = math.exp %113 : vector<16x16xf32>
    %cst_70 = arith.constant dense<0.000000e+00> : vector<16xf32>
    %115 = vector.multi_reduction <add>, %114, %cst_70 [1] : vector<16x16xf32> to vector<16xf32>
    %116 = vector.shape_cast %115 : vector<16xf32> to vector<16x1xf32>
    %117 = tpu.reciprocal %116 {approx = true} : vector<16x1xf32> -> vector<16x1xf32>
    %118 = vector.broadcast %117 : vector<16x1xf32> to vector<16x16xf32>
    %119 = arith.mulf %114, %118 : vector<16x16xf32>
    %120 = arith.truncf %119 : vector<16x16xf32> to vector<16x16xbf16>
    %121 = arith.truncf %103 : vector<16x16xf32> to vector<16x16xbf16>
    %cst_71 = arith.constant dense<0.000000e+00> : vector<16x16xf32>
    %122 = tpu.matmul %120, %121, %cst_71 {dimension_numbers = #tpu.dot_dimension_numbers<[1], [0], [0], [1], [0, 0, 1, 1], [], []>} : vector<16x16xbf16>, vector<16x16xbf16>, vector<16x16xf32> -> vector<16x16xf32>
    %123 = arith.truncf %122 : vector<16x16xf32> to vector<16x16xbf16>
    %c1_72 = arith.constant 1 : index
    %c0_73 = arith.constant 0 : index
    %c0_74 = arith.constant 0 : index
    %124 = vector.load %arg12[%c1_72, %c0_73, %c0_74] : memref<4x16x32xbf16, #tpu.memory_space<vmem>>, vector<1x16x32xbf16>
    %125 = vector.shape_cast %124 : vector<1x16x32xbf16> to vector<16x32xbf16>
    %cst_75 = arith.constant dense<0.000000e+00> : vector<16x32xf32>
    %126 = tpu.matmul %123, %125, %cst_75 {dimension_numbers = #tpu.dot_dimension_numbers<[1], [0], [0], [1], [0, 0, 1, 1], [], []>} : vector<16x16xbf16>, vector<16x32xbf16>, vector<16x32xf32> -> vector<16x32xf32>
    %127 = arith.addf %82, %126 : vector<16x32xf32>
    %c0_76 = arith.constant 0 : index
    %c0_77 = arith.constant 0 : index
    %c0_78 = arith.constant 0 : index
    %128 = vector.load %arg13[%c0_76, %c0_77, %c0_78] : memref<2x1x32xf32, #tpu.memory_space<vmem>>, vector<1x1x32xf32>
    %129 = vector.shape_cast %128 : vector<1x1x32xf32> to vector<1x32xf32>
    %130 = vector.broadcast %129 : vector<1x32xf32> to vector<16x32xf32>
    %131 = arith.addf %127, %130 : vector<16x32xf32>
    %132 = arith.addf %34, %131 : vector<16x32xf32>
    %c0_79 = arith.constant 0 : index
    %c0_80 = arith.constant 0 : index
    %c0_81 = arith.constant 0 : index
    %133 = vector.load %arg14[%c0_79, %c0_80, %c0_81] : memref<2x1x32xf32, #tpu.memory_space<vmem>>, vector<1x1x32xf32>
    %134 = vector.shape_cast %133 : vector<1x1x32xf32> to vector<1x32xf32>
    %c0_82 = arith.constant 0 : index
    %c0_83 = arith.constant 0 : index
    %c0_84 = arith.constant 0 : index
    %135 = vector.load %arg15[%c0_82, %c0_83, %c0_84] : memref<2x1x32xf32, #tpu.memory_space<vmem>>, vector<1x1x32xf32>
    %136 = vector.shape_cast %135 : vector<1x1x32xf32> to vector<1x32xf32>
    %cst_85 = arith.constant dense<0.000000e+00> : vector<16xf32>
    %137 = vector.multi_reduction <add>, %132, %cst_85 [1] : vector<16x32xf32> to vector<16xf32>
    %138 = vector.shape_cast %137 : vector<16xf32> to vector<16x1xf32>
    %cst_86 = arith.constant 3.200000e+01 : f32
    %139 = vector.broadcast %cst_86 : f32 to vector<16x1xf32>
    %140 = arith.divf %138, %139 : vector<16x1xf32>
    %141 = vector.broadcast %140 : vector<16x1xf32> to vector<16x32xf32>
    %142 = arith.subf %132, %141 : vector<16x32xf32>
    %143 = arith.mulf %142, %142 : vector<16x32xf32>
    %cst_87 = arith.constant dense<0.000000e+00> : vector<16xf32>
    %144 = vector.multi_reduction <add>, %143, %cst_87 [1] : vector<16x32xf32> to vector<16xf32>
    %145 = vector.shape_cast %144 : vector<16xf32> to vector<16x1xf32>
    %cst_88 = arith.constant 3.200000e+01 : f32
    %146 = vector.broadcast %cst_88 : f32 to vector<16x1xf32>
    %147 = arith.divf %145, %146 : vector<16x1xf32>
    %cst_89 = arith.constant 9.99999974E-6 : f32
    %148 = vector.broadcast %cst_89 : f32 to vector<16x1xf32>
    %149 = arith.addf %147, %148 : vector<16x1xf32>
    %150 = math.rsqrt %149 : vector<16x1xf32>
    %151 = vector.broadcast %140 : vector<16x1xf32> to vector<16x32xf32>
    %152 = arith.subf %132, %151 : vector<16x32xf32>
    %153 = vector.broadcast %150 : vector<16x1xf32> to vector<16x32xf32>
    %154 = arith.mulf %152, %153 : vector<16x32xf32>
    %155 = vector.broadcast %134 : vector<1x32xf32> to vector<16x32xf32>
    %156 = arith.mulf %154, %155 : vector<16x32xf32>
    %157 = vector.broadcast %136 : vector<1x32xf32> to vector<16x32xf32>
    %158 = arith.addf %156, %157 : vector<16x32xf32>
    %159 = arith.truncf %158 : vector<16x32xf32> to vector<16x32xbf16>
    %c0_90 = arith.constant 0 : index
    %c0_91 = arith.constant 0 : index
    %c0_92 = arith.constant 0 : index
    %160 = vector.load %arg16[%c0_90, %c0_91, %c0_92] : memref<2x32x64xbf16, #tpu.memory_space<vmem>>, vector<1x32x64xbf16>
    %161 = vector.shape_cast %160 : vector<1x32x64xbf16> to vector<32x64xbf16>
    %cst_93 = arith.constant dense<0.000000e+00> : vector<16x64xf32>
    %162 = tpu.matmul %159, %161, %cst_93 {dimension_numbers = #tpu.dot_dimension_numbers<[1], [0], [0], [1], [0, 0, 1, 1], [], []>} : vector<16x32xbf16>, vector<32x64xbf16>, vector<16x64xf32> -> vector<16x64xf32>
    %c0_94 = arith.constant 0 : index
    %c0_95 = arith.constant 0 : index
    %c0_96 = arith.constant 0 : index
    %163 = vector.load %arg17[%c0_94, %c0_95, %c0_96] : memref<2x1x64xf32, #tpu.memory_space<vmem>>, vector<1x1x64xf32>
    %164 = vector.shape_cast %163 : vector<1x1x64xf32> to vector<1x64xf32>
    %165 = vector.broadcast %164 : vector<1x64xf32> to vector<16x64xf32>
    %166 = arith.addf %162, %165 : vector<16x64xf32>
    %167 = arith.mulf %166, %166 : vector<16x64xf32>
    %168 = arith.mulf %166, %167 : vector<16x64xf32>
    %cst_97 = arith.constant 4.471500e-02 : f32
    %169 = vector.broadcast %cst_97 : f32 to vector<16x64xf32>
    %170 = arith.mulf %169, %168 : vector<16x64xf32>
    %171 = arith.addf %166, %170 : vector<16x64xf32>
    %cst_98 = arith.constant 0.797884583 : f32
    %172 = vector.broadcast %cst_98 : f32 to vector<16x64xf32>
    %173 = arith.mulf %172, %171 : vector<16x64xf32>
    %174 = math.tanh %173 : vector<16x64xf32>
    %cst_99 = arith.constant 1.000000e+00 : f32
    %175 = vector.broadcast %cst_99 : f32 to vector<16x64xf32>
    %176 = arith.addf %175, %174 : vector<16x64xf32>
    %cst_100 = arith.constant 5.000000e-01 : f32
    %177 = vector.broadcast %cst_100 : f32 to vector<16x64xf32>
    %178 = arith.mulf %177, %176 : vector<16x64xf32>
    %179 = arith.mulf %166, %178 : vector<16x64xf32>
    %180 = arith.truncf %179 : vector<16x64xf32> to vector<16x64xbf16>
    %c0_101 = arith.constant 0 : index
    %c0_102 = arith.constant 0 : index
    %c0_103 = arith.constant 0 : index
    %181 = vector.load %arg18[%c0_101, %c0_102, %c0_103] : memref<2x64x32xbf16, #tpu.memory_space<vmem>>, vector<1x64x32xbf16>
    %182 = vector.shape_cast %181 : vector<1x64x32xbf16> to vector<64x32xbf16>
    %cst_104 = arith.constant dense<0.000000e+00> : vector<16x32xf32>
    %183 = tpu.matmul %180, %182, %cst_104 {dimension_numbers = #tpu.dot_dimension_numbers<[1], [0], [0], [1], [0, 0, 1, 1], [], []>} : vector<16x64xbf16>, vector<64x32xbf16>, vector<16x32xf32> -> vector<16x32xf32>
    %c0_105 = arith.constant 0 : index
    %c0_106 = arith.constant 0 : index
    %c0_107 = arith.constant 0 : index
    %184 = vector.load %arg19[%c0_105, %c0_106, %c0_107] : memref<2x1x32xf32, #tpu.memory_space<vmem>>, vector<1x1x32xf32>
    %185 = vector.shape_cast %184 : vector<1x1x32xf32> to vector<1x32xf32>
    %186 = vector.broadcast %185 : vector<1x32xf32> to vector<16x32xf32>
    %187 = arith.addf %183, %186 : vector<16x32xf32>
    %188 = arith.addf %158, %187 : vector<16x32xf32>
    %c0_108 = arith.constant 0 : index
    %c0_109 = arith.constant 0 : index
    %c0_110 = arith.constant 0 : index
    %189 = vector.load %arg20[%c0_108, %c0_109, %c0_110] : memref<2x1x32xf32, #tpu.memory_space<vmem>>, vector<1x1x32xf32>
    %190 = vector.shape_cast %189 : vector<1x1x32xf32> to vector<1x32xf32>
    %c0_111 = arith.constant 0 : index
    %c0_112 = arith.constant 0 : index
    %c0_113 = arith.constant 0 : index
    %191 = vector.load %arg21[%c0_111, %c0_112, %c0_113] : memref<2x1x32xf32, #tpu.memory_space<vmem>>, vector<1x1x32xf32>
    %192 = vector.shape_cast %191 : vector<1x1x32xf32> to vector<1x32xf32>
    %cst_114 = arith.constant dense<0.000000e+00> : vector<16xf32>
    %193 = vector.multi_reduction <add>, %188, %cst_114 [1] : vector<16x32xf32> to vector<16xf32>
    %194 = vector.shape_cast %193 : vector<16xf32> to vector<16x1xf32>
    %cst_115 = arith.constant 3.200000e+01 : f32
    %195 = vector.broadcast %cst_115 : f32 to vector<16x1xf32>
    %196 = arith.divf %194, %195 : vector<16x1xf32>
    %197 = vector.broadcast %196 : vector<16x1xf32> to vector<16x32xf32>
    %198 = arith.subf %188, %197 : vector<16x32xf32>
    %199 = arith.mulf %198, %198 : vector<16x32xf32>
    %cst_116 = arith.constant dense<0.000000e+00> : vector<16xf32>
    %200 = vector.multi_reduction <add>, %199, %cst_116 [1] : vector<16x32xf32> to vector<16xf32>
    %201 = vector.shape_cast %200 : vector<16xf32> to vector<16x1xf32>
    %cst_117 = arith.constant 3.200000e+01 : f32
    %202 = vector.broadcast %cst_117 : f32 to vector<16x1xf32>
    %203 = arith.divf %201, %202 : vector<16x1xf32>
    %cst_118 = arith.constant 9.99999974E-6 : f32
    %204 = vector.broadcast %cst_118 : f32 to vector<16x1xf32>
    %205 = arith.addf %203, %204 : vector<16x1xf32>
    %206 = math.rsqrt %205 : vector<16x1xf32>
    %207 = vector.broadcast %196 : vector<16x1xf32> to vector<16x32xf32>
    %208 = arith.subf %188, %207 : vector<16x32xf32>
    %209 = vector.broadcast %206 : vector<16x1xf32> to vector<16x32xf32>
    %210 = arith.mulf %208, %209 : vector<16x32xf32>
    %211 = vector.broadcast %190 : vector<1x32xf32> to vector<16x32xf32>
    %212 = arith.mulf %210, %211 : vector<16x32xf32>
    %213 = vector.broadcast %192 : vector<1x32xf32> to vector<16x32xf32>
    %214 = arith.addf %212, %213 : vector<16x32xf32>
    %215 = arith.truncf %214 : vector<16x32xf32> to vector<16x32xbf16>
    %cst_119 = arith.constant 0.000000e+00 : f32
    %216 = vector.broadcast %cst_119 : f32 to vector<16x32xf32>
    %c2 = arith.constant 2 : index
    %c0_120 = arith.constant 0 : index
    %c0_121 = arith.constant 0 : index
    %217 = vector.load %arg6[%c2, %c0_120, %c0_121] : memref<4x32x16xbf16, #tpu.memory_space<vmem>>, vector<1x32x16xbf16>
    %218 = vector.shape_cast %217 : vector<1x32x16xbf16> to vector<32x16xbf16>
    %cst_122 = arith.constant dense<0.000000e+00> : vector<16x16xf32>
    %219 = tpu.matmul %215, %218, %cst_122 {dimension_numbers = #tpu.dot_dimension_numbers<[1], [0], [0], [1], [0, 0, 1, 1], [], []>} : vector<16x32xbf16>, vector<32x16xbf16>, vector<16x16xf32> -> vector<16x16xf32>
    %c2_123 = arith.constant 2 : index
    %c0_124 = arith.constant 0 : index
    %c0_125 = arith.constant 0 : index
    %220 = vector.load %arg7[%c2_123, %c0_124, %c0_125] : memref<4x1x16xf32, #tpu.memory_space<vmem>>, vector<1x1x16xf32>
    %221 = vector.shape_cast %220 : vector<1x1x16xf32> to vector<1x16xf32>
    %222 = vector.broadcast %221 : vector<1x16xf32> to vector<16x16xf32>
    %223 = arith.addf %219, %222 : vector<16x16xf32>
    %c2_126 = arith.constant 2 : index
    %c0_127 = arith.constant 0 : index
    %c0_128 = arith.constant 0 : index
    %224 = vector.load %arg8[%c2_126, %c0_127, %c0_128] : memref<4x32x16xbf16, #tpu.memory_space<vmem>>, vector<1x32x16xbf16>
    %225 = vector.shape_cast %224 : vector<1x32x16xbf16> to vector<32x16xbf16>
    %cst_129 = arith.constant dense<0.000000e+00> : vector<16x16xf32>
    %226 = tpu.matmul %215, %225, %cst_129 {dimension_numbers = #tpu.dot_dimension_numbers<[1], [0], [0], [1], [0, 0, 1, 1], [], []>} : vector<16x32xbf16>, vector<32x16xbf16>, vector<16x16xf32> -> vector<16x16xf32>
    %c2_130 = arith.constant 2 : index
    %c0_131 = arith.constant 0 : index
    %c0_132 = arith.constant 0 : index
    %227 = vector.load %arg9[%c2_130, %c0_131, %c0_132] : memref<4x1x16xf32, #tpu.memory_space<vmem>>, vector<1x1x16xf32>
    %228 = vector.shape_cast %227 : vector<1x1x16xf32> to vector<1x16xf32>
    %229 = vector.broadcast %228 : vector<1x16xf32> to vector<16x16xf32>
    %230 = arith.addf %226, %229 : vector<16x16xf32>
    %c2_133 = arith.constant 2 : index
    %c0_134 = arith.constant 0 : index
    %c0_135 = arith.constant 0 : index
    %231 = vector.load %arg10[%c2_133, %c0_134, %c0_135] : memref<4x32x16xbf16, #tpu.memory_space<vmem>>, vector<1x32x16xbf16>
    %232 = vector.shape_cast %231 : vector<1x32x16xbf16> to vector<32x16xbf16>
    %cst_136 = arith.constant dense<0.000000e+00> : vector<16x16xf32>
    %233 = tpu.matmul %215, %232, %cst_136 {dimension_numbers = #tpu.dot_dimension_numbers<[1], [0], [0], [1], [0, 0, 1, 1], [], []>} : vector<16x32xbf16>, vector<32x16xbf16>, vector<16x16xf32> -> vector<16x16xf32>
    %c2_137 = arith.constant 2 : index
    %c0_138 = arith.constant 0 : index
    %c0_139 = arith.constant 0 : index
    %234 = vector.load %arg11[%c2_137, %c0_138, %c0_139] : memref<4x1x16xf32, #tpu.memory_space<vmem>>, vector<1x1x16xf32>
    %235 = vector.shape_cast %234 : vector<1x1x16xf32> to vector<1x16xf32>
    %236 = vector.broadcast %235 : vector<1x16xf32> to vector<16x16xf32>
    %237 = arith.addf %233, %236 : vector<16x16xf32>
    %238 = arith.truncf %223 : vector<16x16xf32> to vector<16x16xbf16>
    %239 = arith.truncf %230 : vector<16x16xf32> to vector<16x16xbf16>
    %cst_140 = arith.constant dense<0.000000e+00> : vector<16x16xf32>
    %240 = tpu.matmul %238, %239, %cst_140 {dimension_numbers = #tpu.dot_dimension_numbers<[1], [1], [0], [0], [0, 0, 1, 0], [], []>} : vector<16x16xbf16>, vector<16x16xbf16>, vector<16x16xf32> -> vector<16x16xf32>
    %cst_141 = arith.constant 2.500000e-01 : f32
    %241 = vector.broadcast %cst_141 : f32 to vector<16x16xf32>
    %242 = arith.mulf %240, %241 : vector<16x16xf32>
    %243 = arith.addf %242, %35 : vector<16x16xf32>
    %cst_142 = arith.constant dense<0xFF800000> : vector<16xf32>
    %244 = vector.multi_reduction <maximumf>, %243, %cst_142 [1] : vector<16x16xf32> to vector<16xf32>
    %245 = vector.shape_cast %244 : vector<16xf32> to vector<16x1xf32>
    %246 = vector.broadcast %245 : vector<16x1xf32> to vector<16x16xf32>
    %247 = arith.subf %243, %246 : vector<16x16xf32>
    %248 = math.exp %247 : vector<16x16xf32>
    %cst_143 = arith.constant dense<0.000000e+00> : vector<16xf32>
    %249 = vector.multi_reduction <add>, %248, %cst_143 [1] : vector<16x16xf32> to vector<16xf32>
    %250 = vector.shape_cast %249 : vector<16xf32> to vector<16x1xf32>
    %251 = tpu.reciprocal %250 {approx = true} : vector<16x1xf32> -> vector<16x1xf32>
    %252 = vector.broadcast %251 : vector<16x1xf32> to vector<16x16xf32>
    %253 = arith.mulf %248, %252 : vector<16x16xf32>
    %254 = arith.truncf %253 : vector<16x16xf32> to vector<16x16xbf16>
    %255 = arith.truncf %237 : vector<16x16xf32> to vector<16x16xbf16>
    %cst_144 = arith.constant dense<0.000000e+00> : vector<16x16xf32>
    %256 = tpu.matmul %254, %255, %cst_144 {dimension_numbers = #tpu.dot_dimension_numbers<[1], [0], [0], [1], [0, 0, 1, 1], [], []>} : vector<16x16xbf16>, vector<16x16xbf16>, vector<16x16xf32> -> vector<16x16xf32>
    %257 = arith.truncf %256 : vector<16x16xf32> to vector<16x16xbf16>
    %c2_145 = arith.constant 2 : index
    %c0_146 = arith.constant 0 : index
    %c0_147 = arith.constant 0 : index
    %258 = vector.load %arg12[%c2_145, %c0_146, %c0_147] : memref<4x16x32xbf16, #tpu.memory_space<vmem>>, vector<1x16x32xbf16>
    %259 = vector.shape_cast %258 : vector<1x16x32xbf16> to vector<16x32xbf16>
    %cst_148 = arith.constant dense<0.000000e+00> : vector<16x32xf32>
    %260 = tpu.matmul %257, %259, %cst_148 {dimension_numbers = #tpu.dot_dimension_numbers<[1], [0], [0], [1], [0, 0, 1, 1], [], []>} : vector<16x16xbf16>, vector<16x32xbf16>, vector<16x32xf32> -> vector<16x32xf32>
    %261 = arith.addf %216, %260 : vector<16x32xf32>
    %c3 = arith.constant 3 : index
    %c0_149 = arith.constant 0 : index
    %c0_150 = arith.constant 0 : index
    %262 = vector.load %arg6[%c3, %c0_149, %c0_150] : memref<4x32x16xbf16, #tpu.memory_space<vmem>>, vector<1x32x16xbf16>
    %263 = vector.shape_cast %262 : vector<1x32x16xbf16> to vector<32x16xbf16>
    %cst_151 = arith.constant dense<0.000000e+00> : vector<16x16xf32>
    %264 = tpu.matmul %215, %263, %cst_151 {dimension_numbers = #tpu.dot_dimension_numbers<[1], [0], [0], [1], [0, 0, 1, 1], [], []>} : vector<16x32xbf16>, vector<32x16xbf16>, vector<16x16xf32> -> vector<16x16xf32>
    %c3_152 = arith.constant 3 : index
    %c0_153 = arith.constant 0 : index
    %c0_154 = arith.constant 0 : index
    %265 = vector.load %arg7[%c3_152, %c0_153, %c0_154] : memref<4x1x16xf32, #tpu.memory_space<vmem>>, vector<1x1x16xf32>
    %266 = vector.shape_cast %265 : vector<1x1x16xf32> to vector<1x16xf32>
    %267 = vector.broadcast %266 : vector<1x16xf32> to vector<16x16xf32>
    %268 = arith.addf %264, %267 : vector<16x16xf32>
    %c3_155 = arith.constant 3 : index
    %c0_156 = arith.constant 0 : index
    %c0_157 = arith.constant 0 : index
    %269 = vector.load %arg8[%c3_155, %c0_156, %c0_157] : memref<4x32x16xbf16, #tpu.memory_space<vmem>>, vector<1x32x16xbf16>
    %270 = vector.shape_cast %269 : vector<1x32x16xbf16> to vector<32x16xbf16>
    %cst_158 = arith.constant dense<0.000000e+00> : vector<16x16xf32>
    %271 = tpu.matmul %215, %270, %cst_158 {dimension_numbers = #tpu.dot_dimension_numbers<[1], [0], [0], [1], [0, 0, 1, 1], [], []>} : vector<16x32xbf16>, vector<32x16xbf16>, vector<16x16xf32> -> vector<16x16xf32>
    %c3_159 = arith.constant 3 : index
    %c0_160 = arith.constant 0 : index
    %c0_161 = arith.constant 0 : index
    %272 = vector.load %arg9[%c3_159, %c0_160, %c0_161] : memref<4x1x16xf32, #tpu.memory_space<vmem>>, vector<1x1x16xf32>
    %273 = vector.shape_cast %272 : vector<1x1x16xf32> to vector<1x16xf32>
    %274 = vector.broadcast %273 : vector<1x16xf32> to vector<16x16xf32>
    %275 = arith.addf %271, %274 : vector<16x16xf32>
    %c3_162 = arith.constant 3 : index
    %c0_163 = arith.constant 0 : index
    %c0_164 = arith.constant 0 : index
    %276 = vector.load %arg10[%c3_162, %c0_163, %c0_164] : memref<4x32x16xbf16, #tpu.memory_space<vmem>>, vector<1x32x16xbf16>
    %277 = vector.shape_cast %276 : vector<1x32x16xbf16> to vector<32x16xbf16>
    %cst_165 = arith.constant dense<0.000000e+00> : vector<16x16xf32>
    %278 = tpu.matmul %215, %277, %cst_165 {dimension_numbers = #tpu.dot_dimension_numbers<[1], [0], [0], [1], [0, 0, 1, 1], [], []>} : vector<16x32xbf16>, vector<32x16xbf16>, vector<16x16xf32> -> vector<16x16xf32>
    %c3_166 = arith.constant 3 : index
    %c0_167 = arith.constant 0 : index
    %c0_168 = arith.constant 0 : index
    %279 = vector.load %arg11[%c3_166, %c0_167, %c0_168] : memref<4x1x16xf32, #tpu.memory_space<vmem>>, vector<1x1x16xf32>
    %280 = vector.shape_cast %279 : vector<1x1x16xf32> to vector<1x16xf32>
    %281 = vector.broadcast %280 : vector<1x16xf32> to vector<16x16xf32>
    %282 = arith.addf %278, %281 : vector<16x16xf32>
    %283 = arith.truncf %268 : vector<16x16xf32> to vector<16x16xbf16>
    %284 = arith.truncf %275 : vector<16x16xf32> to vector<16x16xbf16>
    %cst_169 = arith.constant dense<0.000000e+00> : vector<16x16xf32>
    %285 = tpu.matmul %283, %284, %cst_169 {dimension_numbers = #tpu.dot_dimension_numbers<[1], [1], [0], [0], [0, 0, 1, 0], [], []>} : vector<16x16xbf16>, vector<16x16xbf16>, vector<16x16xf32> -> vector<16x16xf32>
    %cst_170 = arith.constant 2.500000e-01 : f32
    %286 = vector.broadcast %cst_170 : f32 to vector<16x16xf32>
    %287 = arith.mulf %285, %286 : vector<16x16xf32>
    %288 = arith.addf %287, %35 : vector<16x16xf32>
    %cst_171 = arith.constant dense<0xFF800000> : vector<16xf32>
    %289 = vector.multi_reduction <maximumf>, %288, %cst_171 [1] : vector<16x16xf32> to vector<16xf32>
    %290 = vector.shape_cast %289 : vector<16xf32> to vector<16x1xf32>
    %291 = vector.broadcast %290 : vector<16x1xf32> to vector<16x16xf32>
    %292 = arith.subf %288, %291 : vector<16x16xf32>
    %293 = math.exp %292 : vector<16x16xf32>
    %cst_172 = arith.constant dense<0.000000e+00> : vector<16xf32>
    %294 = vector.multi_reduction <add>, %293, %cst_172 [1] : vector<16x16xf32> to vector<16xf32>
    %295 = vector.shape_cast %294 : vector<16xf32> to vector<16x1xf32>
    %296 = tpu.reciprocal %295 {approx = true} : vector<16x1xf32> -> vector<16x1xf32>
    %297 = vector.broadcast %296 : vector<16x1xf32> to vector<16x16xf32>
    %298 = arith.mulf %293, %297 : vector<16x16xf32>
    %299 = arith.truncf %298 : vector<16x16xf32> to vector<16x16xbf16>
    %300 = arith.truncf %282 : vector<16x16xf32> to vector<16x16xbf16>
    %cst_173 = arith.constant dense<0.000000e+00> : vector<16x16xf32>
    %301 = tpu.matmul %299, %300, %cst_173 {dimension_numbers = #tpu.dot_dimension_numbers<[1], [0], [0], [1], [0, 0, 1, 1], [], []>} : vector<16x16xbf16>, vector<16x16xbf16>, vector<16x16xf32> -> vector<16x16xf32>
    %302 = arith.truncf %301 : vector<16x16xf32> to vector<16x16xbf16>
    %c3_174 = arith.constant 3 : index
    %c0_175 = arith.constant 0 : index
    %c0_176 = arith.constant 0 : index
    %303 = vector.load %arg12[%c3_174, %c0_175, %c0_176] : memref<4x16x32xbf16, #tpu.memory_space<vmem>>, vector<1x16x32xbf16>
    %304 = vector.shape_cast %303 : vector<1x16x32xbf16> to vector<16x32xbf16>
    %cst_177 = arith.constant dense<0.000000e+00> : vector<16x32xf32>
    %305 = tpu.matmul %302, %304, %cst_177 {dimension_numbers = #tpu.dot_dimension_numbers<[1], [0], [0], [1], [0, 0, 1, 1], [], []>} : vector<16x16xbf16>, vector<16x32xbf16>, vector<16x32xf32> -> vector<16x32xf32>
    %306 = arith.addf %261, %305 : vector<16x32xf32>
    %c1_178 = arith.constant 1 : index
    %c0_179 = arith.constant 0 : index
    %c0_180 = arith.constant 0 : index
    %307 = vector.load %arg13[%c1_178, %c0_179, %c0_180] : memref<2x1x32xf32, #tpu.memory_space<vmem>>, vector<1x1x32xf32>
    %308 = vector.shape_cast %307 : vector<1x1x32xf32> to vector<1x32xf32>
    %309 = vector.broadcast %308 : vector<1x32xf32> to vector<16x32xf32>
    %310 = arith.addf %306, %309 : vector<16x32xf32>
    %311 = arith.addf %214, %310 : vector<16x32xf32>
    %c1_181 = arith.constant 1 : index
    %c0_182 = arith.constant 0 : index
    %c0_183 = arith.constant 0 : index
    %312 = vector.load %arg14[%c1_181, %c0_182, %c0_183] : memref<2x1x32xf32, #tpu.memory_space<vmem>>, vector<1x1x32xf32>
    %313 = vector.shape_cast %312 : vector<1x1x32xf32> to vector<1x32xf32>
    %c1_184 = arith.constant 1 : index
    %c0_185 = arith.constant 0 : index
    %c0_186 = arith.constant 0 : index
    %314 = vector.load %arg15[%c1_184, %c0_185, %c0_186] : memref<2x1x32xf32, #tpu.memory_space<vmem>>, vector<1x1x32xf32>
    %315 = vector.shape_cast %314 : vector<1x1x32xf32> to vector<1x32xf32>
    %cst_187 = arith.constant dense<0.000000e+00> : vector<16xf32>
    %316 = vector.multi_reduction <add>, %311, %cst_187 [1] : vector<16x32xf32> to vector<16xf32>
    %317 = vector.shape_cast %316 : vector<16xf32> to vector<16x1xf32>
    %cst_188 = arith.constant 3.200000e+01 : f32
    %318 = vector.broadcast %cst_188 : f32 to vector<16x1xf32>
    %319 = arith.divf %317, %318 : vector<16x1xf32>
    %320 = vector.broadcast %319 : vector<16x1xf32> to vector<16x32xf32>
    %321 = arith.subf %311, %320 : vector<16x32xf32>
    %322 = arith.mulf %321, %321 : vector<16x32xf32>
    %cst_189 = arith.constant dense<0.000000e+00> : vector<16xf32>
    %323 = vector.multi_reduction <add>, %322, %cst_189 [1] : vector<16x32xf32> to vector<16xf32>
    %324 = vector.shape_cast %323 : vector<16xf32> to vector<16x1xf32>
    %cst_190 = arith.constant 3.200000e+01 : f32
    %325 = vector.broadcast %cst_190 : f32 to vector<16x1xf32>
    %326 = arith.divf %324, %325 : vector<16x1xf32>
    %cst_191 = arith.constant 9.99999974E-6 : f32
    %327 = vector.broadcast %cst_191 : f32 to vector<16x1xf32>
    %328 = arith.addf %326, %327 : vector<16x1xf32>
    %329 = math.rsqrt %328 : vector<16x1xf32>
    %330 = vector.broadcast %319 : vector<16x1xf32> to vector<16x32xf32>
    %331 = arith.subf %311, %330 : vector<16x32xf32>
    %332 = vector.broadcast %329 : vector<16x1xf32> to vector<16x32xf32>
    %333 = arith.mulf %331, %332 : vector<16x32xf32>
    %334 = vector.broadcast %313 : vector<1x32xf32> to vector<16x32xf32>
    %335 = arith.mulf %333, %334 : vector<16x32xf32>
    %336 = vector.broadcast %315 : vector<1x32xf32> to vector<16x32xf32>
    %337 = arith.addf %335, %336 : vector<16x32xf32>
    %338 = arith.truncf %337 : vector<16x32xf32> to vector<16x32xbf16>
    %c1_192 = arith.constant 1 : index
    %c0_193 = arith.constant 0 : index
    %c0_194 = arith.constant 0 : index
    %339 = vector.load %arg16[%c1_192, %c0_193, %c0_194] : memref<2x32x64xbf16, #tpu.memory_space<vmem>>, vector<1x32x64xbf16>
    %340 = vector.shape_cast %339 : vector<1x32x64xbf16> to vector<32x64xbf16>
    %cst_195 = arith.constant dense<0.000000e+00> : vector<16x64xf32>
    %341 = tpu.matmul %338, %340, %cst_195 {dimension_numbers = #tpu.dot_dimension_numbers<[1], [0], [0], [1], [0, 0, 1, 1], [], []>} : vector<16x32xbf16>, vector<32x64xbf16>, vector<16x64xf32> -> vector<16x64xf32>
    %c1_196 = arith.constant 1 : index
    %c0_197 = arith.constant 0 : index
    %c0_198 = arith.constant 0 : index
    %342 = vector.load %arg17[%c1_196, %c0_197, %c0_198] : memref<2x1x64xf32, #tpu.memory_space<vmem>>, vector<1x1x64xf32>
    %343 = vector.shape_cast %342 : vector<1x1x64xf32> to vector<1x64xf32>
    %344 = vector.broadcast %343 : vector<1x64xf32> to vector<16x64xf32>
    %345 = arith.addf %341, %344 : vector<16x64xf32>
    %346 = arith.mulf %345, %345 : vector<16x64xf32>
    %347 = arith.mulf %345, %346 : vector<16x64xf32>
    %cst_199 = arith.constant 4.471500e-02 : f32
    %348 = vector.broadcast %cst_199 : f32 to vector<16x64xf32>
    %349 = arith.mulf %348, %347 : vector<16x64xf32>
    %350 = arith.addf %345, %349 : vector<16x64xf32>
    %cst_200 = arith.constant 0.797884583 : f32
    %351 = vector.broadcast %cst_200 : f32 to vector<16x64xf32>
    %352 = arith.mulf %351, %350 : vector<16x64xf32>
    %353 = math.tanh %352 : vector<16x64xf32>
    %cst_201 = arith.constant 1.000000e+00 : f32
    %354 = vector.broadcast %cst_201 : f32 to vector<16x64xf32>
    %355 = arith.addf %354, %353 : vector<16x64xf32>
    %cst_202 = arith.constant 5.000000e-01 : f32
    %356 = vector.broadcast %cst_202 : f32 to vector<16x64xf32>
    %357 = arith.mulf %356, %355 : vector<16x64xf32>
    %358 = arith.mulf %345, %357 : vector<16x64xf32>
    %359 = arith.truncf %358 : vector<16x64xf32> to vector<16x64xbf16>
    %c1_203 = arith.constant 1 : index
    %c0_204 = arith.constant 0 : index
    %c0_205 = arith.constant 0 : index
    %360 = vector.load %arg18[%c1_203, %c0_204, %c0_205] : memref<2x64x32xbf16, #tpu.memory_space<vmem>>, vector<1x64x32xbf16>
    %361 = vector.shape_cast %360 : vector<1x64x32xbf16> to vector<64x32xbf16>
    %cst_206 = arith.constant dense<0.000000e+00> : vector<16x32xf32>
    %362 = tpu.matmul %359, %361, %cst_206 {dimension_numbers = #tpu.dot_dimension_numbers<[1], [0], [0], [1], [0, 0, 1, 1], [], []>} : vector<16x64xbf16>, vector<64x32xbf16>, vector<16x32xf32> -> vector<16x32xf32>
    %c1_207 = arith.constant 1 : index
    %c0_208 = arith.constant 0 : index
    %c0_209 = arith.constant 0 : index
    %363 = vector.load %arg19[%c1_207, %c0_208, %c0_209] : memref<2x1x32xf32, #tpu.memory_space<vmem>>, vector<1x1x32xf32>
    %364 = vector.shape_cast %363 : vector<1x1x32xf32> to vector<1x32xf32>
    %365 = vector.broadcast %364 : vector<1x32xf32> to vector<16x32xf32>
    %366 = arith.addf %362, %365 : vector<16x32xf32>
    %367 = arith.addf %337, %366 : vector<16x32xf32>
    %c1_210 = arith.constant 1 : index
    %c0_211 = arith.constant 0 : index
    %c0_212 = arith.constant 0 : index
    %368 = vector.load %arg20[%c1_210, %c0_211, %c0_212] : memref<2x1x32xf32, #tpu.memory_space<vmem>>, vector<1x1x32xf32>
    %369 = vector.shape_cast %368 : vector<1x1x32xf32> to vector<1x32xf32>
    %c1_213 = arith.constant 1 : index
    %c0_214 = arith.constant 0 : index
    %c0_215 = arith.constant 0 : index
    %370 = vector.load %arg21[%c1_213, %c0_214, %c0_215] : memref<2x1x32xf32, #tpu.memory_space<vmem>>, vector<1x1x32xf32>
    %371 = vector.shape_cast %370 : vector<1x1x32xf32> to vector<1x32xf32>
    %cst_216 = arith.constant dense<0.000000e+00> : vector<16xf32>
    %372 = vector.multi_reduction <add>, %367, %cst_216 [1] : vector<16x32xf32> to vector<16xf32>
    %373 = vector.shape_cast %372 : vector<16xf32> to vector<16x1xf32>
    %cst_217 = arith.constant 3.200000e+01 : f32
    %374 = vector.broadcast %cst_217 : f32 to vector<16x1xf32>
    %375 = arith.divf %373, %374 : vector<16x1xf32>
    %376 = vector.broadcast %375 : vector<16x1xf32> to vector<16x32xf32>
    %377 = arith.subf %367, %376 : vector<16x32xf32>
    %378 = arith.mulf %377, %377 : vector<16x32xf32>
    %cst_218 = arith.constant dense<0.000000e+00> : vector<16xf32>
    %379 = vector.multi_reduction <add>, %378, %cst_218 [1] : vector<16x32xf32> to vector<16xf32>
    %380 = vector.shape_cast %379 : vector<16xf32> to vector<16x1xf32>
    %cst_219 = arith.constant 3.200000e+01 : f32
    %381 = vector.broadcast %cst_219 : f32 to vector<16x1xf32>
    %382 = arith.divf %380, %381 : vector<16x1xf32>
    %cst_220 = arith.constant 9.99999974E-6 : f32
    %383 = vector.broadcast %cst_220 : f32 to vector<16x1xf32>
    %384 = arith.addf %382, %383 : vector<16x1xf32>
    %385 = math.rsqrt %384 : vector<16x1xf32>
    %386 = vector.broadcast %375 : vector<16x1xf32> to vector<16x32xf32>
    %387 = arith.subf %367, %386 : vector<16x32xf32>
    %388 = vector.broadcast %385 : vector<16x1xf32> to vector<16x32xf32>
    %389 = arith.mulf %387, %388 : vector<16x32xf32>
    %390 = vector.broadcast %369 : vector<1x32xf32> to vector<16x32xf32>
    %391 = arith.mulf %389, %390 : vector<16x32xf32>
    %392 = vector.broadcast %371 : vector<1x32xf32> to vector<16x32xf32>
    %393 = arith.addf %391, %392 : vector<16x32xf32>
    %c0_221 = arith.constant 0 : index
    %c0_222 = arith.constant 0 : index
    %394 = vector.load %arg23[%c0_221, %c0_222] : memref<16x32xf32, #tpu.memory_space<vmem>>, vector<16x32xf32>
    tpu.vector_store %arg23[%c0_221, %c0_222], %393 {strides = array<i32>} : memref<16x32xf32, #tpu.memory_space<vmem>>, vector<16x32xf32>,
    return
  }
  func.func @transform_0(%arg0: i32) -> (i32, i32) {
    %c0_i32 = arith.constant 0 : i32
    %c0_i32_0 = arith.constant 0 : i32
    %c0_i32_1 = arith.constant 0 : i32
    return %c0_i32, %c0_i32_0 : i32, i32
  }
  func.func @transform_1(%arg0: i32) -> (i32, i32) {
    %c0_i32 = arith.constant 0 : i32
    %c0_i32_0 = arith.constant 0 : i32
    %c0_i32_1 = arith.constant 0 : i32
    return %c0_i32, %c0_i32_0 : i32, i32
  }
  func.func @transform_2(%arg0: i32) -> (i32, i32) {
    %c0_i32 = arith.constant 0 : i32
    %c0_i32_0 = arith.constant 0 : i32
    %c0_i32_1 = arith.constant 0 : i32
    return %c0_i32, %c0_i32_0 : i32, i32
  }
  func.func @transform_3(%arg0: i32) -> (i32, i32) {
    %c0_i32 = arith.constant 0 : i32
    %c0_i32_0 = arith.constant 0 : i32
    %c0_i32_1 = arith.constant 0 : i32
    return %c0_i32, %c0_i32_0 : i32, i32
  }
  func.func @transform_4(%arg0: i32) -> (i32, i32) {
    %c0_i32 = arith.constant 0 : i32
    %c0_i32_0 = arith.constant 0 : i32
    %c0_i32_1 = arith.constant 0 : i32
    return %c0_i32, %c0_i32_0 : i32, i32
  }
  func.func @transform_5(%arg0: i32) -> (i32, i32, i32) {
    %c0_i32 = arith.constant 0 : i32
    %c0_i32_0 = arith.constant 0 : i32
    %c0_i32_1 = arith.constant 0 : i32
    %c0_i32_2 = arith.constant 0 : i32
    return %c0_i32, %c0_i32_0, %c0_i32_1 : i32, i32, i32
  }
  func.func @transform_6(%arg0: i32) -> (i32, i32, i32) {
    %c0_i32 = arith.constant 0 : i32
    %c0_i32_0 = arith.constant 0 : i32
    %c0_i32_1 = arith.constant 0 : i32
    %c0_i32_2 = arith.constant 0 : i32
    return %c0_i32, %c0_i32_0, %c0_i32_1 : i32, i32, i32
  }
  func.func @transform_7(%arg0: i32) -> (i32, i32, i32) {
    %c0_i32 = arith.constant 0 : i32
    %c0_i32_0 = arith.constant 0 : i32
    %c0_i32_1 = arith.constant 0 : i32
    %c0_i32_2 = arith.constant 0 : i32
    return %c0_i32, %c0_i32_0, %c0_i32_1 : i32, i32, i32
  }
  func.func @transform_8(%arg0: i32) -> (i32, i32, i32) {
    %c0_i32 = arith.constant 0 : i32
    %c0_i32_0 = arith.constant 0 : i32
    %c0_i32_1 = arith.constant 0 : i32
    %c0_i32_2 = arith.constant 0 : i32
    return %c0_i32, %c0_i32_0, %c0_i32_1 : i32, i32, i32
  }
  func.func @transform_9(%arg0: i32) -> (i32, i32, i32) {
    %c0_i32 = arith.constant 0 : i32
    %c0_i32_0 = arith.constant 0 : i32
    %c0_i32_1 = arith.constant 0 : i32
    %c0_i32_2 = arith.constant 0 : i32
    return %c0_i32, %c0_i32_0, %c0_i32_1 : i32, i32, i32
  }
  func.func @transform_10(%arg0: i32) -> (i32, i32, i32) {
    %c0_i32 = arith.constant 0 : i32
    %c0_i32_0 = arith.constant 0 : i32
    %c0_i32_1 = arith.constant 0 : i32
    %c0_i32_2 = arith.constant 0 : i32
    return %c0_i32, %c0_i32_0, %c0_i32_1 : i32, i32, i32
  }
  func.func @transform_11(%arg0: i32) -> (i32, i32, i32) {
    %c0_i32 = arith.constant 0 : i32
    %c0_i32_0 = arith.constant 0 : i32
    %c0_i32_1 = arith.constant 0 : i32
    %c0_i32_2 = arith.constant 0 : i32
    return %c0_i32, %c0_i32_0, %c0_i32_1 : i32, i32, i32
  }
  func.func @transform_12(%arg0: i32) -> (i32, i32, i32) {
    %c0_i32 = arith.constant 0 : i32
    %c0_i32_0 = arith.constant 0 : i32
    %c0_i32_1 = arith.constant 0 : i32
    %c0_i32_2 = arith.constant 0 : i32
    return %c0_i32, %c0_i32_0, %c0_i32_1 : i32, i32, i32
  }
  func.func @transform_13(%arg0: i32) -> (i32, i32, i32) {
    %c0_i32 = arith.constant 0 : i32
    %c0_i32_0 = arith.constant 0 : i32
    %c0_i32_1 = arith.constant 0 : i32
    %c0_i32_2 = arith.constant 0 : i32
    return %c0_i32, %c0_i32_0, %c0_i32_1 : i32, i32, i32
  }
  func.func @transform_14(%arg0: i32) -> (i32, i32, i32) {
    %c0_i32 = arith.constant 0 : i32
    %c0_i32_0 = arith.constant 0 : i32
    %c0_i32_1 = arith.constant 0 : i32
    %c0_i32_2 = arith.constant 0 : i32
    return %c0_i32, %c0_i32_0, %c0_i32_1 : i32, i32, i32
  }
  func.func @transform_15(%arg0: i32) -> (i32, i32, i32) {
    %c0_i32 = arith.constant 0 : i32
    %c0_i32_0 = arith.constant 0 : i32
    %c0_i32_1 = arith.constant 0 : i32
    %c0_i32_2 = arith.constant 0 : i32
    return %c0_i32, %c0_i32_0, %c0_i32_1 : i32, i32, i32
  }
  func.func @transform_16(%arg0: i32) -> (i32, i32, i32) {
    %c0_i32 = arith.constant 0 : i32
    %c0_i32_0 = arith.constant 0 : i32
    %c0_i32_1 = arith.constant 0 : i32
    %c0_i32_2 = arith.constant 0 : i32
    return %c0_i32, %c0_i32_0, %c0_i32_1 : i32, i32, i32
  }
  func.func @transform_17(%arg0: i32) -> (i32, i32, i32) {
    %c0_i32 = arith.constant 0 : i32
    %c0_i32_0 = arith.constant 0 : i32
    %c0_i32_1 = arith.constant 0 : i32
    %c0_i32_2 = arith.constant 0 : i32
    return %c0_i32, %c0_i32_0, %c0_i32_1 : i32, i32, i32
  }
  func.func @transform_18(%arg0: i32) -> (i32, i32, i32) {
    %c0_i32 = arith.constant 0 : i32
    %c0_i32_0 = arith.constant 0 : i32
    %c0_i32_1 = arith.constant 0 : i32
    %c0_i32_2 = arith.constant 0 : i32
    return %c0_i32, %c0_i32_0, %c0_i32_1 : i32, i32, i32
  }
  func.func @transform_19(%arg0: i32) -> (i32, i32, i32) {
    %c0_i32 = arith.constant 0 : i32
    %c0_i32_0 = arith.constant 0 : i32
    %c0_i32_1 = arith.constant 0 : i32
    %c0_i32_2 = arith.constant 0 : i32
    return %c0_i32, %c0_i32_0, %c0_i32_1 : i32, i32, i32
  }
  func.func @transform_20(%arg0: i32) -> (i32, i32, i32) {
    %c0_i32 = arith.constant 0 : i32
    %c0_i32_0 = arith.constant 0 : i32
    %c0_i32_1 = arith.constant 0 : i32
    %c0_i32_2 = arith.constant 0 : i32
    return %c0_i32, %c0_i32_0, %c0_i32_1 : i32, i32, i32
  }
  func.func @transform_21(%arg0: i32) -> (i32, i32) {
    %c0_i32 = arith.constant 0 : i32
    %c0_i32_0 = arith.constant 0 : i32
    %c0_i32_1 = arith.constant 0 : i32
    return %c0_i32, %c0_i32_0 : i32, i32
  }
  func.func @transform_22(%arg0: i32) -> (i32, i32) {
    %c0_i32 = arith.constant 0 : i32
    %c0_i32_0 = arith.constant 0 : i32
    %c0_i32_1 = arith.constant 0 : i32
    return %c0_i32, %c0_i32_0 : i32, i32
  }
}

</mosaic_0001>

<llo_original>
// kernel: mul.8
$region0: #{mul.8}
  %s0 = inlined_call_operand.vmem [shape: f32[2,8], index: 0, kind: input, shape index: {}]
  %s1 = inlined_call_operand.vmem [shape: f32[16], index: 1, kind: output, shape index: {}]
  $region1: #{mul.8} parent=0
    #allocation0 [shape = 'u8[4096]{0}', space=vmem, size = 0x1000, scoped, tag = 'scoped mem for output reshape']
    #allocation1 [shape = 'u8[4096]{0}', space=vmem, size = 0x1000, scoped, tag = 'scoped mem for input reshape']
    %s3 = sshll.u32 1, 2
    %s4 = ssub.s32 %s3, 1
    %v5 = vld [vmem:[%s0] sm:%s4]
    %6 = vst [vmem:[#allocation1] sm:%s4] %v5
    %v7 = vld [vmem:[#allocation1] sm:$0x1]
    %vm8 = vcmask 64512
    %9 = vst.msk [vmem:[#allocation0] sm:$0x1] %vm8, %v7
    %s10 = scalar_lea.vmem [#allocation1], 1
    %v11 = vld [vmem:[%s10] sm:$0x1]
    %12 = vrot.lane.b32.xlu0 %v11, 8
    %v13 = vpop.permute.xlu0 %12
    %vm14 = vcmask 130112
    %15 = vst.msk [vmem:[#allocation0] sm:$0x1] %vm14, %v13
    %s17 = sshll.u32 1, 1
    %s18 = ssub.s32 %s17, 1
    %v20 = vld [vmem:[#allocation0] sm:%s18]
    %s21 = sshll.u32 1, 1
    %s22 = ssub.s32 %s21, 1
    %23 = vst [vmem:[%s1] sm:%s22] %v20

// kernel: lm_forward.1
$region0: #{lm_forward.1}
  #allocation0 [shape = 'u32[]', space=smem, size = 0x4, offset = 0x4, fixed_abs, tag = 'smem constant byte address 0x4 - core index']
  #allocation1 [shape = 'u32[144,128]{1,0:T(1,128)}', space=vmem, size = 0x12000, scoped, tag = 'internal scratch']
  %s0 = inlined_call_operand.vmem [shape: s32[16,1], index: 0, kind: input, shape index: {}]
  %s1 = inlined_call_operand.vmem [shape: bf16[64,32], index: 1, kind: input, shape index: {}]
  %s2 = inlined_call_operand.vmem [shape: f32[16,32], index: 2, kind: input, shape index: {}]
  %s3 = inlined_call_operand.vmem [shape: f32[1,32], index: 3, kind: input, shape index: {}]
  %s4 = inlined_call_operand.vmem [shape: f32[1,32], index: 4, kind: input, shape index: {}]
  %s5 = inlined_call_operand.vmem [shape: bf16[4,32,16], index: 5, kind: input, shape index: {}]
  %s6 = inlined_call_operand.vmem [shape: f32[4,1,16], index: 6, kind: input, shape index: {}]
  %s7 = inlined_call_operand.vmem [shape: bf16[4,32,16], index: 7, kind: input, shape index: {}]
  %s8 = inlined_call_operand.vmem [shape: f32[4,1,16], index: 8, kind: input, shape index: {}]
  %s9 = inlined_call_operand.vmem [shape: bf16[4,32,16], index: 9, kind: input, shape index: {}]
  %s10 = inlined_call_operand.vmem [shape: f32[4,1,16], index: 10, kind: input, shape index: {}]
  %s11 = inlined_call_operand.vmem [shape: bf16[4,16,32], index: 11, kind: input, shape index: {}]
  %s12 = inlined_call_operand.vmem [shape: f32[2,1,32], index: 12, kind: input, shape index: {}]
  %s13 = inlined_call_operand.vmem [shape: f32[2,1,32], index: 13, kind: input, shape index: {}]
  %s14 = inlined_call_operand.vmem [shape: f32[2,1,32], index: 14, kind: input, shape index: {}]
  %s15 = inlined_call_operand.vmem [shape: bf16[2,32,64], index: 15, kind: input, shape index: {}]
  %s16 = inlined_call_operand.vmem [shape: f32[2,1,64], index: 16, kind: input, shape index: {}]
  %s17 = inlined_call_operand.vmem [shape: bf16[2,64,32], index: 17, kind: input, shape index: {}]
  %s18 = inlined_call_operand.vmem [shape: f32[2,1,32], index: 18, kind: input, shape index: {}]
  %s19 = inlined_call_operand.vmem [shape: f32[2,1,32], index: 19, kind: input, shape index: {}]
  %s20 = inlined_call_operand.vmem [shape: f32[2,1,32], index: 20, kind: input, shape index: {}]
  %s21 = inlined_call_operand.vmem [shape: f32[16,16], index: 21, kind: input, shape index: {}]
  %s22 = inlined_call_operand.hbm [shape: f32[16,32], index: 22, kind: output, shape index: {}]
  %s23 = sld [smem:[#allocation0]]
  $region98: #{lm_forward.1} parent=0
    _
  %s25 = ssub.s32 1, %s23
  %s26 = scalar_select 0, %s25, %s23
  $region1: #{lm_forward.1} parent=0
    #allocation2 [shape = 'u8[8192]{0}', space=vmem, size = 0x2000, scoped, tag = 'output window, operand 0, single buffered']
    #allocation3 [shape = 's32[1]{0}', space=sflag, size = 0x4, scoped, tag = 'scoped memory for lm_forward.1']
    %27 = vsyncpa [#allocation3], 0
    // Predicated region
    $region2: #{lm_forward.1} parent=1 // pred_check
      _
    $region3: #{lm_forward.1} parent=1 // pred_check_branch
      %29 = sbr.rel (0) target = $region5
    $region4: #{lm_forward.1} parent=1 // pred_region
      _
    $region5: #{lm_forward.1} parent=1 // pred_fallthru
      _
    // Predicated region
    $region6: #{lm_forward.1} parent=1 // pred_check
      _
    $region7: #{lm_forward.1} parent=1 // pred_check_branch
      %31 = sbr.rel (0) target = $region9
    $region8: #{lm_forward.1} parent=1 // pred_region
      _
    $region9: #{lm_forward.1} parent=1 // pred_fallthru
      _
    // Predicated region
    $region10: #{lm_forward.1} parent=1 // pred_check
      _
    $region11: #{lm_forward.1} parent=1 // pred_check_branch
      %33 = sbr.rel (0) target = $region13
    $region12: #{lm_forward.1} parent=1 // pred_region
      _
    $region13: #{lm_forward.1} parent=1 // pred_fallthru
      _
    // Predicated region
    $region14: #{lm_forward.1} parent=1 // pred_check
      _
    $region15: #{lm_forward.1} parent=1 // pred_check_branch
      %35 = sbr.rel (0) target = $region17
    $region16: #{lm_forward.1} parent=1 // pred_region
      _
    $region17: #{lm_forward.1} parent=1 // pred_fallthru
      _
    // Predicated region
    $region18: #{lm_forward.1} parent=1 // pred_check
      _
    $region19: #{lm_forward.1} parent=1 // pred_check_branch
      %37 = sbr.rel (0) target = $region21
    $region20: #{lm_forward.1} parent=1 // pred_region
      _
    $region21: #{lm_forward.1} parent=1 // pred_fallthru
      _
    // Predicated region
    $region22: #{lm_forward.1} parent=1 // pred_check
      _
    $region23: #{lm_forward.1} parent=1 // pred_check_branch
      %39 = sbr.rel (0) target = $region25
    $region24: #{lm_forward.1} parent=1 // pred_region
      _
    $region25: #{lm_forward.1} parent=1 // pred_fallthru
      _
    // Predicated region
    $region26: #{lm_forward.1} parent=1 // pred_check
      _
    $region27: #{lm_forward.1} parent=1 // pred_check_branch
      %41 = sbr.rel (0) target = $region29
    $region28: #{lm_forward.1} parent=1 // pred_region
      _
    $region29: #{lm_forward.1} parent=1 // pred_fallthru
      _
    // Predicated region
    $region30: #{lm_forward.1} parent=1 // pred_check
      _
    $region31: #{lm_forward.1} parent=1 // pred_check_branch
      %43 = sbr.rel (0) target = $region33
    $region32: #{lm_forward.1} parent=1 // pred_region
      _
    $region33: #{lm_forward.1} parent=1 // pred_fallthru
      _
    // Predicated region
    $region34: #{lm_forward.1} parent=1 // pred_check
      _
    $region35: #{lm_forward.1} parent=1 // pred_check_branch
      %45 = sbr.rel (0) target = $region37
    $region36: #{lm_forward.1} parent=1 // pred_region
      _
    $region37: #{lm_forward.1} parent=1 // pred_fallthru
      _
    // Predicated region
    $region38: #{lm_forward.1} parent=1 // pred_check
      _
    $region39: #{lm_forward.1} parent=1 // pred_check_branch
      %47 = sbr.rel (0) target = $region41
    $region40: #{lm_forward.1} parent=1 // pred_region
      _
    $region41: #{lm_forward.1} parent=1 // pred_fallthru
      _
    // Predicated region
    $region42: #{lm_forward.1} parent=1 // pred_check
      _
    $region43: #{lm_forward.1} parent=1 // pred_check_branch
      %49 = sbr.rel (0) target = $region45
    $region44: #{lm_forward.1} parent=1 // pred_region
      _
    $region45: #{lm_forward.1} parent=1 // pred_fallthru
      _
    // Predicated region
    $region46: #{lm_forward.1} parent=1 // pred_check
      _
    $region47: #{lm_forward.1} parent=1 // pred_check_branch
      %51 = sbr.rel (0) target = $region49
    $region48: #{lm_forward.1} parent=1 // pred_region
      _
    $region49: #{lm_forward.1} parent=1 // pred_fallthru
      _
    // Predicated region
    $region50: #{lm_forward.1} parent=1 // pred_check
      _
    $region51: #{lm_forward.1} parent=1 // pred_check_branch
      %53 = sbr.rel (0) target = $region53
    $region52: #{lm_forward.1} parent=1 // pred_region
      _
    $region53: #{lm_forward.1} parent=1 // pred_fallthru
      _
    // Predicated region
    $region54: #{lm_forward.1} parent=1 // pred_check
      _
    $region55: #{lm_forward.1} parent=1 // pred_check_branch
      %55 = sbr.rel (0) target = $region57
    $region56: #{lm_forward.1} parent=1 // pred_region
      _
    $region57: #{lm_forward.1} parent=1 // pred_fallthru
      _
    // Predicated region
    $region58: #{lm_forward.1} parent=1 // pred_check
      _
    $region59: #{lm_forward.1} parent=1 // pred_check_branch
      %57 = sbr.rel (0) target = $region61
    $region60: #{lm_forward.1} parent=1 // pred_region
      _
    $region61: #{lm_forward.1} parent=1 // pred_fallthru
      _
    // Predicated region
    $region62: #{lm_forward.1} parent=1 // pred_check
      _
    $region63: #{lm_forward.1} parent=1 // pred_check_branch
      %59 = sbr.rel (0) target = $region65
    $region64: #{lm_forward.1} parent=1 // pred_region
      _
    $region65: #{lm_forward.1} parent=1 // pred_fallthru
      _
    // Predicated region
    $region66: #{lm_forward.1} parent=1 // pred_check
      _
    $region67: #{lm_forward.1} parent=1 // pred_check_branch
      %61 = sbr.rel (0) target = $region69
    $region68: #{lm_forward.1} parent=1 // pred_region
      _
    $region69: #{lm_forward.1} parent=1 // pred_fallthru
      _
    // Predicated region
    $region70: #{lm_forward.1} parent=1 // pred_check
      _
    $region71: #{lm_forward.1} parent=1 // pred_check_branch
      %63 = sbr.rel (0) target = $region73
    $region72: #{lm_forward.1} parent=1 // pred_region
      _
    $region73: #{lm_forward.1} parent=1 // pred_fallthru
      _
    // Predicated region
    $region74: #{lm_forward.1} parent=1 // pred_check
      _
    $region75: #{lm_forward.1} parent=1 // pred_check_branch
      %65 = sbr.rel (0) target = $region77
    $region76: #{lm_forward.1} parent=1 // pred_region
      _
    $region77: #{lm_forward.1} parent=1 // pred_fallthru
      _
    // Predicated region
    $region78: #{lm_forward.1} parent=1 // pred_check
      _
    $region79: #{lm_forward.1} parent=1 // pred_check_branch
      %67 = sbr.rel (0) target = $region81
    $region80: #{lm_forward.1} parent=1 // pred_region
      _
    $region81: #{lm_forward.1} parent=1 // pred_fallthru
      _
    // Predicated region
    $region82: #{lm_forward.1} parent=1 // pred_check
      _
    $region83: #{lm_forward.1} parent=1 // pred_check_branch
      %69 = sbr.rel (0) target = $region85
    $region84: #{lm_forward.1} parent=1 // pred_region
      _
    $region85: #{lm_forward.1} parent=1 // pred_fallthru
      _
    // Predicated region
    $region86: #{lm_forward.1} parent=1 // pred_check
      _
    $region87: #{lm_forward.1} parent=1 // pred_check_branch
      %71 = sbr.rel (0) target = $region89
    $region88: #{lm_forward.1} parent=1 // pred_region
      _
    $region89: #{lm_forward.1} parent=1 // pred_fallthru
      _
    %v73 = vld [vmem:[%s0] sm:$0xff]
    %v74 = vld [vmem:[%s0 + $0x8] sm:$0xff]
    %v75 = vlaneseq
    %v76 = vand.u32 %v75, 127
    %77 = vset.pattern.permute.xlu0 0
    %78 = vperm.xlu0 %77, %v73
    %v79 = vpop.permute.xlu0 %78
    %80 = vset.pattern.permute.xlu0 0
    %81 = vperm.xlu0 %80, %v74
    %v82 = vpop.permute.xlu0 %81
    %vm83 = vcmp.eq.s32.totalorder %v76, %v79
    %vm84 = vcmp.eq.s32.totalorder %v76, %v82
    %v85 = vsel %vm83, 1, 0
    %v86 = vsel %vm84, 1, 0
    %v87 = vcvt.s32.f32 %v85
    %v88 = vcvt.s32.f32 %v86
    %v89 = vpack.c.bf16 %v88, %v87
    %v90 = vld [vmem:[%s1] sm:$0xf]
    %v91 = vld [vmem:[%s1 + $0x4] sm:$0xf]
    %v92 = vld [vmem:[%s1 + $0x8] sm:$0xf]
    %v93 = vld [vmem:[%s1 + $0xc] sm:$0xf]
    %v94 = vld [vmem:[%s1 + $0x10] sm:$0xf]
    %v95 = vld [vmem:[%s1 + $0x14] sm:$0xf]
    %v96 = vld [vmem:[%s1 + $0x18] sm:$0xf]
    %v97 = vld [vmem:[%s1 + $0x1c] sm:$0xf]
    %v98 = vld [vmem:[%s2] sm:$0xff]
    %v99 = vld [vmem:[%s2 + $0x8] sm:$0xff]
    %v108 = vunpack.c.l.b16 %v90
    %v109 = vunpack.c.l.b16 %v91
    %v110 = vunpack.c.l.b16 %v92
    %v111 = vunpack.c.l.b16 %v93
    %v112 = vunpack.c.l.b16 %v94
    %v113 = vunpack.c.l.b16 %v95
    %v114 = vunpack.c.l.b16 %v96
    %v115 = vunpack.c.l.b16 %v97
    %v116 = vpack.c.b16 %v109, %v108
    %v117 = vpack.c.b16 %v111, %v110
    %v118 = vpack.c.b16 %v113, %v112
    %v119 = vpack.c.b16 %v115, %v114
    %vm124 = vcmask 523264
    %v126 = vsel %vm124, %v89, 0
    %128 = vmatprep.subr.bf16.mxu0 0
    %129 = vmatpush1.bf16.msra.mxu0 0
    %130 = vmatprep.subr.bf16.mxu0 0
    %131 = vmatpush1.bf16.msra.mxu0 0
    %132 = vmatprep.subr.bf16.mxu0 0
    %133 = vmatpush1.bf16.msra.mxu0 0
    %134 = vmatprep.subr.bf16.mxu0 0
    %135 = vmatpush1.bf16.msra.mxu0 0
    %136 = vmatprep.subr.bf16.mxu0 0
    %137 = vmatpush1.bf16.msra.mxu0 %v119
    %138 = vmatprep.subr.bf16.mxu0 0
    %139 = vmatpush1.bf16.msra.mxu0 %v118
    %140 = vmatprep.subr.bf16.mxu0 0
    %141 = vmatpush1.bf16.msra.mxu0 %v117
    %142 = vmatprep.subr.bf16.mxu0 0
    %143 = vmatpush1.bf16.msra.mxu0 %v116
    %144 = vmatprep.subr.bf16.mxu0 0
    %145 = vmatpush2.bf16.msra.mxu0 0
    %146 = vmatprep.subr.bf16.mxu0 0
    %147 = vmatpush2.bf16.msra.mxu0 0
    %148 = vmatprep.subr.bf16.mxu0 0
    %149 = vmatpush2.bf16.msra.mxu0 0
    %150 = vmatprep.subr.bf16.mxu0 0
    %151 = vmatpush2.bf16.msra.mxu0 0
    %152 = vmatprep.subr.bf16.mxu0 0
    %153 = vmatpush2.bf16.msra.mxu0 0
    %154 = vmatprep.subr.bf16.mxu0 0
    %155 = vmatpush2.bf16.msra.mxu0 0
    %156 = vmatprep.subr.bf16.mxu0 0
    %157 = vmatpush2.bf16.msra.mxu0 0
    %158 = vmatprep.subr.bf16.mxu0 0
    %159 = vmatpush2.bf16.msra.mxu0 0
    %160 = vmatprep.mubr.bf16.mxu0 0
    %161 = vmatmul.mubr.bf16.gmra.mxu0 %v126
    %v162 = vpop.f32.mrf.mxu0
    %v163 = vadd.f32 %v98, %v162
    %v164 = vpop.f32.mrf.mxu0
    %v165 = vpop.f32.mrf.mxu0
    %v166 = vadd.f32 %v99, %v165
    %v167 = vpop.f32.mrf.mxu0
    %168 = vdwg.mxu0
    %v169 = vld [vmem:[%s3] sm:$0x1]
    %v170 = vld [vmem:[%s4] sm:$0x1]
    %vm171 = vcmask 261120
    %v172 = vsel %vm171, %v163, 0.0
    %173 = vadd.xlane.f32.xlu0 %v172
    %v174 = vpop.xlane.xlu0 %173
    %v175 = vsel %vm171, %v166, 0.0
    %176 = vadd.xlane.f32.xlu0 %v175
    %v177 = vpop.xlane.xlu0 %176
    %v178 = vrcp.pop 32.0
    %v179 = vmul.f32 %v174, %v178
    %v180 = vmul.f32 %v177, %v178
    %v181 = vsub.f32 %v163, %v179
    %v182 = vsub.f32 %v166, %v180
    %v183 = vmul.f32 %v181, %v181
    %v184 = vmul.f32 %v182, %v182
    %v185 = vsel %vm171, %v183, 0.0
    %186 = vadd.xlane.f32.xlu0 %v185
    %v187 = vpop.xlane.xlu0 %186
    %v188 = vsel %vm171, %v184, 0.0
    %189 = vadd.xlane.f32.xlu0 %v188
    %v190 = vpop.xlane.xlu0 %189
    %v191 = vmul.f32 %v187, %v178
    %v192 = vmul.f32 %v190, %v178
    %v193 = vadd.f32 %v191, 1e-05
    %v194 = vadd.f32 %v192, 1e-05
    %v195 = vrsqrt.pop %v193
    %v196 = vrsqrt.pop %v194
    %v197 = vmul.f32 %v181, %v195
    %v198 = vmul.f32 %v182, %v196
    %v200 = vlaneseq
    %v201 = vshrl.u32 %v200, 7
    %v202 = vsub.s32 0, %v201
    %v203 = vrot.slane %v169, %v202
    %v205 = vmul.f32 %v197, %v203
    %v206 = vmul.f32 %v198, %v203
    %v208 = vlaneseq
    %v209 = vshrl.u32 %v208, 7
    %v210 = vsub.s32 0, %v209
    %v211 = vrot.slane %v170, %v210
    %v213 = vadd.f32 %v205, %v211
    %v214 = vadd.f32 %v206, %v211
    %v215 = vld [vmem:[%s21] sm:$0xff]
    %v216 = vld [vmem:[%s21 + $0x8] sm:$0xff]
    %v217 = vpack.c.bf16 %v214, %v213
    %v218 = vld [vmem:[%s5] sm:$0xf]
    %v219 = vld [vmem:[%s5 + $0x4] sm:$0xf]
    %v220 = vld [vmem:[%s5 + $0x8] sm:$0xf]
    %v221 = vld [vmem:[%s5 + $0xc] sm:$0xf]
    %v222 = vld [vmem:[%s6] sm:$0x1]
    %v224 = vlaneseq
    %v225 = vshrl.u32 %v224, 7
    %v226 = vsub.s32 0, %v225
    %v227 = vrot.slane %v222, %v226
    %v233 = vunpack.c.l.b16 %v218
    %v234 = vunpack.c.l.b16 %v219
    %v235 = vunpack.c.l.b16 %v220
    %v236 = vunpack.c.l.b16 %v221
    %v237 = vpack.c.b16 %v234, %v233
    %v238 = vpack.c.b16 %v236, %v235
    %v242 = vsel %vm171, %v217, 0
    %244 = vmatprep.subr.bf16.mxu0 0
    %245 = vmatpush1.bf16.msra.mxu0 0
    %246 = vmatprep.subr.bf16.mxu0 0
    %247 = vmatpush1.bf16.msra.mxu0 0
    %248 = vmatprep.subr.bf16.mxu0 0
    %249 = vmatpush1.bf16.msra.mxu0 0
    %250 = vmatprep.subr.bf16.mxu0 0
    %251 = vmatpush1.bf16.msra.mxu0 0
    %252 = vmatprep.subr.bf16.mxu0 0
    %253 = vmatpush1.bf16.msra.mxu0 0
    %254 = vmatprep.subr.bf16.mxu0 0
    %255 = vmatpush1.bf16.msra.mxu0 0
    %256 = vmatprep.subr.bf16.mxu0 0
    %257 = vmatpush1.bf16.msra.mxu0 %v238
    %258 = vmatprep.subr.bf16.mxu0 0
    %259 = vmatpush1.bf16.msra.mxu0 %v237
    %260 = vmatprep.subr.bf16.mxu0 0
    %261 = vmatpush2.bf16.msra.mxu0 0
    %262 = vmatprep.subr.bf16.mxu0 0
    %263 = vmatpush2.bf16.msra.mxu0 0
    %264 = vmatprep.subr.bf16.mxu0 0
    %265 = vmatpush2.bf16.msra.mxu0 0
    %266 = vmatprep.subr.bf16.mxu0 0
    %267 = vmatpush2.bf16.msra.mxu0 0
    %268 = vmatprep.subr.bf16.mxu0 0
    %269 = vmatpush2.bf16.msra.mxu0 0
    %270 = vmatprep.subr.bf16.mxu0 0
    %271 = vmatpush2.bf16.msra.mxu0 0
    %272 = vmatprep.subr.bf16.mxu0 0
    %273 = vmatpush2.bf16.msra.mxu0 0
    %274 = vmatprep.subr.bf16.mxu0 0
    %275 = vmatpush2.bf16.msra.mxu0 0
    %276 = vmatprep.mubr.bf16.mxu0 0
    %277 = vmatmul.mubr.bf16.gmra.mxu0 %v242
    %v278 = vpop.f32.mrf.mxu0
    %v279 = vadd.f32 %v227, %v278
    %v280 = vpop.f32.mrf.mxu0
    %v281 = vpop.f32.mrf.mxu0
    %v282 = vadd.f32 %v227, %v281
    %v283 = vpop.f32.mrf.mxu0
    %284 = vdwg.mxu0
    %v285 = vld [vmem:[%s7] sm:$0xf]
    %v286 = vld [vmem:[%s7 + $0x4] sm:$0xf]
    %v287 = vld [vmem:[%s7 + $0x8] sm:$0xf]
    %v288 = vld [vmem:[%s7 + $0xc] sm:$0xf]
    %v289 = vld [vmem:[%s8] sm:$0x1]
    %v291 = vlaneseq
    %v292 = vshrl.u32 %v291, 7
    %v293 = vsub.s32 0, %v292
    %v294 = vrot.slane %v289, %v293
    %v300 = vunpack.c.l.b16 %v285
    %v301 = vunpack.c.l.b16 %v286
    %v302 = vunpack.c.l.b16 %v287
    %v303 = vunpack.c.l.b16 %v288
    %v304 = vpack.c.b16 %v301, %v300
    %v305 = vpack.c.b16 %v303, %v302
    %308 = vmatprep.subr.bf16.mxu0 0
    %309 = vmatpush1.bf16.msra.mxu0 0
    %310 = vmatprep.subr.bf16.mxu0 0
    %311 = vmatpush1.bf16.msra.mxu0 0
    %312 = vmatprep.subr.bf16.mxu0 0
    %313 = vmatpush1.bf16.msra.mxu0 0
    %314 = vmatprep.subr.bf16.mxu0 0
    %315 = vmatpush1.bf16.msra.mxu0 0
    %316 = vmatprep.subr.bf16.mxu0 0
    %317 = vmatpush1.bf16.msra.mxu0 0
    %318 = vmatprep.subr.bf16.mxu0 0
    %319 = vmatpush1.bf16.msra.mxu0 0
    %320 = vmatprep.subr.bf16.mxu0 0
    %321 = vmatpush1.bf16.msra.mxu0 %v305
    %322 = vmatprep.subr.bf16.mxu0 0
    %323 = vmatpush1.bf16.msra.mxu0 %v304
    %324 = vmatprep.subr.bf16.mxu0 0
    %325 = vmatpush2.bf16.msra.mxu0 0
    %326 = vmatprep.subr.bf16.mxu0 0
    %327 = vmatpush2.bf16.msra.mxu0 0
    %328 = vmatprep.subr.bf16.mxu0 0
    %329 = vmatpush2.bf16.msra.mxu0 0
    %330 = vmatprep.subr.bf16.mxu0 0
    %331 = vmatpush2.bf16.msra.mxu0 0
    %332 = vmatprep.subr.bf16.mxu0 0
    %333 = vmatpush2.bf16.msra.mxu0 0
    %334 = vmatprep.subr.bf16.mxu0 0
    %335 = vmatpush2.bf16.msra.mxu0 0
    %336 = vmatprep.subr.bf16.mxu0 0
    %337 = vmatpush2.bf16.msra.mxu0 0
    %338 = vmatprep.subr.bf16.mxu0 0
    %339 = vmatpush2.bf16.msra.mxu0 0
    %340 = vmatprep.mubr.bf16.mxu0 0
    %341 = vmatmul.mubr.bf16.gmra.mxu0 %v242
    %v342 = vpop.f32.mrf.mxu0
    %v343 = vadd.f32 %v294, %v342
    %v344 = vpop.f32.mrf.mxu0
    %v345 = vpop.f32.mrf.mxu0
    %v346 = vadd.f32 %v294, %v345
    %v347 = vpop.f32.mrf.mxu0
    %348 = vdwg.mxu0
    %v349 = vld [vmem:[%s9] sm:$0xf]
    %v350 = vld [vmem:[%s9 + $0x4] sm:$0xf]
    %v351 = vld [vmem:[%s9 + $0x8] sm:$0xf]
    %v352 = vld [vmem:[%s9 + $0xc] sm:$0xf]
    %v353 = vld [vmem:[%s10] sm:$0x1]
    %v355 = vlaneseq
    %v356 = vshrl.u32 %v355, 7
    %v357 = vsub.s32 0, %v356
    %v358 = vrot.slane %v353, %v357
    %v364 = vunpack.c.l.b16 %v349
    %v365 = vunpack.c.l.b16 %v350
    %v366 = vunpack.c.l.b16 %v351
    %v367 = vunpack.c.l.b16 %v352
    %v368 = vpack.c.b16 %v365, %v364
    %v369 = vpack.c.b16 %v367, %v366
    %372 = vmatprep.subr.bf16.mxu0 0
    %373 = vmatpush1.bf16.msra.mxu0 0
    %374 = vmatprep.subr.bf16.mxu0 0
    %375 = vmatpush1.bf16.msra.mxu0 0
    %376 = vmatprep.subr.bf16.mxu0 0
    %377 = vmatpush1.bf16.msra.mxu0 0
    %378 = vmatprep.subr.bf16.mxu0 0
    %379 = vmatpush1.bf16.msra.mxu0 0
    %380 = vmatprep.subr.bf16.mxu0 0
    %381 = vmatpush1.bf16.msra.mxu0 0
    %382 = vmatprep.subr.bf16.mxu0 0
    %383 = vmatpush1.bf16.msra.mxu0 0
    %384 = vmatprep.subr.bf16.mxu0 0
    %385 = vmatpush1.bf16.msra.mxu0 %v369
    %386 = vmatprep.subr.bf16.mxu0 0
    %387 = vmatpush1.bf16.msra.mxu0 %v368
    %388 = vmatprep.subr.bf16.mxu0 0
    %389 = vmatpush2.bf16.msra.mxu0 0
    %390 = vmatprep.subr.bf16.mxu0 0
    %391 = vmatpush2.bf16.msra.mxu0 0
    %392 = vmatprep.subr.bf16.mxu0 0
    %393 = vmatpush2.bf16.msra.mxu0 0
    %394 = vmatprep.subr.bf16.mxu0 0
    %395 = vmatpush2.bf16.msra.mxu0 0
    %396 = vmatprep.subr.bf16.mxu0 0
    %397 = vmatpush2.bf16.msra.mxu0 0
    %398 = vmatprep.subr.bf16.mxu0 0
    %399 = vmatpush2.bf16.msra.mxu0 0
    %400 = vmatprep.subr.bf16.mxu0 0
    %401 = vmatpush2.bf16.msra.mxu0 0
    %402 = vmatprep.subr.bf16.mxu0 0
    %403 = vmatpush2.bf16.msra.mxu0 0
    %404 = vmatprep.mubr.bf16.mxu0 0
    %405 = vmatmul.mubr.bf16.gmra.mxu0 %v242
    %v406 = vpop.f32.mrf.mxu0
    %v407 = vadd.f32 %v358, %v406
    %v408 = vpop.f32.mrf.mxu0
    %v409 = vpop.f32.mrf.mxu0
    %v410 = vadd.f32 %v358, %v409
    %v411 = vpop.f32.mrf.mxu0
    %412 = vdwg.mxu0
    %v413 = vpack.c.bf16 %v282, %v279
    %v414 = vpack.c.bf16 %v346, %v343
    %vm415 = vcmask 130048
    %v417 = vsel %vm415, %v413, 0
    %v420 = vsel %vm415, %v414, 0
    %422 = vmatprep.subr.bf16.mxu0 0
    %423 = vmatpush1.bf16.xpose.msra.mxu0 0
    %424 = vmatprep.subr.bf16.mxu0 0
    %425 = vmatpush1.bf16.xpose.msra.mxu0 0
    %426 = vmatprep.subr.bf16.mxu0 0
    %427 = vmatpush1.bf16.xpose.msra.mxu0 0
    %428 = vmatprep.subr.bf16.mxu0 0
    %429 = vmatpush1.bf16.xpose.msra.mxu0 0
    %430 = vmatprep.subr.bf16.mxu0 0
    %431 = vmatpush1.bf16.xpose.msra.mxu0 0
    %432 = vmatprep.subr.bf16.mxu0 0
    %433 = vmatpush1.bf16.xpose.msra.mxu0 0
    %434 = vmatprep.subr.bf16.mxu0 0
    %435 = vmatpush1.bf16.xpose.msra.mxu0 0
    %436 = vmatprep.subr.bf16.mxu0 0
    %437 = vmatpush1.bf16.xpose.msra.mxu0 %v420
    %438 = vmatprep.subr.bf16.mxu0 0
    %439 = vmatpush2.bf16.xpose.msra.mxu0 0
    %440 = vmatprep.subr.bf16.mxu0 0
    %441 = vmatpush2.bf16.xpose.msra.mxu0 0
    %442 = vmatprep.subr.bf16.mxu0 0
    %443 = vmatpush2.bf16.xpose.msra.mxu0 0
    %444 = vmatprep.subr.bf16.mxu0 0
    %445 = vmatpush2.bf16.xpose.msra.mxu0 0
    %446 = vmatprep.subr.bf16.mxu0 0
    %447 = vmatpush2.bf16.xpose.msra.mxu0 0
    %448 = vmatprep.subr.bf16.mxu0 0
    %449 = vmatpush2.bf16.xpose.msra.mxu0 0
    %450 = vmatprep.subr.bf16.mxu0 0
    %451 = vmatpush2.bf16.xpose.msra.mxu0 0
    %452 = vmatprep.subr.bf16.mxu0 0
    %453 = vmatpush2.bf16.xpose.msra.mxu0 0
    %454 = vmatprep.mubr.bf16.mxu0 0
    %455 = vmatmul.mubr.bf16.gmra.mxu0 %v417
    %v456 = vpop.f32.mrf.mxu0
    %v457 = vadd.f32 0.0, %v456
    %v458 = vpop.f32.mrf.mxu0
    %v459 = vpop.f32.mrf.mxu0
    %v460 = vadd.f32 0.0, %v459
    %v461 = vpop.f32.mrf.mxu0
    %462 = vdwg.mxu0
    %v463 = vmul.f32 %v457, 0.25
    %v464 = vmul.f32 %v460, 0.25
    %v465 = vadd.f32 %v463, %v215
    %v466 = vadd.f32 %v464, %v216
    %v467 = vsel %vm415, %v465, -inf
    %468 = vmax.xlane.f32.xlu0 %v467
    %v469 = vpop.xlane.xlu0 %468
    %v470 = vsel %vm415, %v466, -inf
    %471 = vmax.xlane.f32.xlu0 %v470
    %v472 = vpop.xlane.xlu0 %471
    %v473 = vsub.f32 %v465, %v469
    %v474 = vsub.f32 %v466, %v472
    %v475 = vmul.f32 %v473, 1.442695
    %v476 = vpow.pop %v475
    %v477 = vmul.f32 %v474, 1.442695
    %v478 = vpow.pop %v477
    %v479 = vsel %vm415, %v476, 0.0
    %480 = vadd.xlane.f32.xlu0 %v479
    %v481 = vpop.xlane.xlu0 %480
    %v482 = vsel %vm415, %v478, 0.0
    %483 = vadd.xlane.f32.xlu0 %v482
    %v484 = vpop.xlane.xlu0 %483
    %v485 = vrcp.pop %v481
    %v486 = vrcp.pop %v484
    %v487 = vmul.f32 %v476, %v485
    %v488 = vmul.f32 %v478, %v486
    %v489 = vpack.c.bf16 %v488, %v487
    %v490 = vpack.c.bf16 %v410, %v407
    %v492 = vsel %vm415, %v489, 0
    %494 = vmatprep.subr.bf16.mxu0 0
    %495 = vmatpush1.bf16.msra.mxu0 0
    %496 = vmatprep.subr.bf16.mxu0 0
    %497 = vmatpush1.bf16.msra.mxu0 0
    %498 = vmatprep.subr.bf16.mxu0 0
    %499 = vmatpush1.bf16.msra.mxu0 0
    %500 = vmatprep.subr.bf16.mxu0 0
    %501 = vmatpush1.bf16.msra.mxu0 0
    %502 = vmatprep.subr.bf16.mxu0 0
    %503 = vmatpush1.bf16.msra.mxu0 0
    %504 = vmatprep.subr.bf16.mxu0 0
    %505 = vmatpush1.bf16.msra.mxu0 0
    %506 = vmatprep.subr.bf16.mxu0 0
    %507 = vmatpush1.bf16.msra.mxu0 0
    %508 = vmatprep.subr.bf16.mxu0 0
    %509 = vmatpush1.bf16.msra.mxu0 %v490
    %510 = vmatprep.subr.bf16.mxu0 0
    %511 = vmatpush2.bf16.msra.mxu0 0
    %512 = vmatprep.subr.bf16.mxu0 0
    %513 = vmatpush2.bf16.msra.mxu0 0
    %514 = vmatprep.subr.bf16.mxu0 0
    %515 = vmatpush2.bf16.msra.mxu0 0
    %516 = vmatprep.subr.bf16.mxu0 0
    %517 = vmatpush2.bf16.msra.mxu0 0
    %518 = vmatprep.subr.bf16.mxu0 0
    %519 = vmatpush2.bf16.msra.mxu0 0
    %520 = vmatprep.subr.bf16.mxu0 0
    %521 = vmatpush2.bf16.msra.mxu0 0
    %522 = vmatprep.subr.bf16.mxu0 0
    %523 = vmatpush2.bf16.msra.mxu0 0
    %524 = vmatprep.subr.bf16.mxu0 0
    %525 = vmatpush2.bf16.msra.mxu0 0
    %526 = vmatprep.mubr.bf16.mxu0 0
    %527 = vmatmul.mubr.bf16.gmra.mxu0 %v492
    %v528 = vpop.f32.mrf.mxu0
    %v529 = vadd.f32 0.0, %v528
    %v530 = vpop.f32.mrf.mxu0
    %v531 = vpop.f32.mrf.mxu0
    %v532 = vadd.f32 0.0, %v531
    %v533 = vpop.f32.mrf.mxu0
    %534 = vdwg.mxu0
    %v535 = vpack.c.bf16 %v532, %v529
    %v536 = vld [vmem:[%s11] sm:$0xf]
    %v537 = vld [vmem:[%s11 + $0x4] sm:$0xf]
    %s538 = scalar_lea.vmem %s5, 16
    %v539 = vld [vmem:[%s538] sm:$0xf]
    %v540 = vld [vmem:[%s538 + $0x4] sm:$0xf]
    %v541 = vld [vmem:[%s538 + $0x8] sm:$0xf]
    %v542 = vld [vmem:[%s538 + $0xc] sm:$0xf]
    %s543 = scalar_lea.vmem %s6, 1
    %v544 = vld [vmem:[%s543] sm:$0x1]
    %v546 = vlaneseq
    %v547 = vshrl.u32 %v546, 7
    %v548 = vsub.s32 0, %v547
    %v549 = vrot.slane %v544, %v548
    %v555 = vunpack.c.l.b16 %v539
    %v556 = vunpack.c.l.b16 %v540
    %v557 = vunpack.c.l.b16 %v541
    %v558 = vunpack.c.l.b16 %v542
    %v559 = vpack.c.b16 %v556, %v555
    %v560 = vpack.c.b16 %v558, %v557
    %563 = vmatprep.subr.bf16.mxu0 0
    %564 = vmatpush1.bf16.msra.mxu0 0
    %565 = vmatprep.subr.bf16.mxu0 0
    %566 = vmatpush1.bf16.msra.mxu0 0
    %567 = vmatprep.subr.bf16.mxu0 0
    %568 = vmatpush1.bf16.msra.mxu0 0
    %569 = vmatprep.subr.bf16.mxu0 0
    %570 = vmatpush1.bf16.msra.mxu0 0
    %571 = vmatprep.subr.bf16.mxu0 0
    %572 = vmatpush1.bf16.msra.mxu0 0
    %573 = vmatprep.subr.bf16.mxu0 0
    %574 = vmatpush1.bf16.msra.mxu0 0
    %575 = vmatprep.subr.bf16.mxu0 0
    %576 = vmatpush1.bf16.msra.mxu0 %v560
    %577 = vmatprep.subr.bf16.mxu0 0
    %578 = vmatpush1.bf16.msra.mxu0 %v559
    %579 = vmatprep.subr.bf16.mxu0 0
    %580 = vmatpush2.bf16.msra.mxu0 0
    %581 = vmatprep.subr.bf16.mxu0 0
    %582 = vmatpush2.bf16.msra.mxu0 0
    %583 = vmatprep.subr.bf16.mxu0 0
    %584 = vmatpush2.bf16.msra.mxu0 0
    %585 = vmatprep.subr.bf16.mxu0 0
    %586 = vmatpush2.bf16.msra.mxu0 0
    %587 = vmatprep.subr.bf16.mxu0 0
    %588 = vmatpush2.bf16.msra.mxu0 0
    %589 = vmatprep.subr.bf16.mxu0 0
    %590 = vmatpush2.bf16.msra.mxu0 0
    %591 = vmatprep.subr.bf16.mxu0 0
    %592 = vmatpush2.bf16.msra.mxu0 0
    %593 = vmatprep.subr.bf16.mxu0 0
    %594 = vmatpush2.bf16.msra.mxu0 0
    %595 = vmatprep.mubr.bf16.mxu0 0
    %596 = vmatmul.mubr.bf16.gmra.mxu0 %v242
    %v597 = vpop.f32.mrf.mxu0
    %v598 = vadd.f32 %v549, %v597
    %v599 = vpop.f32.mrf.mxu0
    %v600 = vpop.f32.mrf.mxu0
    %v601 = vadd.f32 %v549, %v600
    %v602 = vpop.f32.mrf.mxu0
    %603 = vdwg.mxu0
    %s604 = scalar_lea.vmem %s7, 16
    %v605 = vld [vmem:[%s604] sm:$0xf]
    %v606 = vld [vmem:[%s604 + $0x4] sm:$0xf]
    %v607 = vld [vmem:[%s604 + $0x8] sm:$0xf]
    %v608 = vld [vmem:[%s604 + $0xc] sm:$0xf]
    %s609 = scalar_lea.vmem %s8, 1
    %v610 = vld [vmem:[%s609] sm:$0x1]
    %v612 = vlaneseq
    %v613 = vshrl.u32 %v612, 7
    %v614 = vsub.s32 0, %v613
    %v615 = vrot.slane %v610, %v614
    %v621 = vunpack.c.l.b16 %v605
    %v622 = vunpack.c.l.b16 %v606
    %v623 = vunpack.c.l.b16 %v607
    %v624 = vunpack.c.l.b16 %v608
    %v625 = vpack.c.b16 %v622, %v621
    %v626 = vpack.c.b16 %v624, %v623
    %629 = vmatprep.subr.bf16.mxu0 0
    %630 = vmatpush1.bf16.msra.mxu0 0
    %631 = vmatprep.subr.bf16.mxu0 0
    %632 = vmatpush1.bf16.msra.mxu0 0
    %633 = vmatprep.subr.bf16.mxu0 0
    %634 = vmatpush1.bf16.msra.mxu0 0
    %635 = vmatprep.subr.bf16.mxu0 0
    %636 = vmatpush1.bf16.msra.mxu0 0
    %637 = vmatprep.subr.bf16.mxu0 0
    %638 = vmatpush1.bf16.msra.mxu0 0
    %639 = vmatprep.subr.bf16.mxu0 0
    %640 = vmatpush1.bf16.msra.mxu0 0
    %641 = vmatprep.subr.bf16.mxu0 0
    %642 = vmatpush1.bf16.msra.mxu0 %v626
    %643 = vmatprep.subr.bf16.mxu0 0
    %644 = vmatpush1.bf16.msra.mxu0 %v625
    %645 = vmatprep.subr.bf16.mxu0 0
    %646 = vmatpush2.bf16.msra.mxu0 0
    %647 = vmatprep.subr.bf16.mxu0 0
    %648 = vmatpush2.bf16.msra.mxu0 0
    %649 = vmatprep.subr.bf16.mxu0 0
    %650 = vmatpush2.bf16.msra.mxu0 0
    %651 = vmatprep.subr.bf16.mxu0 0
    %652 = vmatpush2.bf16.msra.mxu0 0
    %653 = vmatprep.subr.bf16.mxu0 0
    %654 = vmatpush2.bf16.msra.mxu0 0
    %655 = vmatprep.subr.bf16.mxu0 0
    %656 = vmatpush2.bf16.msra.mxu0 0
    %657 = vmatprep.subr.bf16.mxu0 0
    %658 = vmatpush2.bf16.msra.mxu0 0
    %659 = vmatprep.subr.bf16.mxu0 0
    %660 = vmatpush2.bf16.msra.mxu0 0
    %661 = vmatprep.mubr.bf16.mxu0 0
    %662 = vmatmul.mubr.bf16.gmra.mxu0 %v242
    %v663 = vpop.f32.mrf.mxu0
    %v664 = vadd.f32 %v615, %v663
    %v665 = vpop.f32.mrf.mxu0
    %v666 = vpop.f32.mrf.mxu0
    %v667 = vadd.f32 %v615, %v666
    %v668 = vpop.f32.mrf.mxu0
    %669 = vdwg.mxu0
    %s670 = scalar_lea.vmem %s9, 16
    %v671 = vld [vmem:[%s670] sm:$0xf]
    %v672 = vld [vmem:[%s670 + $0x4] sm:$0xf]
    %v673 = vld [vmem:[%s670 + $0x8] sm:$0xf]
    %v674 = vld [vmem:[%s670 + $0xc] sm:$0xf]
    %s675 = scalar_lea.vmem %s10, 1
    %v676 = vld [vmem:[%s675] sm:$0x1]
    %v678 = vlaneseq
    %v679 = vshrl.u32 %v678, 7
    %v680 = vsub.s32 0, %v679
    %v681 = vrot.slane %v676, %v680
    %v687 = vunpack.c.l.b16 %v671
    %v688 = vunpack.c.l.b16 %v672
    %v689 = vunpack.c.l.b16 %v673
    %v690 = vunpack.c.l.b16 %v674
    %v691 = vpack.c.b16 %v688, %v687
    %v692 = vpack.c.b16 %v690, %v689
    %695 = vmatprep.subr.bf16.mxu0 0
    %696 = vmatpush1.bf16.msra.mxu0 0
    %697 = vmatprep.subr.bf16.mxu0 0
    %698 = vmatpush1.bf16.msra.mxu0 0
    %699 = vmatprep.subr.bf16.mxu0 0
    %700 = vmatpush1.bf16.msra.mxu0 0
    %701 = vmatprep.subr.bf16.mxu0 0
    %702 = vmatpush1.bf16.msra.mxu0 0
    %703 = vmatprep.subr.bf16.mxu0 0
    %704 = vmatpush1.bf16.msra.mxu0 0
    %705 = vmatprep.subr.bf16.mxu0 0
    %706 = vmatpush1.bf16.msra.mxu0 0
    %707 = vmatprep.subr.bf16.mxu0 0
    %708 = vmatpush1.bf16.msra.mxu0 %v692
    %709 = vmatprep.subr.bf16.mxu0 0
    %710 = vmatpush1.bf16.msra.mxu0 %v691
    %711 = vmatprep.subr.bf16.mxu0 0
    %712 = vmatpush2.bf16.msra.mxu0 0
    %713 = vmatprep.subr.bf16.mxu0 0
    %714 = vmatpush2.bf16.msra.mxu0 0
    %715 = vmatprep.subr.bf16.mxu0 0
    %716 = vmatpush2.bf16.msra.mxu0 0
    %717 = vmatprep.subr.bf16.mxu0 0
    %718 = vmatpush2.bf16.msra.mxu0 0
    %719 = vmatprep.subr.bf16.mxu0 0
    %720 = vmatpush2.bf16.msra.mxu0 0
    %721 = vmatprep.subr.bf16.mxu0 0
    %722 = vmatpush2.bf16.msra.mxu0 0
    %723 = vmatprep.subr.bf16.mxu0 0
    %724 = vmatpush2.bf16.msra.mxu0 0
    %725 = vmatprep.subr.bf16.mxu0 0
    %726 = vmatpush2.bf16.msra.mxu0 0
    %727 = vmatprep.mubr.bf16.mxu0 0
    %728 = vmatmul.mubr.bf16.gmra.mxu0 %v242
    %v729 = vpop.f32.mrf.mxu0
    %v730 = vadd.f32 %v681, %v729
    %v731 = vpop.f32.mrf.mxu0
    %v732 = vpop.f32.mrf.mxu0
    %v733 = vadd.f32 %v681, %v732
    %v734 = vpop.f32.mrf.mxu0
    %735 = vdwg.mxu0
    %v736 = vpack.c.bf16 %v601, %v598
    %v737 = vpack.c.bf16 %v667, %v664
    %v739 = vsel %vm415, %v736, 0
    %v742 = vsel %vm415, %v737, 0
    %744 = vmatprep.subr.bf16.mxu0 0
    %745 = vmatpush1.bf16.xpose.msra.mxu0 0
    %746 = vmatprep.subr.bf16.mxu0 0
    %747 = vmatpush1.bf16.xpose.msra.mxu0 0
    %748 = vmatprep.subr.bf16.mxu0 0
    %749 = vmatpush1.bf16.xpose.msra.mxu0 0
    %750 = vmatprep.subr.bf16.mxu0 0
    %751 = vmatpush1.bf16.xpose.msra.mxu0 0
    %752 = vmatprep.subr.bf16.mxu0 0
    %753 = vmatpush1.bf16.xpose.msra.mxu0 0
    %754 = vmatprep.subr.bf16.mxu0 0
    %755 = vmatpush1.bf16.xpose.msra.mxu0 0
    %756 = vmatprep.subr.bf16.mxu0 0
    %757 = vmatpush1.bf16.xpose.msra.mxu0 0
    %758 = vmatprep.subr.bf16.mxu0 0
    %759 = vmatpush1.bf16.xpose.msra.mxu0 %v742
    %760 = vmatprep.subr.bf16.mxu0 0
    %761 = vmatpush2.bf16.xpose.msra.mxu0 0
    %762 = vmatprep.subr.bf16.mxu0 0
    %763 = vmatpush2.bf16.xpose.msra.mxu0 0
    %764 = vmatprep.subr.bf16.mxu0 0
    %765 = vmatpush2.bf16.xpose.msra.mxu0 0
    %766 = vmatprep.subr.bf16.mxu0 0
    %767 = vmatpush2.bf16.xpose.msra.mxu0 0
    %768 = vmatprep.subr.bf16.mxu0 0
    %769 = vmatpush2.bf16.xpose.msra.mxu0 0
    %770 = vmatprep.subr.bf16.mxu0 0
    %771 = vmatpush2.bf16.xpose.msra.mxu0 0
    %772 = vmatprep.subr.bf16.mxu0 0
    %773 = vmatpush2.bf16.xpose.msra.mxu0 0
    %774 = vmatprep.subr.bf16.mxu0 0
    %775 = vmatpush2.bf16.xpose.msra.mxu0 0
    %776 = vmatprep.mubr.bf16.mxu0 0
    %777 = vmatmul.mubr.bf16.gmra.mxu0 %v739
    %v778 = vpop.f32.mrf.mxu0
    %v779 = vadd.f32 0.0, %v778
    %v780 = vpop.f32.mrf.mxu0
    %v781 = vpop.f32.mrf.mxu0
    %v782 = vadd.f32 0.0, %v781
    %v783 = vpop.f32.mrf.mxu0
    %784 = vdwg.mxu0
    %v785 = vmul.f32 %v779, 0.25
    %v786 = vmul.f32 %v782, 0.25
    %v787 = vadd.f32 %v785, %v215
    %v788 = vadd.f32 %v786, %v216
    %v789 = vsel %vm415, %v787, -inf
    %790 = vmax.xlane.f32.xlu0 %v789
    %v791 = vpop.xlane.xlu0 %790
    %v792 = vsel %vm415, %v788, -inf
    %793 = vmax.xlane.f32.xlu0 %v792
    %v794 = vpop.xlane.xlu0 %793
    %v795 = vsub.f32 %v787, %v791
    %v796 = vsub.f32 %v788, %v794
    %v797 = vmul.f32 %v795, 1.442695
    %v798 = vpow.pop %v797
    %v799 = vmul.f32 %v796, 1.442695
    %v800 = vpow.pop %v799
    %v801 = vsel %vm415, %v798, 0.0
    %802 = vadd.xlane.f32.xlu0 %v801
    %v803 = vpop.xlane.xlu0 %802
    %v804 = vsel %vm415, %v800, 0.0
    %805 = vadd.xlane.f32.xlu0 %v804
    %v806 = vpop.xlane.xlu0 %805
    %v807 = vrcp.pop %v803
    %v808 = vrcp.pop %v806
    %v809 = vmul.f32 %v798, %v807
    %v810 = vmul.f32 %v800, %v808
    %v811 = vpack.c.bf16 %v810, %v809
    %v812 = vpack.c.bf16 %v733, %v730
    %v814 = vsel %vm415, %v811, 0
    %816 = vmatprep.subr.bf16.mxu0 0
    %817 = vmatpush1.bf16.msra.mxu0 0
    %818 = vmatprep.subr.bf16.mxu0 0
    %819 = vmatpush1.bf16.msra.mxu0 0
    %820 = vmatprep.subr.bf16.mxu0 0
    %821 = vmatpush1.bf16.msra.mxu0 0
    %822 = vmatprep.subr.bf16.mxu0 0
    %823 = vmatpush1.bf16.msra.mxu0 0
    %824 = vmatprep.subr.bf16.mxu0 0
    %825 = vmatpush1.bf16.msra.mxu0 0
    %826 = vmatprep.subr.bf16.mxu0 0
    %827 = vmatpush1.bf16.msra.mxu0 0
    %828 = vmatprep.subr.bf16.mxu0 0
    %829 = vmatpush1.bf16.msra.mxu0 0
    %830 = vmatprep.subr.bf16.mxu0 0
    %831 = vmatpush1.bf16.msra.mxu0 %v812
    %832 = vmatprep.subr.bf16.mxu0 0
    %833 = vmatpush2.bf16.msra.mxu0 0
    %834 = vmatprep.subr.bf16.mxu0 0
    %835 = vmatpush2.bf16.msra.mxu0 0
    %836 = vmatprep.subr.bf16.mxu0 0
    %837 = vmatpush2.bf16.msra.mxu0 0
    %838 = vmatprep.subr.bf16.mxu0 0
    %839 = vmatpush2.bf16.msra.mxu0 0
    %840 = vmatprep.subr.bf16.mxu0 0
    %841 = vmatpush2.bf16.msra.mxu0 0
    %842 = vmatprep.subr.bf16.mxu0 0
    %843 = vmatpush2.bf16.msra.mxu0 0
    %844 = vmatprep.subr.bf16.mxu0 0
    %845 = vmatpush2.bf16.msra.mxu0 0
    %846 = vmatprep.subr.bf16.mxu0 0
    %847 = vmatpush2.bf16.msra.mxu0 0
    %848 = vmatprep.mubr.bf16.mxu0 0
    %849 = vmatmul.mubr.bf16.gmra.mxu0 %v814
    %v850 = vpop.f32.mrf.mxu0
    %v851 = vadd.f32 0.0, %v850
    %v852 = vpop.f32.mrf.mxu0
    %v853 = vpop.f32.mrf.mxu0
    %v854 = vadd.f32 0.0, %v853
    %v855 = vpop.f32.mrf.mxu0
    %856 = vdwg.mxu0
    %v857 = vpack.c.bf16 %v854, %v851
    %s858 = scalar_lea.vmem %s11, 8
    %v859 = vld [vmem:[%s858] sm:$0xf]
    %v860 = vld [vmem:[%s858 + $0x4] sm:$0xf]
    %v863 = vunpack.c.l.b16 %v859
    %v864 = vunpack.c.l.b16 %v860
    %v865 = vpack.c.b16 %v864, %v863
    %v868 = vsel %vm415, %v857, 0
    %870 = vmatprep.subr.bf16.mxu0 0
    %871 = vmatpush1.bf16.msra.mxu0 0
    %872 = vmatprep.subr.bf16.mxu0 0
    %873 = vmatpush1.bf16.msra.mxu0 0
    %874 = vmatprep.subr.bf16.mxu0 0
    %875 = vmatpush1.bf16.msra.mxu0 0
    %876 = vmatprep.subr.bf16.mxu0 0
    %877 = vmatpush1.bf16.msra.mxu0 0
    %878 = vmatprep.subr.bf16.mxu0 0
    %879 = vmatpush1.bf16.msra.mxu0 0
    %880 = vmatprep.subr.bf16.mxu0 0
    %881 = vmatpush1.bf16.msra.mxu0 0
    %882 = vmatprep.subr.bf16.mxu0 0
    %883 = vmatpush1.bf16.msra.mxu0 0
    %884 = vmatprep.subr.bf16.mxu0 0
    %885 = vmatpush1.bf16.msra.mxu0 %v865
    %886 = vmatprep.subr.bf16.mxu0 0
    %887 = vmatpush2.bf16.msra.mxu0 0
    %888 = vmatprep.subr.bf16.mxu0 0
    %889 = vmatpush2.bf16.msra.mxu0 0
    %890 = vmatprep.subr.bf16.mxu0 0
    %891 = vmatpush2.bf16.msra.mxu0 0
    %892 = vmatprep.subr.bf16.mxu0 0
    %893 = vmatpush2.bf16.msra.mxu0 0
    %894 = vmatprep.subr.bf16.mxu0 0
    %895 = vmatpush2.bf16.msra.mxu0 0
    %896 = vmatprep.subr.bf16.mxu0 0
    %897 = vmatpush2.bf16.msra.mxu0 0
    %898 = vmatprep.subr.bf16.mxu0 0
    %899 = vmatpush2.bf16.msra.mxu0 0
    %900 = vmatprep.subr.bf16.mxu0 0
    %901 = vmatpush2.bf16.msra.mxu0 0
    %902 = vmatprep.mubr.bf16.mxu0 0
    %903 = vmatmul.mubr.bf16.gmra.mxu0 %v868
    %v904 = vpop.f32.mrf.mxu0
    %v905 = vadd.f32 0.0, %v904
    %v906 = vpop.f32.mrf.mxu0
    %v907 = vpop.f32.mrf.mxu0
    %v908 = vadd.f32 0.0, %v907
    %v909 = vpop.f32.mrf.mxu0
    %910 = vdwg.mxu0
    %v913 = vunpack.c.l.b16 %v536
    %v914 = vunpack.c.l.b16 %v537
    %v915 = vpack.c.b16 %v914, %v913
    %v918 = vsel %vm415, %v535, 0
    %920 = vmatprep.subr.bf16.mxu0 0
    %921 = vmatpush1.bf16.msra.mxu0 0
    %922 = vmatprep.subr.bf16.mxu0 0
    %923 = vmatpush1.bf16.msra.mxu0 0
    %924 = vmatprep.subr.bf16.mxu0 0
    %925 = vmatpush1.bf16.msra.mxu0 0
    %926 = vmatprep.subr.bf16.mxu0 0
    %927 = vmatpush1.bf16.msra.mxu0 0
    %928 = vmatprep.subr.bf16.mxu0 0
    %929 = vmatpush1.bf16.msra.mxu0 0
    %930 = vmatprep.subr.bf16.mxu0 0
    %931 = vmatpush1.bf16.msra.mxu0 0
    %932 = vmatprep.subr.bf16.mxu0 0
    %933 = vmatpush1.bf16.msra.mxu0 0
    %934 = vmatprep.subr.bf16.mxu0 0
    %935 = vmatpush1.bf16.msra.mxu0 %v915
    %936 = vmatprep.subr.bf16.mxu0 0
    %937 = vmatpush2.bf16.msra.mxu0 0
    %938 = vmatprep.subr.bf16.mxu0 0
    %939 = vmatpush2.bf16.msra.mxu0 0
    %940 = vmatprep.subr.bf16.mxu0 0
    %941 = vmatpush2.bf16.msra.mxu0 0
    %942 = vmatprep.subr.bf16.mxu0 0
    %943 = vmatpush2.bf16.msra.mxu0 0
    %944 = vmatprep.subr.bf16.mxu0 0
    %945 = vmatpush2.bf16.msra.mxu0 0
    %946 = vmatprep.subr.bf16.mxu0 0
    %947 = vmatpush2.bf16.msra.mxu0 0
    %948 = vmatprep.subr.bf16.mxu0 0
    %949 = vmatpush2.bf16.msra.mxu0 0
    %950 = vmatprep.subr.bf16.mxu0 0
    %951 = vmatpush2.bf16.msra.mxu0 0
    %952 = vmatprep.mubr.bf16.mxu0 0
    %953 = vmatmul.mubr.bf16.gmra.mxu0 %v918
    %v954 = vpop.f32.mrf.mxu0
    %v955 = vadd.f32 %v905, %v954
    %v956 = vpop.f32.mrf.mxu0
    %v957 = vpop.f32.mrf.mxu0
    %v958 = vadd.f32 %v908, %v957
    %v959 = vpop.f32.mrf.mxu0
    %960 = vdwg.mxu0
    %v961 = vld [vmem:[%s12] sm:$0x1]
    %v963 = vlaneseq
    %v964 = vshrl.u32 %v963, 7
    %v965 = vsub.s32 0, %v964
    %v966 = vrot.slane %v961, %v965
    %v968 = vadd.f32 %v955, %v966
    %v969 = vadd.f32 %v958, %v966
    %v970 = vadd.f32 %v213, %v968
    %v971 = vadd.f32 %v214, %v969
    %v972 = vld [vmem:[%s13] sm:$0x1]
    %v973 = vld [vmem:[%s14] sm:$0x1]
    %v974 = vsel %vm171, %v970, 0.0
    %975 = vadd.xlane.f32.xlu0 %v974
    %v976 = vpop.xlane.xlu0 %975
    %v977 = vsel %vm171, %v971, 0.0
    %978 = vadd.xlane.f32.xlu0 %v977
    %v979 = vpop.xlane.xlu0 %978
    %v980 = vmul.f32 %v976, %v178
    %v981 = vmul.f32 %v979, %v178
    %v982 = vsub.f32 %v970, %v980
    %v983 = vsub.f32 %v971, %v981
    %v984 = vmul.f32 %v982, %v982
    %v985 = vmul.f32 %v983, %v983
    %v986 = vsel %vm171, %v984, 0.0
    %987 = vadd.xlane.f32.xlu0 %v986
    %v988 = vpop.xlane.xlu0 %987
    %v989 = vsel %vm171, %v985, 0.0
    %990 = vadd.xlane.f32.xlu0 %v989
    %v991 = vpop.xlane.xlu0 %990
    %v992 = vmul.f32 %v988, %v178
    %v993 = vmul.f32 %v991, %v178
    %v994 = vadd.f32 %v992, 1e-05
    %v995 = vadd.f32 %v993, 1e-05
    %v996 = vrsqrt.pop %v994
    %v997 = vrsqrt.pop %v995
    %v998 = vmul.f32 %v982, %v996
    %v999 = vmul.f32 %v983, %v997
    %v1001 = vlaneseq
    %v1002 = vshrl.u32 %v1001, 7
    %v1003 = vsub.s32 0, %v1002
    %v1004 = vrot.slane %v972, %v1003
    %v1006 = vmul.f32 %v998, %v1004
    %v1007 = vmul.f32 %v999, %v1004
    %v1009 = vlaneseq
    %v1010 = vshrl.u32 %v1009, 7
    %v1011 = vsub.s32 0, %v1010
    %v1012 = vrot.slane %v973, %v1011
    %v1014 = vadd.f32 %v1006, %v1012
    %v1015 = vadd.f32 %v1007, %v1012
    %v1016 = vpack.c.bf16 %v1015, %v1014
    %v1017 = vld [vmem:[%s15] sm:$0xf]
    %v1018 = vld [vmem:[%s15 + $0x4] sm:$0xf]
    %v1019 = vld [vmem:[%s15 + $0x8] sm:$0xf]
    %v1020 = vld [vmem:[%s15 + $0xc] sm:$0xf]
    %v1021 = vld [vmem:[%s16] sm:$0x1]
    %v1023 = vlaneseq
    %v1024 = vshrl.u32 %v1023, 7
    %v1025 = vsub.s32 0, %v1024
    %v1026 = vrot.slane %v1021, %v1025
    %v1032 = vunpack.c.l.b16 %v1017
    %v1033 = vunpack.c.l.b16 %v1018
    %v1034 = vunpack.c.l.b16 %v1019
    %v1035 = vunpack.c.l.b16 %v1020
    %v1036 = vpack.c.b16 %v1033, %v1032
    %v1037 = vpack.c.b16 %v1035, %v1034
    %v1041 = vsel %vm171, %v1016, 0
    %1043 = vmatprep.subr.bf16.mxu0 0
    %1044 = vmatpush1.bf16.msra.mxu0 0
    %1045 = vmatprep.subr.bf16.mxu0 0
    %1046 = vmatpush1.bf16.msra.mxu0 0
    %1047 = vmatprep.subr.bf16.mxu0 0
    %1048 = vmatpush1.bf16.msra.mxu0 0
    %1049 = vmatprep.subr.bf16.mxu0 0
    %1050 = vmatpush1.bf16.msra.mxu0 0
    %1051 = vmatprep.subr.bf16.mxu0 0
    %1052 = vmatpush1.bf16.msra.mxu0 0
    %1053 = vmatprep.subr.bf16.mxu0 0
    %1054 = vmatpush1.bf16.msra.mxu0 0
    %1055 = vmatprep.subr.bf16.mxu0 0
    %1056 = vmatpush1.bf16.msra.mxu0 %v1037
    %1057 = vmatprep.subr.bf16.mxu0 0
    %1058 = vmatpush1.bf16.msra.mxu0 %v1036
    %1059 = vmatprep.subr.bf16.mxu0 0
    %1060 = vmatpush2.bf16.msra.mxu0 0
    %1061 = vmatprep.subr.bf16.mxu0 0
    %1062 = vmatpush2.bf16.msra.mxu0 0
    %1063 = vmatprep.subr.bf16.mxu0 0
    %1064 = vmatpush2.bf16.msra.mxu0 0
    %1065 = vmatprep.subr.bf16.mxu0 0
    %1066 = vmatpush2.bf16.msra.mxu0 0
    %1067 = vmatprep.subr.bf16.mxu0 0
    %1068 = vmatpush2.bf16.msra.mxu0 0
    %1069 = vmatprep.subr.bf16.mxu0 0
    %1070 = vmatpush2.bf16.msra.mxu0 0
    %1071 = vmatprep.subr.bf16.mxu0 0
    %1072 = vmatpush2.bf16.msra.mxu0 0
    %1073 = vmatprep.subr.bf16.mxu0 0
    %1074 = vmatpush2.bf16.msra.mxu0 0
    %1075 = vmatprep.mubr.bf16.mxu0 0
    %1076 = vmatmul.mubr.bf16.gmra.mxu0 %v1041
    %v1077 = vpop.f32.mrf.mxu0
    %v1078 = vadd.f32 %v1026, %v1077
    %v1079 = vpop.f32.mrf.mxu0
    %v1080 = vpop.f32.mrf.mxu0
    %v1081 = vadd.f32 %v1026, %v1080
    %v1082 = vpop.f32.mrf.mxu0
    %1083 = vdwg.mxu0
    %v1084 = vmul.f32 %v1078, %v1078
    %v1085 = vmul.f32 %v1081, %v1081
    %v1086 = vmul.f32 %v1078, %v1084
    %v1087 = vmul.f32 %v1081, %v1085
    %v1088 = vmul.f32 %v1086, 0.044715
    %v1089 = vmul.f32 %v1087, 0.044715
    %v1090 = vadd.f32 %v1078, %v1088
    %v1091 = vadd.f32 %v1081, %v1089
    %v1092 = vmul.f32 %v1090, 0.7978846
    %v1093 = vmul.f32 %v1091, 0.7978846
    %v1094 = vtanh.pop %v1092
    %v1095 = vtanh.pop %v1093
    %v1096 = vadd.f32 %v1094, 1.0
    %v1097 = vadd.f32 %v1095, 1.0
    %v1098 = vmul.f32 %v1096, 0.5
    %v1099 = vmul.f32 %v1097, 0.5
    %v1100 = vmul.f32 %v1078, %v1098
    %v1101 = vmul.f32 %v1081, %v1099
    %v1102 = vpack.c.bf16 %v1101, %v1100
    %v1103 = vld [vmem:[%s17] sm:$0xf]
    %v1104 = vld [vmem:[%s17 + $0x4] sm:$0xf]
    %v1105 = vld [vmem:[%s17 + $0x8] sm:$0xf]
    %v1106 = vld [vmem:[%s17 + $0xc] sm:$0xf]
    %v1107 = vld [vmem:[%s17 + $0x10] sm:$0xf]
    %v1108 = vld [vmem:[%s17 + $0x14] sm:$0xf]
    %v1109 = vld [vmem:[%s17 + $0x18] sm:$0xf]
    %v1110 = vld [vmem:[%s17 + $0x1c] sm:$0xf]
    %v1111 = vld [vmem:[%s18] sm:$0x1]
    %v1113 = vlaneseq
    %v1114 = vshrl.u32 %v1113, 7
    %v1115 = vsub.s32 0, %v1114
    %v1116 = vrot.slane %v1111, %v1115
    %v1126 = vunpack.c.l.b16 %v1103
    %v1127 = vunpack.c.l.b16 %v1104
    %v1128 = vunpack.c.l.b16 %v1105
    %v1129 = vunpack.c.l.b16 %v1106
    %v1130 = vunpack.c.l.b16 %v1107
    %v1131 = vunpack.c.l.b16 %v1108
    %v1132 = vunpack.c.l.b16 %v1109
    %v1133 = vunpack.c.l.b16 %v1110
    %v1134 = vpack.c.b16 %v1127, %v1126
    %v1135 = vpack.c.b16 %v1129, %v1128
    %v1136 = vpack.c.b16 %v1131, %v1130
    %v1137 = vpack.c.b16 %v1133, %v1132
    %v1143 = vsel %vm124, %v1102, 0
    %1145 = vmatprep.subr.bf16.mxu0 0
    %1146 = vmatpush1.bf16.msra.mxu0 0
    %1147 = vmatprep.subr.bf16.mxu0 0
    %1148 = vmatpush1.bf16.msra.mxu0 0
    %1149 = vmatprep.subr.bf16.mxu0 0
    %1150 = vmatpush1.bf16.msra.mxu0 0
    %1151 = vmatprep.subr.bf16.mxu0 0
    %1152 = vmatpush1.bf16.msra.mxu0 0
    %1153 = vmatprep.subr.bf16.mxu0 0
    %1154 = vmatpush1.bf16.msra.mxu0 %v1137
    %1155 = vmatprep.subr.bf16.mxu0 0
    %1156 = vmatpush1.bf16.msra.mxu0 %v1136
    %1157 = vmatprep.subr.bf16.mxu0 0
    %1158 = vmatpush1.bf16.msra.mxu0 %v1135
    %1159 = vmatprep.subr.bf16.mxu0 0
    %1160 = vmatpush1.bf16.msra.mxu0 %v1134
    %1161 = vmatprep.subr.bf16.mxu0 0
    %1162 = vmatpush2.bf16.msra.mxu0 0
    %1163 = vmatprep.subr.bf16.mxu0 0
    %1164 = vmatpush2.bf16.msra.mxu0 0
    %1165 = vmatprep.subr.bf16.mxu0 0
    %1166 = vmatpush2.bf16.msra.mxu0 0
    %1167 = vmatprep.subr.bf16.mxu0 0
    %1168 = vmatpush2.bf16.msra.mxu0 0
    %1169 = vmatprep.subr.bf16.mxu0 0
    %1170 = vmatpush2.bf16.msra.mxu0 0
    %1171 = vmatprep.subr.bf16.mxu0 0
    %1172 = vmatpush2.bf16.msra.mxu0 0
    %1173 = vmatprep.subr.bf16.mxu0 0
    %1174 = vmatpush2.bf16.msra.mxu0 0
    %1175 = vmatprep.subr.bf16.mxu0 0
    %1176 = vmatpush2.bf16.msra.mxu0 0
    %1177 = vmatprep.mubr.bf16.mxu0 0
    %1178 = vmatmul.mubr.bf16.gmra.mxu0 %v1143
    %v1179 = vpop.f32.mrf.mxu0
    %v1180 = vadd.f32 %v1116, %v1179
    %v1181 = vpop.f32.mrf.mxu0
    %v1182 = vpop.f32.mrf.mxu0
    %v1183 = vadd.f32 %v1116, %v1182
    %v1184 = vpop.f32.mrf.mxu0
    %1185 = vdwg.mxu0
    %v1186 = vadd.f32 %v1014, %v1180
    %v1187 = vadd.f32 %v1015, %v1183
    %v1188 = vld [vmem:[%s19] sm:$0x1]
    %v1189 = vld [vmem:[%s20] sm:$0x1]
    %v1190 = vsel %vm171, %v1186, 0.0
    %1191 = vadd.xlane.f32.xlu0 %v1190
    %v1192 = vpop.xlane.xlu0 %1191
    %v1193 = vsel %vm171, %v1187, 0.0
    %1194 = vadd.xlane.f32.xlu0 %v1193
    %v1195 = vpop.xlane.xlu0 %1194
    %v1196 = vmul.f32 %v1192, %v178
    %v1197 = vmul.f32 %v1195, %v178
    %v1198 = vsub.f32 %v1186, %v1196
    %v1199 = vsub.f32 %v1187, %v1197
    %v1200 = vmul.f32 %v1198, %v1198
    %v1201 = vmul.f32 %v1199, %v1199
    %v1202 = vsel %vm171, %v1200, 0.0
    %1203 = vadd.xlane.f32.xlu0 %v1202
    %v1204 = vpop.xlane.xlu0 %1203
    %v1205 = vsel %vm171, %v1201, 0.0
    %1206 = vadd.xlane.f32.xlu0 %v1205
    %v1207 = vpop.xlane.xlu0 %1206
    %v1208 = vmul.f32 %v1204, %v178
    %v1209 = vmul.f32 %v1207, %v178
    %v1210 = vadd.f32 %v1208, 1e-05
    %v1211 = vadd.f32 %v1209, 1e-05
    %v1212 = vrsqrt.pop %v1210
    %v1213 = vrsqrt.pop %v1211
    %v1214 = vmul.f32 %v1198, %v1212
    %v1215 = vmul.f32 %v1199, %v1213
    %v1217 = vlaneseq
    %v1218 = vshrl.u32 %v1217, 7
    %v1219 = vsub.s32 0, %v1218
    %v1220 = vrot.slane %v1188, %v1219
    %v1222 = vmul.f32 %v1214, %v1220
    %v1223 = vmul.f32 %v1215, %v1220
    %v1225 = vlaneseq
    %v1226 = vshrl.u32 %v1225, 7
    %v1227 = vsub.s32 0, %v1226
    %v1228 = vrot.slane %v1189, %v1227
    %v1230 = vadd.f32 %v1222, %v1228
    %v1231 = vadd.f32 %v1223, %v1228
    %v1232 = vpack.c.bf16 %v1231, %v1230
    %s1233 = scalar_lea.vmem %s5, 32
    %v1234 = vld [vmem:[%s1233] sm:$0xf]
    %v1235 = vld [vmem:[%s1233 + $0x4] sm:$0xf]
    %v1236 = vld [vmem:[%s1233 + $0x8] sm:$0xf]
    %v1237 = vld [vmem:[%s1233 + $0xc] sm:$0xf]
    %s1238 = scalar_lea.vmem %s6, 2
    %v1239 = vld [vmem:[%s1238] sm:$0x1]
    %v1241 = vlaneseq
    %v1242 = vshrl.u32 %v1241, 7
    %v1243 = vsub.s32 0, %v1242
    %v1244 = vrot.slane %v1239, %v1243
    %v1250 = vunpack.c.l.b16 %v1234
    %v1251 = vunpack.c.l.b16 %v1235
    %v1252 = vunpack.c.l.b16 %v1236
    %v1253 = vunpack.c.l.b16 %v1237
    %v1254 = vpack.c.b16 %v1251, %v1250
    %v1255 = vpack.c.b16 %v1253, %v1252
    %v1259 = vsel %vm171, %v1232, 0
    %1261 = vmatprep.subr.bf16.mxu0 0
    %1262 = vmatpush1.bf16.msra.mxu0 0
    %1263 = vmatprep.subr.bf16.mxu0 0
    %1264 = vmatpush1.bf16.msra.mxu0 0
    %1265 = vmatprep.subr.bf16.mxu0 0
    %1266 = vmatpush1.bf16.msra.mxu0 0
    %1267 = vmatprep.subr.bf16.mxu0 0
    %1268 = vmatpush1.bf16.msra.mxu0 0
    %1269 = vmatprep.subr.bf16.mxu0 0
    %1270 = vmatpush1.bf16.msra.mxu0 0
    %1271 = vmatprep.subr.bf16.mxu0 0
    %1272 = vmatpush1.bf16.msra.mxu0 0
    %1273 = vmatprep.subr.bf16.mxu0 0
    %1274 = vmatpush1.bf16.msra.mxu0 %v1255
    %1275 = vmatprep.subr.bf16.mxu0 0
    %1276 = vmatpush1.bf16.msra.mxu0 %v1254
    %1277 = vmatprep.subr.bf16.mxu0 0
    %1278 = vmatpush2.bf16.msra.mxu0 0
    %1279 = vmatprep.subr.bf16.mxu0 0
    %1280 = vmatpush2.bf16.msra.mxu0 0
    %1281 = vmatprep.subr.bf16.mxu0 0
    %1282 = vmatpush2.bf16.msra.mxu0 0
    %1283 = vmatprep.subr.bf16.mxu0 0
    %1284 = vmatpush2.bf16.msra.mxu0 0
    %1285 = vmatprep.subr.bf16.mxu0 0
    %1286 = vmatpush2.bf16.msra.mxu0 0
    %1287 = vmatprep.subr.bf16.mxu0 0
    %1288 = vmatpush2.bf16.msra.mxu0 0
    %1289 = vmatprep.subr.bf16.mxu0 0
    %1290 = vmatpush2.bf16.msra.mxu0 0
    %1291 = vmatprep.subr.bf16.mxu0 0
    %1292 = vmatpush2.bf16.msra.mxu0 0
    %1293 = vmatprep.mubr.bf16.mxu0 0
    %1294 = vmatmul.mubr.bf16.gmra.mxu0 %v1259
    %v1295 = vpop.f32.mrf.mxu0
    %v1296 = vadd.f32 %v1244, %v1295
    %v1297 = vpop.f32.mrf.mxu0
    %v1298 = vpop.f32.mrf.mxu0
    %v1299 = vadd.f32 %v1244, %v1298
    %v1300 = vpop.f32.mrf.mxu0
    %1301 = vdwg.mxu0
    %s1302 = scalar_lea.vmem %s7, 32
    %v1303 = vld [vmem:[%s1302] sm:$0xf]
    %v1304 = vld [vmem:[%s1302 + $0x4] sm:$0xf]
    %v1305 = vld [vmem:[%s1302 + $0x8] sm:$0xf]
    %v1306 = vld [vmem:[%s1302 + $0xc] sm:$0xf]
    %s1307 = scalar_lea.vmem %s8, 2
    %v1308 = vld [vmem:[%s1307] sm:$0x1]
    %v1310 = vlaneseq
    %v1311 = vshrl.u32 %v1310, 7
    %v1312 = vsub.s32 0, %v1311
    %v1313 = vrot.slane %v1308, %v1312
    %v1319 = vunpack.c.l.b16 %v1303
    %v1320 = vunpack.c.l.b16 %v1304
    %v1321 = vunpack.c.l.b16 %v1305
    %v1322 = vunpack.c.l.b16 %v1306
    %v1323 = vpack.c.b16 %v1320, %v1319
    %v1324 = vpack.c.b16 %v1322, %v1321
    %1327 = vmatprep.subr.bf16.mxu0 0
    %1328 = vmatpush1.bf16.msra.mxu0 0
    %1329 = vmatprep.subr.bf16.mxu0 0
    %1330 = vmatpush1.bf16.msra.mxu0 0
    %1331 = vmatprep.subr.bf16.mxu0 0
    %1332 = vmatpush1.bf16.msra.mxu0 0
    %1333 = vmatprep.subr.bf16.mxu0 0
    %1334 = vmatpush1.bf16.msra.mxu0 0
    %1335 = vmatprep.subr.bf16.mxu0 0
    %1336 = vmatpush1.bf16.msra.mxu0 0
    %1337 = vmatprep.subr.bf16.mxu0 0
    %1338 = vmatpush1.bf16.msra.mxu0 0
    %1339 = vmatprep.subr.bf16.mxu0 0
    %1340 = vmatpush1.bf16.msra.mxu0 %v1324
    %1341 = vmatprep.subr.bf16.mxu0 0
    %1342 = vmatpush1.bf16.msra.mxu0 %v1323
    %1343 = vmatprep.subr.bf16.mxu0 0
    %1344 = vmatpush2.bf16.msra.mxu0 0
    %1345 = vmatprep.subr.bf16.mxu0 0
    %1346 = vmatpush2.bf16.msra.mxu0 0
    %1347 = vmatprep.subr.bf16.mxu0 0
    %1348 = vmatpush2.bf16.msra.mxu0 0
    %1349 = vmatprep.subr.bf16.mxu0 0
    %1350 = vmatpush2.bf16.msra.mxu0 0
    %1351 = vmatprep.subr.bf16.mxu0 0
    %1352 = vmatpush2.bf16.msra.mxu0 0
    %1353 = vmatprep.subr.bf16.mxu0 0
    %1354 = vmatpush2.bf16.msra.mxu0 0
    %1355 = vmatprep.subr.bf16.mxu0 0
    %1356 = vmatpush2.bf16.msra.mxu0 0
    %1357 = vmatprep.subr.bf16.mxu0 0
    %1358 = vmatpush2.bf16.msra.mxu0 0
    %1359 = vmatprep.mubr.bf16.mxu0 0
    %1360 = vmatmul.mubr.bf16.gmra.mxu0 %v1259
    %v1361 = vpop.f32.mrf.mxu0
    %v1362 = vadd.f32 %v1313, %v1361
    %v1363 = vpop.f32.mrf.mxu0
    %v1364 = vpop.f32.mrf.mxu0
    %v1365 = vadd.f32 %v1313, %v1364
    %v1366 = vpop.f32.mrf.mxu0
    %1367 = vdwg.mxu0
    %s1368 = scalar_lea.vmem %s9, 32
    %v1369 = vld [vmem:[%s1368] sm:$0xf]
    %v1370 = vld [vmem:[%s1368 + $0x4] sm:$0xf]
    %v1371 = vld [vmem:[%s1368 + $0x8] sm:$0xf]
    %v1372 = vld [vmem:[%s1368 + $0xc] sm:$0xf]
    %s1373 = scalar_lea.vmem %s10, 2
    %v1374 = vld [vmem:[%s1373] sm:$0x1]
    %v1376 = vlaneseq
    %v1377 = vshrl.u32 %v1376, 7
    %v1378 = vsub.s32 0, %v1377
    %v1379 = vrot.slane %v1374, %v1378
    %v1385 = vunpack.c.l.b16 %v1369
    %v1386 = vunpack.c.l.b16 %v1370
    %v1387 = vunpack.c.l.b16 %v1371
    %v1388 = vunpack.c.l.b16 %v1372
    %v1389 = vpack.c.b16 %v1386, %v1385
    %v1390 = vpack.c.b16 %v1388, %v1387
    %1393 = vmatprep.subr.bf16.mxu0 0
    %1394 = vmatpush1.bf16.msra.mxu0 0
    %1395 = vmatprep.subr.bf16.mxu0 0
    %1396 = vmatpush1.bf16.msra.mxu0 0
    %1397 = vmatprep.subr.bf16.mxu0 0
    %1398 = vmatpush1.bf16.msra.mxu0 0
    %1399 = vmatprep.subr.bf16.mxu0 0
    %1400 = vmatpush1.bf16.msra.mxu0 0
    %1401 = vmatprep.subr.bf16.mxu0 0
    %1402 = vmatpush1.bf16.msra.mxu0 0
    %1403 = vmatprep.subr.bf16.mxu0 0
    %1404 = vmatpush1.bf16.msra.mxu0 0
    %1405 = vmatprep.subr.bf16.mxu0 0
    %1406 = vmatpush1.bf16.msra.mxu0 %v1390
    %1407 = vmatprep.subr.bf16.mxu0 0
    %1408 = vmatpush1.bf16.msra.mxu0 %v1389
    %1409 = vmatprep.subr.bf16.mxu0 0
    %1410 = vmatpush2.bf16.msra.mxu0 0
    %1411 = vmatprep.subr.bf16.mxu0 0
    %1412 = vmatpush2.bf16.msra.mxu0 0
    %1413 = vmatprep.subr.bf16.mxu0 0
    %1414 = vmatpush2.bf16.msra.mxu0 0
    %1415 = vmatprep.subr.bf16.mxu0 0
    %1416 = vmatpush2.bf16.msra.mxu0 0
    %1417 = vmatprep.subr.bf16.mxu0 0
    %1418 = vmatpush2.bf16.msra.mxu0 0
    %1419 = vmatprep.subr.bf16.mxu0 0
    %1420 = vmatpush2.bf16.msra.mxu0 0
    %1421 = vmatprep.subr.bf16.mxu0 0
    %1422 = vmatpush2.bf16.msra.mxu0 0
    %1423 = vmatprep.subr.bf16.mxu0 0
    %1424 = vmatpush2.bf16.msra.mxu0 0
    %1425 = vmatprep.mubr.bf16.mxu0 0
    %1426 = vmatmul.mubr.bf16.gmra.mxu0 %v1259
    %v1427 = vpop.f32.mrf.mxu0
    %v1428 = vadd.f32 %v1379, %v1427
    %v1429 = vpop.f32.mrf.mxu0
    %v1430 = vpop.f32.mrf.mxu0
    %v1431 = vadd.f32 %v1379, %v1430
    %v1432 = vpop.f32.mrf.mxu0
    %1433 = vdwg.mxu0
    %v1434 = vpack.c.bf16 %v1299, %v1296
    %v1435 = vpack.c.bf16 %v1365, %v1362
    %v1437 = vsel %vm415, %v1434, 0
    %v1440 = vsel %vm415, %v1435, 0
    %1442 = vmatprep.subr.bf16.mxu0 0
    %1443 = vmatpush1.bf16.xpose.msra.mxu0 0
    %1444 = vmatprep.subr.bf16.mxu0 0
    %1445 = vmatpush1.bf16.xpose.msra.mxu0 0
    %1446 = vmatprep.subr.bf16.mxu0 0
    %1447 = vmatpush1.bf16.xpose.msra.mxu0 0
    %1448 = vmatprep.subr.bf16.mxu0 0
    %1449 = vmatpush1.bf16.xpose.msra.mxu0 0
    %1450 = vmatprep.subr.bf16.mxu0 0
    %1451 = vmatpush1.bf16.xpose.msra.mxu0 0
    %1452 = vmatprep.subr.bf16.mxu0 0
    %1453 = vmatpush1.bf16.xpose.msra.mxu0 0
    %1454 = vmatprep.subr.bf16.mxu0 0
    %1455 = vmatpush1.bf16.xpose.msra.mxu0 0
    %1456 = vmatprep.subr.bf16.mxu0 0
    %1457 = vmatpush1.bf16.xpose.msra.mxu0 %v1440
    %1458 = vmatprep.subr.bf16.mxu0 0
    %1459 = vmatpush2.bf16.xpose.msra.mxu0 0
    %1460 = vmatprep.subr.bf16.mxu0 0
    %1461 = vmatpush2.bf16.xpose.msra.mxu0 0
    %1462 = vmatprep.subr.bf16.mxu0 0
    %1463 = vmatpush2.bf16.xpose.msra.mxu0 0
    %1464 = vmatprep.subr.bf16.mxu0 0
    %1465 = vmatpush2.bf16.xpose.msra.mxu0 0
    %1466 = vmatprep.subr.bf16.mxu0 0
    %1467 = vmatpush2.bf16.xpose.msra.mxu0 0
    %1468 = vmatprep.subr.bf16.mxu0 0
    %1469 = vmatpush2.bf16.xpose.msra.mxu0 0
    %1470 = vmatprep.subr.bf16.mxu0 0
    %1471 = vmatpush2.bf16.xpose.msra.mxu0 0
    %1472 = vmatprep.subr.bf16.mxu0 0
    %1473 = vmatpush2.bf16.xpose.msra.mxu0 0
    %1474 = vmatprep.mubr.bf16.mxu0 0
    %1475 = vmatmul.mubr.bf16.gmra.mxu0 %v1437
    %v1476 = vpop.f32.mrf.mxu0
    %v1477 = vadd.f32 0.0, %v1476
    %v1478 = vpop.f32.mrf.mxu0
    %v1479 = vpop.f32.mrf.mxu0
    %v1480 = vadd.f32 0.0, %v1479
    %v1481 = vpop.f32.mrf.mxu0
    %1482 = vdwg.mxu0
    %v1483 = vmul.f32 %v1477, 0.25
    %v1484 = vmul.f32 %v1480, 0.25
    %v1485 = vadd.f32 %v1483, %v215
    %v1486 = vadd.f32 %v1484, %v216
    %v1487 = vsel %vm415, %v1485, -inf
    %1488 = vmax.xlane.f32.xlu0 %v1487
    %v1489 = vpop.xlane.xlu0 %1488
    %v1490 = vsel %vm415, %v1486, -inf
    %1491 = vmax.xlane.f32.xlu0 %v1490
    %v1492 = vpop.xlane.xlu0 %1491
    %v1493 = vsub.f32 %v1485, %v1489
    %v1494 = vsub.f32 %v1486, %v1492
    %v1495 = vmul.f32 %v1493, 1.442695
    %v1496 = vpow.pop %v1495
    %v1497 = vmul.f32 %v1494, 1.442695
    %v1498 = vpow.pop %v1497
    %v1499 = vsel %vm415, %v1496, 0.0
    %1500 = vadd.xlane.f32.xlu0 %v1499
    %v1501 = vpop.xlane.xlu0 %1500
    %v1502 = vsel %vm415, %v1498, 0.0
    %1503 = vadd.xlane.f32.xlu0 %v1502
    %v1504 = vpop.xlane.xlu0 %1503
    %v1505 = vrcp.pop %v1501
    %v1506 = vrcp.pop %v1504
    %v1507 = vmul.f32 %v1496, %v1505
    %v1508 = vmul.f32 %v1498, %v1506
    %v1509 = vpack.c.bf16 %v1508, %v1507
    %v1510 = vpack.c.bf16 %v1431, %v1428
    %v1512 = vsel %vm415, %v1509, 0
    %1514 = vmatprep.subr.bf16.mxu0 0
    %1515 = vmatpush1.bf16.msra.mxu0 0
    %1516 = vmatprep.subr.bf16.mxu0 0
    %1517 = vmatpush1.bf16.msra.mxu0 0
    %1518 = vmatprep.subr.bf16.mxu0 0
    %1519 = vmatpush1.bf16.msra.mxu0 0
    %1520 = vmatprep.subr.bf16.mxu0 0
    %1521 = vmatpush1.bf16.msra.mxu0 0
    %1522 = vmatprep.subr.bf16.mxu0 0
    %1523 = vmatpush1.bf16.msra.mxu0 0
    %1524 = vmatprep.subr.bf16.mxu0 0
    %1525 = vmatpush1.bf16.msra.mxu0 0
    %1526 = vmatprep.subr.bf16.mxu0 0
    %1527 = vmatpush1.bf16.msra.mxu0 0
    %1528 = vmatprep.subr.bf16.mxu0 0
    %1529 = vmatpush1.bf16.msra.mxu0 %v1510
    %1530 = vmatprep.subr.bf16.mxu0 0
    %1531 = vmatpush2.bf16.msra.mxu0 0
    %1532 = vmatprep.subr.bf16.mxu0 0
    %1533 = vmatpush2.bf16.msra.mxu0 0
    %1534 = vmatprep.subr.bf16.mxu0 0
    %1535 = vmatpush2.bf16.msra.mxu0 0
    %1536 = vmatprep.subr.bf16.mxu0 0
    %1537 = vmatpush2.bf16.msra.mxu0 0
    %1538 = vmatprep.subr.bf16.mxu0 0
    %1539 = vmatpush2.bf16.msra.mxu0 0
    %1540 = vmatprep.subr.bf16.mxu0 0
    %1541 = vmatpush2.bf16.msra.mxu0 0
    %1542 = vmatprep.subr.bf16.mxu0 0
    %1543 = vmatpush2.bf16.msra.mxu0 0
    %1544 = vmatprep.subr.bf16.mxu0 0
    %1545 = vmatpush2.bf16.msra.mxu0 0
    %1546 = vmatprep.mubr.bf16.mxu0 0
    %1547 = vmatmul.mubr.bf16.gmra.mxu0 %v1512
    %v1548 = vpop.f32.mrf.mxu0
    %v1549 = vadd.f32 0.0, %v1548
    %v1550 = vpop.f32.mrf.mxu0
    %v1551 = vpop.f32.mrf.mxu0
    %v1552 = vadd.f32 0.0, %v1551
    %v1553 = vpop.f32.mrf.mxu0
    %1554 = vdwg.mxu0
    %v1555 = vpack.c.bf16 %v1552, %v1549
    %s1556 = scalar_lea.vmem %s11, 16
    %v1557 = vld [vmem:[%s1556] sm:$0xf]
    %v1558 = vld [vmem:[%s1556 + $0x4] sm:$0xf]
    %s1559 = scalar_lea.vmem %s5, 48
    %v1560 = vld [vmem:[%s1559] sm:$0xf]
    %v1561 = vld [vmem:[%s1559 + $0x4] sm:$0xf]
    %v1562 = vld [vmem:[%s1559 + $0x8] sm:$0xf]
    %v1563 = vld [vmem:[%s1559 + $0xc] sm:$0xf]
    %s1564 = scalar_lea.vmem %s6, 3
    %v1565 = vld [vmem:[%s1564] sm:$0x1]
    %v1567 = vlaneseq
    %v1568 = vshrl.u32 %v1567, 7
    %v1569 = vsub.s32 0, %v1568
    %v1570 = vrot.slane %v1565, %v1569
    %v1576 = vunpack.c.l.b16 %v1560
    %v1577 = vunpack.c.l.b16 %v1561
    %v1578 = vunpack.c.l.b16 %v1562
    %v1579 = vunpack.c.l.b16 %v1563
    %v1580 = vpack.c.b16 %v1577, %v1576
    %v1581 = vpack.c.b16 %v1579, %v1578
    %1584 = vmatprep.subr.bf16.mxu0 0
    %1585 = vmatpush1.bf16.msra.mxu0 0
    %1586 = vmatprep.subr.bf16.mxu0 0
    %1587 = vmatpush1.bf16.msra.mxu0 0
    %1588 = vmatprep.subr.bf16.mxu0 0
    %1589 = vmatpush1.bf16.msra.mxu0 0
    %1590 = vmatprep.subr.bf16.mxu0 0
    %1591 = vmatpush1.bf16.msra.mxu0 0
    %1592 = vmatprep.subr.bf16.mxu0 0
    %1593 = vmatpush1.bf16.msra.mxu0 0
    %1594 = vmatprep.subr.bf16.mxu0 0
    %1595 = vmatpush1.bf16.msra.mxu0 0
    %1596 = vmatprep.subr.bf16.mxu0 0
    %1597 = vmatpush1.bf16.msra.mxu0 %v1581
    %1598 = vmatprep.subr.bf16.mxu0 0
    %1599 = vmatpush1.bf16.msra.mxu0 %v1580
    %1600 = vmatprep.subr.bf16.mxu0 0
    %1601 = vmatpush2.bf16.msra.mxu0 0
    %1602 = vmatprep.subr.bf16.mxu0 0
    %1603 = vmatpush2.bf16.msra.mxu0 0
    %1604 = vmatprep.subr.bf16.mxu0 0
    %1605 = vmatpush2.bf16.msra.mxu0 0
    %1606 = vmatprep.subr.bf16.mxu0 0
    %1607 = vmatpush2.bf16.msra.mxu0 0
    %1608 = vmatprep.subr.bf16.mxu0 0
    %1609 = vmatpush2.bf16.msra.mxu0 0
    %1610 = vmatprep.subr.bf16.mxu0 0
    %1611 = vmatpush2.bf16.msra.mxu0 0
    %1612 = vmatprep.subr.bf16.mxu0 0
    %1613 = vmatpush2.bf16.msra.mxu0 0
    %1614 = vmatprep.subr.bf16.mxu0 0
    %1615 = vmatpush2.bf16.msra.mxu0 0
    %1616 = vmatprep.mubr.bf16.mxu0 0
    %1617 = vmatmul.mubr.bf16.gmra.mxu0 %v1259
    %v1618 = vpop.f32.mrf.mxu0
    %v1619 = vadd.f32 %v1570, %v1618
    %v1620 = vpop.f32.mrf.mxu0
    %v1621 = vpop.f32.mrf.mxu0
    %v1622 = vadd.f32 %v1570, %v1621
    %v1623 = vpop.f32.mrf.mxu0
    %1624 = vdwg.mxu0
    %s1625 = scalar_lea.vmem %s7, 48
    %v1626 = vld [vmem:[%s1625] sm:$0xf]
    %v1627 = vld [vmem:[%s1625 + $0x4] sm:$0xf]
    %v1628 = vld [vmem:[%s1625 + $0x8] sm:$0xf]
    %v1629 = vld [vmem:[%s1625 + $0xc] sm:$0xf]
    %s1630 = scalar_lea.vmem %s8, 3
    %v1631 = vld [vmem:[%s1630] sm:$0x1]
    %v1633 = vlaneseq
    %v1634 = vshrl.u32 %v1633, 7
    %v1635 = vsub.s32 0, %v1634
    %v1636 = vrot.slane %v1631, %v1635
    %v1642 = vunpack.c.l.b16 %v1626
    %v1643 = vunpack.c.l.b16 %v1627
    %v1644 = vunpack.c.l.b16 %v1628
    %v1645 = vunpack.c.l.b16 %v1629
    %v1646 = vpack.c.b16 %v1643, %v1642
    %v1647 = vpack.c.b16 %v1645, %v1644
    %1650 = vmatprep.subr.bf16.mxu0 0
    %1651 = vmatpush1.bf16.msra.mxu0 0
    %1652 = vmatprep.subr.bf16.mxu0 0
    %1653 = vmatpush1.bf16.msra.mxu0 0
    %1654 = vmatprep.subr.bf16.mxu0 0
    %1655 = vmatpush1.bf16.msra.mxu0 0
    %1656 = vmatprep.subr.bf16.mxu0 0
    %1657 = vmatpush1.bf16.msra.mxu0 0
    %1658 = vmatprep.subr.bf16.mxu0 0
    %1659 = vmatpush1.bf16.msra.mxu0 0
    %1660 = vmatprep.subr.bf16.mxu0 0
    %1661 = vmatpush1.bf16.msra.mxu0 0
    %1662 = vmatprep.subr.bf16.mxu0 0
    %1663 = vmatpush1.bf16.msra.mxu0 %v1647
    %1664 = vmatprep.subr.bf16.mxu0 0
    %1665 = vmatpush1.bf16.msra.mxu0 %v1646
    %1666 = vmatprep.subr.bf16.mxu0 0
    %1667 = vmatpush2.bf16.msra.mxu0 0
    %1668 = vmatprep.subr.bf16.mxu0 0
    %1669 = vmatpush2.bf16.msra.mxu0 0
    %1670 = vmatprep.subr.bf16.mxu0 0
    %1671 = vmatpush2.bf16.msra.mxu0 0
    %1672 = vmatprep.subr.bf16.mxu0 0
    %1673 = vmatpush2.bf16.msra.mxu0 0
    %1674 = vmatprep.subr.bf16.mxu0 0
    %1675 = vmatpush2.bf16.msra.mxu0 0
    %1676 = vmatprep.subr.bf16.mxu0 0
    %1677 = vmatpush2.bf16.msra.mxu0 0
    %1678 = vmatprep.subr.bf16.mxu0 0
    %1679 = vmatpush2.bf16.msra.mxu0 0
    %1680 = vmatprep.subr.bf16.mxu0 0
    %1681 = vmatpush2.bf16.msra.mxu0 0
    %1682 = vmatprep.mubr.bf16.mxu0 0
    %1683 = vmatmul.mubr.bf16.gmra.mxu0 %v1259
    %v1684 = vpop.f32.mrf.mxu0
    %v1685 = vadd.f32 %v1636, %v1684
    %v1686 = vpop.f32.mrf.mxu0
    %v1687 = vpop.f32.mrf.mxu0
    %v1688 = vadd.f32 %v1636, %v1687
    %v1689 = vpop.f32.mrf.mxu0
    %1690 = vdwg.mxu0
    %s1691 = scalar_lea.vmem %s9, 48
    %v1692 = vld [vmem:[%s1691] sm:$0xf]
    %v1693 = vld [vmem:[%s1691 + $0x4] sm:$0xf]
    %v1694 = vld [vmem:[%s1691 + $0x8] sm:$0xf]
    %v1695 = vld [vmem:[%s1691 + $0xc] sm:$0xf]
    %s1696 = scalar_lea.vmem %s10, 3
    %v1697 = vld [vmem:[%s1696] sm:$0x1]
    %v1699 = vlaneseq
    %v1700 = vshrl.u32 %v1699, 7
    %v1701 = vsub.s32 0, %v1700
    %v1702 = vrot.slane %v1697, %v1701
    %v1708 = vunpack.c.l.b16 %v1692
    %v1709 = vunpack.c.l.b16 %v1693
    %v1710 = vunpack.c.l.b16 %v1694
    %v1711 = vunpack.c.l.b16 %v1695
    %v1712 = vpack.c.b16 %v1709, %v1708
    %v1713 = vpack.c.b16 %v1711, %v1710
    %1716 = vmatprep.subr.bf16.mxu0 0
    %1717 = vmatpush1.bf16.msra.mxu0 0
    %1718 = vmatprep.subr.bf16.mxu0 0
    %1719 = vmatpush1.bf16.msra.mxu0 0
    %1720 = vmatprep.subr.bf16.mxu0 0
    %1721 = vmatpush1.bf16.msra.mxu0 0
    %1722 = vmatprep.subr.bf16.mxu0 0
    %1723 = vmatpush1.bf16.msra.mxu0 0
    %1724 = vmatprep.subr.bf16.mxu0 0
    %1725 = vmatpush1.bf16.msra.mxu0 0
    %1726 = vmatprep.subr.bf16.mxu0 0
    %1727 = vmatpush1.bf16.msra.mxu0 0
    %1728 = vmatprep.subr.bf16.mxu0 0
    %1729 = vmatpush1.bf16.msra.mxu0 %v1713
    %1730 = vmatprep.subr.bf16.mxu0 0
    %1731 = vmatpush1.bf16.msra.mxu0 %v1712
    %1732 = vmatprep.subr.bf16.mxu0 0
    %1733 = vmatpush2.bf16.msra.mxu0 0
    %1734 = vmatprep.subr.bf16.mxu0 0
    %1735 = vmatpush2.bf16.msra.mxu0 0
    %1736 = vmatprep.subr.bf16.mxu0 0
    %1737 = vmatpush2.bf16.msra.mxu0 0
    %1738 = vmatprep.subr.bf16.mxu0 0
    %1739 = vmatpush2.bf16.msra.mxu0 0
    %1740 = vmatprep.subr.bf16.mxu0 0
    %1741 = vmatpush2.bf16.msra.mxu0 0
    %1742 = vmatprep.subr.bf16.mxu0 0
    %1743 = vmatpush2.bf16.msra.mxu0 0
    %1744 = vmatprep.subr.bf16.mxu0 0
    %1745 = vmatpush2.bf16.msra.mxu0 0
    %1746 = vmatprep.subr.bf16.mxu0 0
    %1747 = vmatpush2.bf16.msra.mxu0 0
    %1748 = vmatprep.mubr.bf16.mxu0 0
    %1749 = vmatmul.mubr.bf16.gmra.mxu0 %v1259
    %v1750 = vpop.f32.mrf.mxu0
    %v1751 = vadd.f32 %v1702, %v1750
    %v1752 = vpop.f32.mrf.mxu0
    %v1753 = vpop.f32.mrf.mxu0
    %v1754 = vadd.f32 %v1702, %v1753
    %v1755 = vpop.f32.mrf.mxu0
    %1756 = vdwg.mxu0
    %v1757 = vpack.c.bf16 %v1622, %v1619
    %v1758 = vpack.c.bf16 %v1688, %v1685
    %v1760 = vsel %vm415, %v1757, 0
    %v1763 = vsel %vm415, %v1758, 0
    %1765 = vmatprep.subr.bf16.mxu0 0
    %1766 = vmatpush1.bf16.xpose.msra.mxu0 0
    %1767 = vmatprep.subr.bf16.mxu0 0
    %1768 = vmatpush1.bf16.xpose.msra.mxu0 0
    %1769 = vmatprep.subr.bf16.mxu0 0
    %1770 = vmatpush1.bf16.xpose.msra.mxu0 0
    %1771 = vmatprep.subr.bf16.mxu0 0
    %1772 = vmatpush1.bf16.xpose.msra.mxu0 0
    %1773 = vmatprep.subr.bf16.mxu0 0
    %1774 = vmatpush1.bf16.xpose.msra.mxu0 0
    %1775 = vmatprep.subr.bf16.mxu0 0
    %1776 = vmatpush1.bf16.xpose.msra.mxu0 0
    %1777 = vmatprep.subr.bf16.mxu0 0
    %1778 = vmatpush1.bf16.xpose.msra.mxu0 0
    %1779 = vmatprep.subr.bf16.mxu0 0
    %1780 = vmatpush1.bf16.xpose.msra.mxu0 %v1763
    %1781 = vmatprep.subr.bf16.mxu0 0
    %1782 = vmatpush2.bf16.xpose.msra.mxu0 0
    %1783 = vmatprep.subr.bf16.mxu0 0
    %1784 = vmatpush2.bf16.xpose.msra.mxu0 0
    %1785 = vmatprep.subr.bf16.mxu0 0
    %1786 = vmatpush2.bf16.xpose.msra.mxu0 0
    %1787 = vmatprep.subr.bf16.mxu0 0
    %1788 = vmatpush2.bf16.xpose.msra.mxu0 0
    %1789 = vmatprep.subr.bf16.mxu0 0
    %1790 = vmatpush2.bf16.xpose.msra.mxu0 0
    %1791 = vmatprep.subr.bf16.mxu0 0
    %1792 = vmatpush2.bf16.xpose.msra.mxu0 0
    %1793 = vmatprep.subr.bf16.mxu0 0
    %1794 = vmatpush2.bf16.xpose.msra.mxu0 0
    %1795 = vmatprep.subr.bf16.mxu0 0
    %1796 = vmatpush2.bf16.xpose.msra.mxu0 0
    %1797 = vmatprep.mubr.bf16.mxu0 0
    %1798 = vmatmul.mubr.bf16.gmra.mxu0 %v1760
    %v1799 = vpop.f32.mrf.mxu0
    %v1800 = vadd.f32 0.0, %v1799
    %v1801 = vpop.f32.mrf.mxu0
    %v1802 = vpop.f32.mrf.mxu0
    %v1803 = vadd.f32 0.0, %v1802
    %v1804 = vpop.f32.mrf.mxu0
    %1805 = vdwg.mxu0
    %v1806 = vmul.f32 %v1800, 0.25
    %v1807 = vmul.f32 %v1803, 0.25
    %v1808 = vadd.f32 %v1806, %v215
    %v1809 = vadd.f32 %v1807, %v216
    %v1810 = vsel %vm415, %v1808, -inf
    %1811 = vmax.xlane.f32.xlu0 %v1810
    %v1812 = vpop.xlane.xlu0 %1811
    %v1813 = vsel %vm415, %v1809, -inf
    %1814 = vmax.xlane.f32.xlu0 %v1813
    %v1815 = vpop.xlane.xlu0 %1814
    %v1816 = vsub.f32 %v1808, %v1812
    %v1817 = vsub.f32 %v1809, %v1815
    %v1818 = vmul.f32 %v1816, 1.442695
    %v1819 = vpow.pop %v1818
    %v1820 = vmul.f32 %v1817, 1.442695
    %v1821 = vpow.pop %v1820
    %v1822 = vsel %vm415, %v1819, 0.0
    %1823 = vadd.xlane.f32.xlu0 %v1822
    %v1824 = vpop.xlane.xlu0 %1823
    %v1825 = vsel %vm415, %v1821, 0.0
    %1826 = vadd.xlane.f32.xlu0 %v1825
    %v1827 = vpop.xlane.xlu0 %1826
    %v1828 = vrcp.pop %v1824
    %v1829 = vrcp.pop %v1827
    %v1830 = vmul.f32 %v1819, %v1828
    %v1831 = vmul.f32 %v1821, %v1829
    %v1832 = vpack.c.bf16 %v1831, %v1830
    %v1833 = vpack.c.bf16 %v1754, %v1751
    %v1835 = vsel %vm415, %v1832, 0
    %1837 = vmatprep.subr.bf16.mxu0 0
    %1838 = vmatpush1.bf16.msra.mxu0 0
    %1839 = vmatprep.subr.bf16.mxu0 0
    %1840 = vmatpush1.bf16.msra.mxu0 0
    %1841 = vmatprep.subr.bf16.mxu0 0
    %1842 = vmatpush1.bf16.msra.mxu0 0
    %1843 = vmatprep.subr.bf16.mxu0 0
    %1844 = vmatpush1.bf16.msra.mxu0 0
    %1845 = vmatprep.subr.bf16.mxu0 0
    %1846 = vmatpush1.bf16.msra.mxu0 0
    %1847 = vmatprep.subr.bf16.mxu0 0
    %1848 = vmatpush1.bf16.msra.mxu0 0
    %1849 = vmatprep.subr.bf16.mxu0 0
    %1850 = vmatpush1.bf16.msra.mxu0 0
    %1851 = vmatprep.subr.bf16.mxu0 0
    %1852 = vmatpush1.bf16.msra.mxu0 %v1833
    %1853 = vmatprep.subr.bf16.mxu0 0
    %1854 = vmatpush2.bf16.msra.mxu0 0
    %1855 = vmatprep.subr.bf16.mxu0 0
    %1856 = vmatpush2.bf16.msra.mxu0 0
    %1857 = vmatprep.subr.bf16.mxu0 0
    %1858 = vmatpush2.bf16.msra.mxu0 0
    %1859 = vmatprep.subr.bf16.mxu0 0
    %1860 = vmatpush2.bf16.msra.mxu0 0
    %1861 = vmatprep.subr.bf16.mxu0 0
    %1862 = vmatpush2.bf16.msra.mxu0 0
    %1863 = vmatprep.subr.bf16.mxu0 0
    %1864 = vmatpush2.bf16.msra.mxu0 0
    %1865 = vmatprep.subr.bf16.mxu0 0
    %1866 = vmatpush2.bf16.msra.mxu0 0
    %1867 = vmatprep.subr.bf16.mxu0 0
    %1868 = vmatpush2.bf16.msra.mxu0 0
    %1869 = vmatprep.mubr.bf16.mxu0 0
    %1870 = vmatmul.mubr.bf16.gmra.mxu0 %v1835
    %v1871 = vpop.f32.mrf.mxu0
    %v1872 = vadd.f32 0.0, %v1871
    %v1873 = vpop.f32.mrf.mxu0
    %v1874 = vpop.f32.mrf.mxu0
    %v1875 = vadd.f32 0.0, %v1874
    %v1876 = vpop.f32.mrf.mxu0
    %1877 = vdwg.mxu0
    %v1878 = vpack.c.bf16 %v1875, %v1872
    %s1879 = scalar_lea.vmem %s11, 24
    %v1880 = vld [vmem:[%s1879] sm:$0xf]
    %v1881 = vld [vmem:[%s1879 + $0x4] sm:$0xf]
    %v1884 = vunpack.c.l.b16 %v1880
    %v1885 = vunpack.c.l.b16 %v1881
    %v1886 = vpack.c.b16 %v1885, %v1884
    %v1889 = vsel %vm415, %v1878, 0
    %1891 = vmatprep.subr.bf16.mxu0 0
    %1892 = vmatpush1.bf16.msra.mxu0 0
    %1893 = vmatprep.subr.bf16.mxu0 0
    %1894 = vmatpush1.bf16.msra.mxu0 0
    %1895 = vmatprep.subr.bf16.mxu0 0
    %1896 = vmatpush1.bf16.msra.mxu0 0
    %1897 = vmatprep.subr.bf16.mxu0 0
    %1898 = vmatpush1.bf16.msra.mxu0 0
    %1899 = vmatprep.subr.bf16.mxu0 0
    %1900 = vmatpush1.bf16.msra.mxu0 0
    %1901 = vmatprep.subr.bf16.mxu0 0
    %1902 = vmatpush1.bf16.msra.mxu0 0
    %1903 = vmatprep.subr.bf16.mxu0 0
    %1904 = vmatpush1.bf16.msra.mxu0 0
    %1905 = vmatprep.subr.bf16.mxu0 0
    %1906 = vmatpush1.bf16.msra.mxu0 %v1886
    %1907 = vmatprep.subr.bf16.mxu0 0
    %1908 = vmatpush2.bf16.msra.mxu0 0
    %1909 = vmatprep.subr.bf16.mxu0 0
    %1910 = vmatpush2.bf16.msra.mxu0 0
    %1911 = vmatprep.subr.bf16.mxu0 0
    %1912 = vmatpush2.bf16.msra.mxu0 0
    %1913 = vmatprep.subr.bf16.mxu0 0
    %1914 = vmatpush2.bf16.msra.mxu0 0
    %1915 = vmatprep.subr.bf16.mxu0 0
    %1916 = vmatpush2.bf16.msra.mxu0 0
    %1917 = vmatprep.subr.bf16.mxu0 0
    %1918 = vmatpush2.bf16.msra.mxu0 0
    %1919 = vmatprep.subr.bf16.mxu0 0
    %1920 = vmatpush2.bf16.msra.mxu0 0
    %1921 = vmatprep.subr.bf16.mxu0 0
    %1922 = vmatpush2.bf16.msra.mxu0 0
    %1923 = vmatprep.mubr.bf16.mxu0 0
    %1924 = vmatmul.mubr.bf16.gmra.mxu0 %v1889
    %v1925 = vpop.f32.mrf.mxu0
    %v1926 = vadd.f32 0.0, %v1925
    %v1927 = vpop.f32.mrf.mxu0
    %v1928 = vpop.f32.mrf.mxu0
    %v1929 = vadd.f32 0.0, %v1928
    %v1930 = vpop.f32.mrf.mxu0
    %1931 = vdwg.mxu0
    %v1934 = vunpack.c.l.b16 %v1557
    %v1935 = vunpack.c.l.b16 %v1558
    %v1936 = vpack.c.b16 %v1935, %v1934
    %v1939 = vsel %vm415, %v1555, 0
    %1941 = vmatprep.subr.bf16.mxu0 0
    %1942 = vmatpush1.bf16.msra.mxu0 0
    %1943 = vmatprep.subr.bf16.mxu0 0
    %1944 = vmatpush1.bf16.msra.mxu0 0
    %1945 = vmatprep.subr.bf16.mxu0 0
    %1946 = vmatpush1.bf16.msra.mxu0 0
    %1947 = vmatprep.subr.bf16.mxu0 0
    %1948 = vmatpush1.bf16.msra.mxu0 0
    %1949 = vmatprep.subr.bf16.mxu0 0
    %1950 = vmatpush1.bf16.msra.mxu0 0
    %1951 = vmatprep.subr.bf16.mxu0 0
    %1952 = vmatpush1.bf16.msra.mxu0 0
    %1953 = vmatprep.subr.bf16.mxu0 0
    %1954 = vmatpush1.bf16.msra.mxu0 0
    %1955 = vmatprep.subr.bf16.mxu0 0
    %1956 = vmatpush1.bf16.msra.mxu0 %v1936
    %1957 = vmatprep.subr.bf16.mxu0 0
    %1958 = vmatpush2.bf16.msra.mxu0 0
    %1959 = vmatprep.subr.bf16.mxu0 0
    %1960 = vmatpush2.bf16.msra.mxu0 0
    %1961 = vmatprep.subr.bf16.mxu0 0
    %1962 = vmatpush2.bf16.msra.mxu0 0
    %1963 = vmatprep.subr.bf16.mxu0 0
    %1964 = vmatpush2.bf16.msra.mxu0 0
    %1965 = vmatprep.subr.bf16.mxu0 0
    %1966 = vmatpush2.bf16.msra.mxu0 0
    %1967 = vmatprep.subr.bf16.mxu0 0
    %1968 = vmatpush2.bf16.msra.mxu0 0
    %1969 = vmatprep.subr.bf16.mxu0 0
    %1970 = vmatpush2.bf16.msra.mxu0 0
    %1971 = vmatprep.subr.bf16.mxu0 0
    %1972 = vmatpush2.bf16.msra.mxu0 0
    %1973 = vmatprep.mubr.bf16.mxu0 0
    %1974 = vmatmul.mubr.bf16.gmra.mxu0 %v1939
    %v1975 = vpop.f32.mrf.mxu0
    %v1976 = vadd.f32 %v1926, %v1975
    %v1977 = vpop.f32.mrf.mxu0
    %v1978 = vpop.f32.mrf.mxu0
    %v1979 = vadd.f32 %v1929, %v1978
    %v1980 = vpop.f32.mrf.mxu0
    %1981 = vdwg.mxu0
    %s1982 = scalar_lea.vmem %s12, 1
    %v1983 = vld [vmem:[%s1982] sm:$0x1]
    %v1985 = vlaneseq
    %v1986 = vshrl.u32 %v1985, 7
    %v1987 = vsub.s32 0, %v1986
    %v1988 = vrot.slane %v1983, %v1987
    %v1990 = vadd.f32 %v1976, %v1988
    %v1991 = vadd.f32 %v1979, %v1988
    %v1992 = vadd.f32 %v1230, %v1990
    %v1993 = vadd.f32 %v1231, %v1991
    %s1994 = scalar_lea.vmem %s13, 1
    %v1995 = vld [vmem:[%s1994] sm:$0x1]
    %s1996 = scalar_lea.vmem %s14, 1
    %v1997 = vld [vmem:[%s1996] sm:$0x1]
    %v1998 = vsel %vm171, %v1992, 0.0
    %1999 = vadd.xlane.f32.xlu0 %v1998
    %v2000 = vpop.xlane.xlu0 %1999
    %v2001 = vsel %vm171, %v1993, 0.0
    %2002 = vadd.xlane.f32.xlu0 %v2001
    %v2003 = vpop.xlane.xlu0 %2002
    %v2004 = vmul.f32 %v2000, %v178
    %v2005 = vmul.f32 %v2003, %v178
    %v2006 = vsub.f32 %v1992, %v2004
    %v2007 = vsub.f32 %v1993, %v2005
    %v2008 = vmul.f32 %v2006, %v2006
    %v2009 = vmul.f32 %v2007, %v2007
    %v2010 = vsel %vm171, %v2008, 0.0
    %2011 = vadd.xlane.f32.xlu0 %v2010
    %v2012 = vpop.xlane.xlu0 %2011
    %v2013 = vsel %vm171, %v2009, 0.0
    %2014 = vadd.xlane.f32.xlu0 %v2013
    %v2015 = vpop.xlane.xlu0 %2014
    %v2016 = vmul.f32 %v2012, %v178
    %v2017 = vmul.f32 %v2015, %v178
    %v2018 = vadd.f32 %v2016, 1e-05
    %v2019 = vadd.f32 %v2017, 1e-05
    %v2020 = vrsqrt.pop %v2018
    %v2021 = vrsqrt.pop %v2019
    %v2022 = vmul.f32 %v2006, %v2020
    %v2023 = vmul.f32 %v2007, %v2021
    %v2025 = vlaneseq
    %v2026 = vshrl.u32 %v2025, 7
    %v2027 = vsub.s32 0, %v2026
    %v2028 = vrot.slane %v1995, %v2027
    %v2030 = vmul.f32 %v2022, %v2028
    %v2031 = vmul.f32 %v2023, %v2028
    %v2033 = vlaneseq
    %v2034 = vshrl.u32 %v2033, 7
    %v2035 = vsub.s32 0, %v2034
    %v2036 = vrot.slane %v1997, %v2035
    %v2038 = vadd.f32 %v2030, %v2036
    %v2039 = vadd.f32 %v2031, %v2036
    %v2040 = vpack.c.bf16 %v2039, %v2038
    %s2041 = scalar_lea.vmem %s15, 16
    %v2042 = vld [vmem:[%s2041] sm:$0xf]
    %v2043 = vld [vmem:[%s2041 + $0x4] sm:$0xf]
    %v2044 = vld [vmem:[%s2041 + $0x8] sm:$0xf]
    %v2045 = vld [vmem:[%s2041 + $0xc] sm:$0xf]
    %s2046 = scalar_lea.vmem %s16, 1
    %v2047 = vld [vmem:[%s2046] sm:$0x1]
    %v2049 = vlaneseq
    %v2050 = vshrl.u32 %v2049, 7
    %v2051 = vsub.s32 0, %v2050
    %v2052 = vrot.slane %v2047, %v2051
    %v2058 = vunpack.c.l.b16 %v2042
    %v2059 = vunpack.c.l.b16 %v2043
    %v2060 = vunpack.c.l.b16 %v2044
    %v2061 = vunpack.c.l.b16 %v2045
    %v2062 = vpack.c.b16 %v2059, %v2058
    %v2063 = vpack.c.b16 %v2061, %v2060
    %v2067 = vsel %vm171, %v2040, 0
    %2069 = vmatprep.subr.bf16.mxu0 0
    %2070 = vmatpush1.bf16.msra.mxu0 0
    %2071 = vmatprep.subr.bf16.mxu0 0
    %2072 = vmatpush1.bf16.msra.mxu0 0
    %2073 = vmatprep.subr.bf16.mxu0 0
    %2074 = vmatpush1.bf16.msra.mxu0 0
    %2075 = vmatprep.subr.bf16.mxu0 0
    %2076 = vmatpush1.bf16.msra.mxu0 0
    %2077 = vmatprep.subr.bf16.mxu0 0
    %2078 = vmatpush1.bf16.msra.mxu0 0
    %2079 = vmatprep.subr.bf16.mxu0 0
    %2080 = vmatpush1.bf16.msra.mxu0 0
    %2081 = vmatprep.subr.bf16.mxu0 0
    %2082 = vmatpush1.bf16.msra.mxu0 %v2063
    %2083 = vmatprep.subr.bf16.mxu0 0
    %2084 = vmatpush1.bf16.msra.mxu0 %v2062
    %2085 = vmatprep.subr.bf16.mxu0 0
    %2086 = vmatpush2.bf16.msra.mxu0 0
    %2087 = vmatprep.subr.bf16.mxu0 0
    %2088 = vmatpush2.bf16.msra.mxu0 0
    %2089 = vmatprep.subr.bf16.mxu0 0
    %2090 = vmatpush2.bf16.msra.mxu0 0
    %2091 = vmatprep.subr.bf16.mxu0 0
    %2092 = vmatpush2.bf16.msra.mxu0 0
    %2093 = vmatprep.subr.bf16.mxu0 0
    %2094 = vmatpush2.bf16.msra.mxu0 0
    %2095 = vmatprep.subr.bf16.mxu0 0
    %2096 = vmatpush2.bf16.msra.mxu0 0
    %2097 = vmatprep.subr.bf16.mxu0 0
    %2098 = vmatpush2.bf16.msra.mxu0 0
    %2099 = vmatprep.subr.bf16.mxu0 0
    %2100 = vmatpush2.bf16.msra.mxu0 0
    %2101 = vmatprep.mubr.bf16.mxu0 0
    %2102 = vmatmul.mubr.bf16.gmra.mxu0 %v2067
    %v2103 = vpop.f32.mrf.mxu0
    %v2104 = vadd.f32 %v2052, %v2103
    %v2105 = vpop.f32.mrf.mxu0
    %v2106 = vpop.f32.mrf.mxu0
    %v2107 = vadd.f32 %v2052, %v2106
    %v2108 = vpop.f32.mrf.mxu0
    %2109 = vdwg.mxu0
    %v2110 = vmul.f32 %v2104, %v2104
    %v2111 = vmul.f32 %v2107, %v2107
    %v2112 = vmul.f32 %v2104, %v2110
    %v2113 = vmul.f32 %v2107, %v2111
    %v2114 = vmul.f32 %v2112, 0.044715
    %v2115 = vmul.f32 %v2113, 0.044715
    %v2116 = vadd.f32 %v2104, %v2114
    %v2117 = vadd.f32 %v2107, %v2115
    %v2118 = vmul.f32 %v2116, 0.7978846
    %v2119 = vmul.f32 %v2117, 0.7978846
    %v2120 = vtanh.pop %v2118
    %v2121 = vtanh.pop %v2119
    %v2122 = vadd.f32 %v2120, 1.0
    %v2123 = vadd.f32 %v2121, 1.0
    %v2124 = vmul.f32 %v2122, 0.5
    %v2125 = vmul.f32 %v2123, 0.5
    %v2126 = vmul.f32 %v2104, %v2124
    %v2127 = vmul.f32 %v2107, %v2125
    %v2128 = vpack.c.bf16 %v2127, %v2126
    %s2129 = scalar_lea.vmem %s17, 32
    %v2130 = vld [vmem:[%s2129] sm:$0xf]
    %v2131 = vld [vmem:[%s2129 + $0x4] sm:$0xf]
    %v2132 = vld [vmem:[%s2129 + $0x8] sm:$0xf]
    %v2133 = vld [vmem:[%s2129 + $0xc] sm:$0xf]
    %v2134 = vld [vmem:[%s2129 + $0x10] sm:$0xf]
    %v2135 = vld [vmem:[%s2129 + $0x14] sm:$0xf]
    %v2136 = vld [vmem:[%s2129 + $0x18] sm:$0xf]
    %v2137 = vld [vmem:[%s2129 + $0x1c] sm:$0xf]
    %s2138 = scalar_lea.vmem %s18, 1
    %v2139 = vld [vmem:[%s2138] sm:$0x1]
    %v2141 = vlaneseq
    %v2142 = vshrl.u32 %v2141, 7
    %v2143 = vsub.s32 0, %v2142
    %v2144 = vrot.slane %v2139, %v2143
    %v2154 = vunpack.c.l.b16 %v2130
    %v2155 = vunpack.c.l.b16 %v2131
    %v2156 = vunpack.c.l.b16 %v2132
    %v2157 = vunpack.c.l.b16 %v2133
    %v2158 = vunpack.c.l.b16 %v2134
    %v2159 = vunpack.c.l.b16 %v2135
    %v2160 = vunpack.c.l.b16 %v2136
    %v2161 = vunpack.c.l.b16 %v2137
    %v2162 = vpack.c.b16 %v2155, %v2154
    %v2163 = vpack.c.b16 %v2157, %v2156
    %v2164 = vpack.c.b16 %v2159, %v2158
    %v2165 = vpack.c.b16 %v2161, %v2160
    %v2171 = vsel %vm124, %v2128, 0
    %2173 = vmatprep.subr.bf16.mxu0 0
    %2174 = vmatpush1.bf16.msra.mxu0 0
    %2175 = vmatprep.subr.bf16.mxu0 0
    %2176 = vmatpush1.bf16.msra.mxu0 0
    %2177 = vmatprep.subr.bf16.mxu0 0
    %2178 = vmatpush1.bf16.msra.mxu0 0
    %2179 = vmatprep.subr.bf16.mxu0 0
    %2180 = vmatpush1.bf16.msra.mxu0 0
    %2181 = vmatprep.subr.bf16.mxu0 0
    %2182 = vmatpush1.bf16.msra.mxu0 %v2165
    %2183 = vmatprep.subr.bf16.mxu0 0
    %2184 = vmatpush1.bf16.msra.mxu0 %v2164
    %2185 = vmatprep.subr.bf16.mxu0 0
    %2186 = vmatpush1.bf16.msra.mxu0 %v2163
    %2187 = vmatprep.subr.bf16.mxu0 0
    %2188 = vmatpush1.bf16.msra.mxu0 %v2162
    %2189 = vmatprep.subr.bf16.mxu0 0
    %2190 = vmatpush2.bf16.msra.mxu0 0
    %2191 = vmatprep.subr.bf16.mxu0 0
    %2192 = vmatpush2.bf16.msra.mxu0 0
    %2193 = vmatprep.subr.bf16.mxu0 0
    %2194 = vmatpush2.bf16.msra.mxu0 0
    %2195 = vmatprep.subr.bf16.mxu0 0
    %2196 = vmatpush2.bf16.msra.mxu0 0
    %2197 = vmatprep.subr.bf16.mxu0 0
    %2198 = vmatpush2.bf16.msra.mxu0 0
    %2199 = vmatprep.subr.bf16.mxu0 0
    %2200 = vmatpush2.bf16.msra.mxu0 0
    %2201 = vmatprep.subr.bf16.mxu0 0
    %2202 = vmatpush2.bf16.msra.mxu0 0
    %2203 = vmatprep.subr.bf16.mxu0 0
    %2204 = vmatpush2.bf16.msra.mxu0 0
    %2205 = vmatprep.mubr.bf16.mxu0 0
    %2206 = vmatmul.mubr.bf16.gmra.mxu0 %v2171
    %v2207 = vpop.f32.mrf.mxu0
    %v2208 = vadd.f32 %v2144, %v2207
    %v2209 = vpop.f32.mrf.mxu0
    %v2210 = vpop.f32.mrf.mxu0
    %v2211 = vadd.f32 %v2144, %v2210
    %v2212 = vpop.f32.mrf.mxu0
    %2213 = vdwg.mxu0
    %v2214 = vadd.f32 %v2038, %v2208
    %v2215 = vadd.f32 %v2039, %v2211
    %s2216 = scalar_lea.vmem %s19, 1
    %v2217 = vld [vmem:[%s2216] sm:$0x1]
    %s2218 = scalar_lea.vmem %s20, 1
    %v2219 = vld [vmem:[%s2218] sm:$0x1]
    %v2220 = vsel %vm171, %v2214, 0.0
    %2221 = vadd.xlane.f32.xlu0 %v2220
    %v2222 = vpop.xlane.xlu0 %2221
    %v2223 = vsel %vm171, %v2215, 0.0
    %2224 = vadd.xlane.f32.xlu0 %v2223
    %v2225 = vpop.xlane.xlu0 %2224
    %v2226 = vmul.f32 %v2222, %v178
    %v2227 = vmul.f32 %v2225, %v178
    %v2228 = vsub.f32 %v2214, %v2226
    %v2229 = vsub.f32 %v2215, %v2227
    %v2230 = vmul.f32 %v2228, %v2228
    %v2231 = vmul.f32 %v2229, %v2229
    %v2232 = vsel %vm171, %v2230, 0.0
    %2233 = vadd.xlane.f32.xlu0 %v2232
    %v2234 = vpop.xlane.xlu0 %2233
    %v2235 = vsel %vm171, %v2231, 0.0
    %2236 = vadd.xlane.f32.xlu0 %v2235
    %v2237 = vpop.xlane.xlu0 %2236
    %v2238 = vmul.f32 %v2234, %v178
    %v2239 = vmul.f32 %v2237, %v178
    %v2240 = vadd.f32 %v2238, 1e-05
    %v2241 = vadd.f32 %v2239, 1e-05
    %v2242 = vrsqrt.pop %v2240
    %v2243 = vrsqrt.pop %v2241
    %v2244 = vmul.f32 %v2228, %v2242
    %v2245 = vmul.f32 %v2229, %v2243
    %v2247 = vlaneseq
    %v2248 = vshrl.u32 %v2247, 7
    %v2249 = vsub.s32 0, %v2248
    %v2250 = vrot.slane %v2217, %v2249
    %v2252 = vmul.f32 %v2244, %v2250
    %v2253 = vmul.f32 %v2245, %v2250
    %v2255 = vlaneseq
    %v2256 = vshrl.u32 %v2255, 7
    %v2257 = vsub.s32 0, %v2256
    %v2258 = vrot.slane %v2219, %v2257
    %v2260 = vadd.f32 %v2252, %v2258
    %v2261 = vadd.f32 %v2253, %v2258
    %2262 = vst.msk [vmem:[#allocation2] sm:$0xff] %vm171, %v2260
    %2263 = vst.msk [vmem:[#allocation2 + $0x8] sm:$0xff] %vm171, %v2261
    // Predicated region
    $region90: #{lm_forward.1} parent=1 // pred_check
      _
    $region91: #{lm_forward.1} parent=1 // pred_check_branch
      %2265 = sbr.rel (0) target = $region93
    $region92: #{lm_forward.1} parent=1 // pred_region
      %s2267 = ssub.s32 256, 256
      %2268 = vsyncadd [#allocation3], %s2267
      %s2269 = sshll.u32 [#allocation2], 4
      %s2270 = int_to_ptr.vmem [resolvable:$true] %s2269
      %2275 = dma.vmem_to_hbm [thread:$0]  %s2270, 256, %s22, [#allocation3], 128, 128, 8
    $region93: #{lm_forward.1} parent=1 // pred_fallthru
      _
    // Predicated region
    $region94: #{lm_forward.1} parent=1 // pred_check
      _
    $region95: #{lm_forward.1} parent=1 // pred_check_branch
      %2277 = sbr.rel (0) target = $region97
    $region96: #{lm_forward.1} parent=1 // pred_region
      %2278 = dma.done [#allocation3], 256
    $region97: #{lm_forward.1} parent=1 // pred_fallthru
      _
    %2279 = vsyncpa [#allocation3], 1

</llo_original>
